<compile_context>
chip_gen: v5e
topology: v5e:2x2
jax: 0.10.0
libtpu: 0.0.40
codegen_flags: <defaults>
</compile_context>

<pallas_src>
import jax
import jax.numpy as jnp
from jax.experimental import pallas as pl
from jax.experimental.pallas import tpu as pltpu

D_IN, D_H1, D_H2, D_OUT = 877, 1024, 512, 206


def _round_up(x, m):
    return ((x + m - 1) // m) * m


D_IN_P = _round_up(D_IN, 128)    # 877 -> 896: lane-aligned K for the first matmul
D_OUT_P = _round_up(D_OUT, 128)  # 206 -> 256: lane-dense output stores


def mlp_kernel(x_ref, w1_ref, b1_ref, w2_ref, b2_ref, w3_ref, b3_ref, o_ref):
    x = x_ref[...]
    # Layer 1: Linear + ReLU (bf16 matmul, f32 accumulate, f32 bias/ReLU epilogue)
    h1 = jnp.dot(x, w1_ref[...], preferred_element_type=jnp.float32) + b1_ref[...]
    h1 = jnp.maximum(h1, 0.0).astype(w2_ref.dtype)
    # Layer 2: Linear + ReLU
    h2 = jnp.dot(h1, w2_ref[...], preferred_element_type=jnp.float32) + b2_ref[...]
    h2 = jnp.maximum(h2, 0.0).astype(w3_ref.dtype)
    # TODO(synk): nn.Dropout(0.3) is identity in eval mode; training-mode dropout not implemented.
    # Layer 3: Linear (output columns beyond D_OUT are zero-padded, sliced off outside)
    out = jnp.dot(h2, w3_ref[...], preferred_element_type=jnp.float32) + b3_ref[...]
    o_ref[...] = out.astype(o_ref.dtype)


def prepare_params(params, compute_dtype=jnp.bfloat16):
    """One-time parameter preparation: cast weights to the MXU compute dtype and
    zero-pad to lane-aligned shapes. Do this ONCE and reuse across forward calls
    so the per-call wrapper does no weight traffic at all."""
    w1, b1, w2, b2, w3, b3 = params
    cdt = jnp.dtype(compute_dtype)
    w1_p = jnp.pad(w1.astype(cdt), ((0, D_IN_P - D_IN), (0, 0)))      # zero K-padding
    w2_c = w2.astype(cdt)
    w3_p = jnp.pad(w3.astype(cdt), ((0, 0), (0, D_OUT_P - D_OUT)))    # zero N-padding
    b1_c = b1.reshape(1, D_H1).astype(jnp.float32)
    b2_c = b2.reshape(1, D_H2).astype(jnp.float32)
    b3_p = jnp.pad(b3.reshape(1, D_OUT).astype(jnp.float32), ((0, 0), (0, D_OUT_P - D_OUT)))
    return (w1_p, b1_c, w2_c, b2_c, w3_p, b3_p)


def _choose_tile(B, tb_max):
    """Pick (batch_tile, padded_batch). Small B -> single tile; larger B -> aim
    for >=3-4 grid tiles so the 'parallel' batch axis splits across both v7x
    TensorCores and each core still pipelines the activation DMA."""
    if B <= 64:
        t = _round_up(max(B, 8), 8)
        return t, t
    t = min(tb_max, max(16, _round_up(pl.cdiv(B, 4), 16)))
    return t, _round_up(B, t)


def mynet_forward(x, prepared_params, *, tb=512):
    """Fused MLP forward. x: [B, 877] f32. prepared_params from prepare_params().
    Returns [B, 206] f32."""
    B = x.shape[0]
    assert x.shape[1] == D_IN
    w1_p, b1_c, w2_c, b2_c, w3_p, b3_p = prepared_params
    cdt = w1_p.dtype

    tb_eff, b_pad = _choose_tile(B, tb)
    grid = (b_pad // tb_eff,)

    # Single fused cast+pad pass over the activations (zero padding keeps the
    # math exact: padded K columns hit zero weight rows, padded batch rows are
    # sliced off below).
    x_p = jnp.pad(x.astype(cdt), ((0, b_pad - B), (0, D_IN_P - D_IN)))

    # Weights / biases use a constant index_map: full arrays, VMEM-resident,
    # fetched once (default buffering -- Buffered(1) buys nothing here).
    def const_spec(shape):
        return pl.BlockSpec(shape, lambda i: (0, 0))

    flops = 2 * b_pad * (D_IN_P * D_H1 + D_H1 * D_H2 + D_H2 * D_OUT_P)
    bytes_accessed = (
        (x_p.size + w1_p.size + w2_c.size + w3_p.size) * jnp.dtype(cdt).itemsize
        + (b_pad * D_OUT_P + D_H1 + D_H2 + D_OUT_P) * 4
    )

    out = pl.pallas_call(
        mlp_kernel,
        out_shape=jax.ShapeDtypeStruct((b_pad, D_OUT_P), jnp.float32),
        grid_spec=pltpu.PrefetchScalarGridSpec(
            num_scalar_prefetch=0,
            grid=grid,
            in_specs=[
                # activations: tiled over batch, lane-aligned feature axis
                pl.BlockSpec((tb_eff, D_IN_P), lambda i: (i, 0)),
                const_spec((D_IN_P, D_H1)),
                const_spec((1, D_H1)),
                const_spec((D_H1, D_H2)),
                const_spec((1, D_H2)),
                const_spec((D_H2, D_OUT_P)),
                const_spec((1, D_OUT_P)),
            ],
            out_specs=pl.BlockSpec((tb_eff, D_OUT_P), lambda i: (i, 0)),
        ),
        compiler_params=pltpu.CompilerParams(
            dimension_semantics=("parallel",),   # batch tiles split across TCs on v7x
            vmem_limit_bytes=48 << 20,
        ),
        cost_estimate=pl.CostEstimate(
            flops=flops, transcendentals=0, bytes_accessed=bytes_accessed
        ),
    )(x_p, w1_p, b1_c, w2_c, b2_c, w3_p, b3_p)

    # Strip batch and output-feature padding (matches PyTorch output shape).
    return out[:B, :D_OUT]


def init_params(key):
    """Deterministic PyTorch-style nn.Linear init: U(-1/sqrt(fan_in), 1/sqrt(fan_in))."""
    def linear(k, fan_in, fan_out):
        kw, kb = jax.random.split(k)
        bound = 1.0 / jnp.sqrt(jnp.float32(fan_in))
        w = jax.random.uniform(kw, (fan_in, fan_out), jnp.float32, -bound, bound)
        b = jax.random.uniform(kb, (1, fan_out), jnp.float32, -bound, bound)
        return w, b

    k1, k2, k3 = jax.random.split(key, 3)
    w1, b1 = linear(k1, D_IN, D_H1)
    w2, b2 = linear(k2, D_H1, D_H2)
    w3, b3 = linear(k3, D_H2, D_OUT)
    return (w1, b1, w2, b2, w3, b3)


def reference_forward(x, params):
    """Pure-JAX f32 reference matching the PyTorch module in eval mode."""
    w1, b1, w2, b2, w3, b3 = params
    h1 = jnp.maximum(x @ w1 + b1, 0.0)
    h2 = jnp.maximum(h1 @ w2 + b2, 0.0)
    return h2 @ w3 + b3


if __name__ == "__main__":
    key = jax.random.PRNGKey(0)
    k_x1, k_x2, k_p = jax.random.split(key, 3)

    params = init_params(k_p)
    prepared = prepare_params(params)          # one-time weight cast/pad
    fwd = jax.jit(lambda xx: mynet_forward(xx, prepared))

    # Case 1: tiny batch (single grid tile).
    B1 = 16
    x1 = jax.random.normal(k_x1, (B1, D_IN), dtype=jnp.float32)
    out1 = jax.block_until_ready(fwd(x1))
    ref1 = reference_forward(x1, params)
    assert out1.shape == (B1, D_OUT)
    assert jnp.allclose(out1, ref1, atol=5e-2, rtol=5e-2), (
        f"mismatch vs reference (B={B1}), max abs err={jnp.max(jnp.abs(out1 - ref1))}"
    )

    # Case 2: batch that exercises multi-tile grid + batch padding.
    B2 = 100
    x2 = jax.random.normal(k_x2, (B2, D_IN), dtype=jnp.float32)
    out2 = jax.block_until_ready(jax.jit(lambda xx: mynet_forward(xx, prepared))(x2))
    ref2 = reference_forward(x2, params)
    assert out2.shape == (B2, D_OUT)
    assert jnp.allclose(out2, ref2, atol=5e-2, rtol=5e-2), (
        f"mismatch vs reference (B={B2}), max abs err={jnp.max(jnp.abs(out2 - ref2))}"
    )

    print("KERNEL_OK")
</pallas_src>

<mosaic_0001>
module attributes {stable_mosaic.version = 11 : i64} {
  func.func @mlp_kernel(%arg0: i32, %arg1: memref<16x896xbf16, #tpu.memory_space<vmem>>, %arg2: memref<896x1024xbf16, #tpu.memory_space<vmem>>, %arg3: memref<1x1024xf32, #tpu.memory_space<vmem>>, %arg4: memref<1024x512xbf16, #tpu.memory_space<vmem>>, %arg5: memref<1x512xf32, #tpu.memory_space<vmem>>, %arg6: memref<512x256xbf16, #tpu.memory_space<vmem>>, %arg7: memref<1x256xf32, #tpu.memory_space<vmem>>, %arg8: memref<16x256xf32, #tpu.memory_space<vmem>>) attributes {dimension_semantics = [#tpu.dimension_semantics<parallel>], iteration_bounds = array<i64: 1>, scalar_prefetch = 0 : i64, scratch_operands = 0 : i64, tpu.core_type = #tpu.core_type<tc>, window_params = [{transform_indices = @transform_0, window_bounds = array<i64: 16, 896>}, {pipeline_mode = #tpu.pipeline_mode<synchronous>, transform_indices = @transform_1, window_bounds = array<i64: 896, 1024>}, {pipeline_mode = #tpu.pipeline_mode<synchronous>, transform_indices = @transform_2, window_bounds = array<i64: 1, 1024>}, {pipeline_mode = #tpu.pipeline_mode<synchronous>, transform_indices = @transform_3, window_bounds = array<i64: 1024, 512>}, {pipeline_mode = #tpu.pipeline_mode<synchronous>, transform_indices = @transform_4, window_bounds = array<i64: 1, 512>}, {pipeline_mode = #tpu.pipeline_mode<synchronous>, transform_indices = @transform_5, window_bounds = array<i64: 512, 256>}, {pipeline_mode = #tpu.pipeline_mode<synchronous>, transform_indices = @transform_6, window_bounds = array<i64: 1, 256>}, {transform_indices = @transform_7, window_bounds = array<i64: 16, 256>}]} {
    %c0 = arith.constant 0 : index
    %c0_0 = arith.constant 0 : index
    %0 = vector.load %arg1[%c0, %c0_0] : memref<16x896xbf16, #tpu.memory_space<vmem>>, vector<16x896xbf16>
    %c0_1 = arith.constant 0 : index
    %c0_2 = arith.constant 0 : index
    %1 = vector.load %arg2[%c0_1, %c0_2] : memref<896x1024xbf16, #tpu.memory_space<vmem>>, vector<896x1024xbf16>
    %cst = arith.constant dense<0.000000e+00> : vector<16x1024xf32>
    %2 = tpu.matmul %0, %1, %cst {dimension_numbers = #tpu.dot_dimension_numbers<[1], [0], [0], [1], [0, 0, 1, 1], [], []>} : vector<16x896xbf16>, vector<896x1024xbf16>, vector<16x1024xf32> -> vector<16x1024xf32>
    %c0_3 = arith.constant 0 : index
    %c0_4 = arith.constant 0 : index
    %3 = vector.load %arg3[%c0_3, %c0_4] : memref<1x1024xf32, #tpu.memory_space<vmem>>, vector<1x1024xf32>
    %4 = vector.broadcast %3 : vector<1x1024xf32> to vector<16x1024xf32>
    %5 = arith.addf %2, %4 : vector<16x1024xf32>
    %cst_5 = arith.constant 0.000000e+00 : f32
    %6 = vector.broadcast %cst_5 : f32 to vector<16x1024xf32>
    %7 = arith.maximumf %5, %6 : vector<16x1024xf32>
    %8 = arith.truncf %7 : vector<16x1024xf32> to vector<16x1024xbf16>
    %c0_6 = arith.constant 0 : index
    %c0_7 = arith.constant 0 : index
    %9 = vector.load %arg4[%c0_6, %c0_7] : memref<1024x512xbf16, #tpu.memory_space<vmem>>, vector<1024x512xbf16>
    %cst_8 = arith.constant dense<0.000000e+00> : vector<16x512xf32>
    %10 = tpu.matmul %8, %9, %cst_8 {dimension_numbers = #tpu.dot_dimension_numbers<[1], [0], [0], [1], [0, 0, 1, 1], [], []>} : vector<16x1024xbf16>, vector<1024x512xbf16>, vector<16x512xf32> -> vector<16x512xf32>
    %c0_9 = arith.constant 0 : index
    %c0_10 = arith.constant 0 : index
    %11 = vector.load %arg5[%c0_9, %c0_10] : memref<1x512xf32, #tpu.memory_space<vmem>>, vector<1x512xf32>
    %12 = vector.broadcast %11 : vector<1x512xf32> to vector<16x512xf32>
    %13 = arith.addf %10, %12 : vector<16x512xf32>
    %cst_11 = arith.constant 0.000000e+00 : f32
    %14 = vector.broadcast %cst_11 : f32 to vector<16x512xf32>
    %15 = arith.maximumf %13, %14 : vector<16x512xf32>
    %16 = arith.truncf %15 : vector<16x512xf32> to vector<16x512xbf16>
    %c0_12 = arith.constant 0 : index
    %c0_13 = arith.constant 0 : index
    %17 = vector.load %arg6[%c0_12, %c0_13] : memref<512x256xbf16, #tpu.memory_space<vmem>>, vector<512x256xbf16>
    %cst_14 = arith.constant dense<0.000000e+00> : vector<16x256xf32>
    %18 = tpu.matmul %16, %17, %cst_14 {dimension_numbers = #tpu.dot_dimension_numbers<[1], [0], [0], [1], [0, 0, 1, 1], [], []>} : vector<16x512xbf16>, vector<512x256xbf16>, vector<16x256xf32> -> vector<16x256xf32>
    %c0_15 = arith.constant 0 : index
    %c0_16 = arith.constant 0 : index
    %19 = vector.load %arg7[%c0_15, %c0_16] : memref<1x256xf32, #tpu.memory_space<vmem>>, vector<1x256xf32>
    %20 = vector.broadcast %19 : vector<1x256xf32> to vector<16x256xf32>
    %21 = arith.addf %18, %20 : vector<16x256xf32>
    %c0_17 = arith.constant 0 : index
    %c0_18 = arith.constant 0 : index
    %22 = vector.load %arg8[%c0_17, %c0_18] : memref<16x256xf32, #tpu.memory_space<vmem>>, vector<16x256xf32>
    tpu.vector_store %arg8[%c0_17, %c0_18], %21 {strides = array<i32>} : memref<16x256xf32, #tpu.memory_space<vmem>>, vector<16x256xf32>,
    return
  }
  func.func @transform_0(%arg0: i32) -> (i32, i32) {
    %c0_i32 = arith.constant 0 : i32
    %c0_i32_0 = arith.constant 0 : i32
    return %arg0, %c0_i32 : i32, i32
  }
  func.func @transform_1(%arg0: i32) -> (i32, i32) {
    %c0_i32 = arith.constant 0 : i32
    %c0_i32_0 = arith.constant 0 : i32
    %c0_i32_1 = arith.constant 0 : i32
    return %c0_i32, %c0_i32_0 : i32, i32
  }
  func.func @transform_2(%arg0: i32) -> (i32, i32) {
    %c0_i32 = arith.constant 0 : i32
    %c0_i32_0 = arith.constant 0 : i32
    %c0_i32_1 = arith.constant 0 : i32
    return %c0_i32, %c0_i32_0 : i32, i32
  }
  func.func @transform_3(%arg0: i32) -> (i32, i32) {
    %c0_i32 = arith.constant 0 : i32
    %c0_i32_0 = arith.constant 0 : i32
    %c0_i32_1 = arith.constant 0 : i32
    return %c0_i32, %c0_i32_0 : i32, i32
  }
  func.func @transform_4(%arg0: i32) -> (i32, i32) {
    %c0_i32 = arith.constant 0 : i32
    %c0_i32_0 = arith.constant 0 : i32
    %c0_i32_1 = arith.constant 0 : i32
    return %c0_i32, %c0_i32_0 : i32, i32
  }
  func.func @transform_5(%arg0: i32) -> (i32, i32) {
    %c0_i32 = arith.constant 0 : i32
    %c0_i32_0 = arith.constant 0 : i32
    %c0_i32_1 = arith.constant 0 : i32
    return %c0_i32, %c0_i32_0 : i32, i32
  }
  func.func @transform_6(%arg0: i32) -> (i32, i32) {
    %c0_i32 = arith.constant 0 : i32
    %c0_i32_0 = arith.constant 0 : i32
    %c0_i32_1 = arith.constant 0 : i32
    return %c0_i32, %c0_i32_0 : i32, i32
  }
  func.func @transform_7(%arg0: i32) -> (i32, i32) {
    %c0_i32 = arith.constant 0 : i32
    %c0_i32_0 = arith.constant 0 : i32
    return %arg0, %c0_i32 : i32, i32
  }
}

</mosaic_0001>

<llo_original>
// kernel: _lambda_.1
$region0: #{_lambda_.1}
  #allocation0 [shape = 'u32[]', space=smem, size = 0x4, offset = 0x4, fixed_abs, tag = 'smem constant byte address 0x4 - core index']
  #allocation1 [shape = 'u32[72,128]{1,0:T(1,128)}', space=vmem, size = 0x9000, scoped, tag = 'internal scratch']
  %s0 = inlined_call_operand.vmem [shape: bf16[16,896], index: 0, kind: input, shape index: {}]
  %s1 = inlined_call_operand.hbm [shape: bf16[896,1024], index: 1, kind: input, shape index: {}]
  %s2 = inlined_call_operand.hbm [shape: f32[1,1024], index: 2, kind: input, shape index: {}]
  %s3 = inlined_call_operand.hbm [shape: bf16[1024,512], index: 3, kind: input, shape index: {}]
  %s4 = inlined_call_operand.hbm [shape: f32[1,512], index: 4, kind: input, shape index: {}]
  %s5 = inlined_call_operand.hbm [shape: bf16[512,256], index: 5, kind: input, shape index: {}]
  %s6 = inlined_call_operand.hbm [shape: f32[1,256], index: 6, kind: input, shape index: {}]
  %s7 = inlined_call_operand.hbm [shape: f32[16,256], index: 7, kind: output, shape index: {}]
  %s8 = sld [smem:[#allocation0]]
  $region62: #{_lambda_.1} parent=0
    _
  %s10 = ssub.s32 1, %s8
  %s11 = scalar_select 0, %s10, %s8
  $region1: #{_lambda_.1} parent=0
    #allocation2 [shape = 'u8[1835008]{0}', space=vmem, size = 0x1c0000, scoped, tag = 'input window, operand 1, single buffered']
    #allocation3 [shape = 's32[1]{0}', space=sflag, size = 0x4, scoped, tag = 'scoped memory for _lambda_.1']
    #allocation4 [shape = 's32[1]{0}', space=sflag, size = 0x4, scoped, tag = 'scoped memory for _lambda_.1']
    #allocation5 [shape = 'u8[4096]{0}', space=vmem, size = 0x1000, scoped, tag = 'input window, operand 2, single buffered']
    #allocation6 [shape = 's32[1]{0}', space=sflag, size = 0x4, scoped, tag = 'scoped memory for _lambda_.1']
    #allocation7 [shape = 'u8[1048576]{0}', space=vmem, size = 0x100000, scoped, tag = 'input window, operand 3, single buffered']
    #allocation8 [shape = 'u8[2048]{0}', space=vmem, size = 0x800, scoped, tag = 'input window, operand 4, single buffered']
    #allocation9 [shape = 's32[1]{0}', space=sflag, size = 0x4, scoped, tag = 'scoped memory for _lambda_.1']
    #allocation10 [shape = 'u8[262144]{0}', space=vmem, size = 0x40000, scoped, tag = 'input window, operand 5, single buffered']
    #allocation11 [shape = 'u8[1024]{0}', space=vmem, size = 0x400, scoped, tag = 'input window, operand 6, single buffered']
    #allocation12 [shape = 's32[1]{0}', space=sflag, size = 0x4, scoped, tag = 'scoped memory for _lambda_.1']
    #allocation13 [shape = 'u8[16384]{0}', space=vmem, size = 0x4000, scoped, tag = 'output window, operand 0, single buffered']
    %12 = vsyncpa [#allocation3], 0
    %13 = vsyncpa [#allocation6], 0
    %14 = vsyncpa [#allocation9], 0
    %15 = vsyncpa [#allocation12], 0
    %16 = vsyncpa [#allocation4], 0
    // Predicated region
    $region2: #{_lambda_.1} parent=1 // pred_check
      _
    $region3: #{_lambda_.1} parent=1 // pred_check_branch
      %18 = sbr.rel (0) target = $region5
    $region4: #{_lambda_.1} parent=1 // pred_region
      _
    $region5: #{_lambda_.1} parent=1 // pred_fallthru
      _
    // Predicated region
    $region6: #{_lambda_.1} parent=1 // pred_check
      _
    $region7: #{_lambda_.1} parent=1 // pred_check_branch
      %20 = sbr.rel (0) target = $region9
    $region8: #{_lambda_.1} parent=1 // pred_region
      %22 = vsyncadd [#allocation3], 0
      %s23 = sshll.u32 %s1, 4
      %s24 = int_to_ptr.hbm [resolvable:$true] %s23
      %s25 = sshll.u32 [#allocation2], 4
      %s26 = int_to_ptr.vmem [resolvable:$true] %s25
      %31 = dma.hbm_to_vmem [thread:$0]  %s24, 57344, %s26, [#allocation3], 512, 512, 32
    $region9: #{_lambda_.1} parent=1 // pred_fallthru
      _
    // Predicated region
    $region10: #{_lambda_.1} parent=1 // pred_check
      _
    $region11: #{_lambda_.1} parent=1 // pred_check_branch
      %33 = sbr.rel (0) target = $region13
    $region12: #{_lambda_.1} parent=1 // pred_region
      %35 = vsyncadd [#allocation6], 0
      %s37 = sshll.u32 %s2, 4
      %s38 = int_to_ptr.hbm [resolvable:$true] %s37
      %s39 = sshll.u32 [#allocation5], 4
      %s40 = int_to_ptr.vmem [resolvable:$true] %s39
      %42 = dma.hbm_to_vmem [thread:$0]  %s38, 128, %s40, [#allocation6]
    $region13: #{_lambda_.1} parent=1 // pred_fallthru
      _
    // Predicated region
    $region14: #{_lambda_.1} parent=1 // pred_check
      _
    $region15: #{_lambda_.1} parent=1 // pred_check_branch
      %44 = sbr.rel (0) target = $region17
    $region16: #{_lambda_.1} parent=1 // pred_region
      %46 = vsyncadd [#allocation6], 0
      %s47 = sshll.u32 %s3, 4
      %s48 = int_to_ptr.hbm [resolvable:$true] %s47
      %s49 = sshll.u32 [#allocation7], 4
      %s50 = int_to_ptr.vmem [resolvable:$true] %s49
      %55 = dma.hbm_to_vmem [thread:$0]  %s48, 32768, %s50, [#allocation6], 256, 256, 16
    $region17: #{_lambda_.1} parent=1 // pred_fallthru
      _
    // Predicated region
    $region18: #{_lambda_.1} parent=1 // pred_check
      _
    $region19: #{_lambda_.1} parent=1 // pred_check_branch
      %57 = sbr.rel (0) target = $region21
    $region20: #{_lambda_.1} parent=1 // pred_region
      %59 = vsyncadd [#allocation9], 0
      %s61 = sshll.u32 %s4, 4
      %s62 = int_to_ptr.hbm [resolvable:$true] %s61
      %s63 = sshll.u32 [#allocation8], 4
      %s64 = int_to_ptr.vmem [resolvable:$true] %s63
      %66 = dma.hbm_to_vmem [thread:$0]  %s62, 64, %s64, [#allocation9]
    $region21: #{_lambda_.1} parent=1 // pred_fallthru
      _
    // Predicated region
    $region22: #{_lambda_.1} parent=1 // pred_check
      _
    $region23: #{_lambda_.1} parent=1 // pred_check_branch
      %68 = sbr.rel (0) target = $region25
    $region24: #{_lambda_.1} parent=1 // pred_region
      %70 = vsyncadd [#allocation9], 0
      %s71 = sshll.u32 %s5, 4
      %s72 = int_to_ptr.hbm [resolvable:$true] %s71
      %s73 = sshll.u32 [#allocation10], 4
      %s74 = int_to_ptr.vmem [resolvable:$true] %s73
      %79 = dma.hbm_to_vmem [thread:$0]  %s72, 8192, %s74, [#allocation9], 128, 128, 8
    $region25: #{_lambda_.1} parent=1 // pred_fallthru
      _
    // Predicated region
    $region26: #{_lambda_.1} parent=1 // pred_check
      _
    $region27: #{_lambda_.1} parent=1 // pred_check_branch
      %81 = sbr.rel (0) target = $region29
    $region28: #{_lambda_.1} parent=1 // pred_region
      %83 = vsyncadd [#allocation12], 0
      %s85 = sshll.u32 %s6, 4
      %s86 = int_to_ptr.hbm [resolvable:$true] %s85
      %s87 = sshll.u32 [#allocation11], 4
      %s88 = int_to_ptr.vmem [resolvable:$true] %s87
      %90 = dma.hbm_to_vmem [thread:$0]  %s86, 32, %s88, [#allocation12]
    $region29: #{_lambda_.1} parent=1 // pred_fallthru
      _
    // Predicated region
    $region30: #{_lambda_.1} parent=1 // pred_check
      _
    $region31: #{_lambda_.1} parent=1 // pred_check_branch
      %92 = sbr.rel (0) target = $region33
    $region32: #{_lambda_.1} parent=1 // pred_region
      %94 = dma.done [#allocation3], 57344
    $region33: #{_lambda_.1} parent=1 // pred_fallthru
      _
    // Predicated region
    $region34: #{_lambda_.1} parent=1 // pred_check
      _
    $region35: #{_lambda_.1} parent=1 // pred_check_branch
      %96 = sbr.rel (0) target = $region37
    $region36: #{_lambda_.1} parent=1 // pred_region
      %98 = dma.done [#allocation6], 128
    $region37: #{_lambda_.1} parent=1 // pred_fallthru
      _
    // Predicated region
    $region38: #{_lambda_.1} parent=1 // pred_check
      _
    $region39: #{_lambda_.1} parent=1 // pred_check_branch
      %100 = sbr.rel (0) target = $region41
    $region40: #{_lambda_.1} parent=1 // pred_region
      %102 = dma.done [#allocation6], 32768
    $region41: #{_lambda_.1} parent=1 // pred_fallthru
      _
    // Predicated region
    $region42: #{_lambda_.1} parent=1 // pred_check
      _
    $region43: #{_lambda_.1} parent=1 // pred_check_branch
      %104 = sbr.rel (0) target = $region45
    $region44: #{_lambda_.1} parent=1 // pred_region
      %106 = dma.done [#allocation9], 64
    $region45: #{_lambda_.1} parent=1 // pred_fallthru
      _
    // Predicated region
    $region46: #{_lambda_.1} parent=1 // pred_check
      _
    $region47: #{_lambda_.1} parent=1 // pred_check_branch
      %108 = sbr.rel (0) target = $region49
    $region48: #{_lambda_.1} parent=1 // pred_region
      %110 = dma.done [#allocation9], 8192
    $region49: #{_lambda_.1} parent=1 // pred_fallthru
      _
    // Predicated region
    $region50: #{_lambda_.1} parent=1 // pred_check
      _
    $region51: #{_lambda_.1} parent=1 // pred_check_branch
      %112 = sbr.rel (0) target = $region53
    $region52: #{_lambda_.1} parent=1 // pred_region
      %114 = dma.done [#allocation12], 32
    $region53: #{_lambda_.1} parent=1 // pred_fallthru
      _
    %v115 = vld [vmem:[%s0] sm:$0xff]
    %v116 = vld [vmem:[%s0 + $0x8] sm:$0xff]
    %v117 = vld [vmem:[%s0 + $0x10] sm:$0xff]
    %v118 = vld [vmem:[%s0 + $0x18] sm:$0xf]
    %v119 = vld [vmem:[%s0 + $0x1c] sm:$0xff]
    %v120 = vld [vmem:[%s0 + $0x24] sm:$0xff]
    %v121 = vld [vmem:[%s0 + $0x2c] sm:$0xff]
    %v122 = vld [vmem:[%s0 + $0x34] sm:$0xf]
    %v123 = vld [vmem:[#allocation2] sm:$0xff]
    %v124 = vld [vmem:[#allocation2 + $0x8] sm:$0xff]
    %v125 = vld [vmem:[#allocation2 + $0x10] sm:$0xff]
    %v126 = vld [vmem:[#allocation2 + $0x18] sm:$0xff]
    %v127 = vld [vmem:[#allocation2 + $0x20] sm:$0xff]
    %v128 = vld [vmem:[#allocation2 + $0x28] sm:$0xff]
    %v129 = vld [vmem:[#allocation2 + $0x30] sm:$0xff]
    %v130 = vld [vmem:[#allocation2 + $0x38] sm:$0xff]
    %v131 = vld [vmem:[#allocation2 + $0x40] sm:$0xff]
    %v132 = vld [vmem:[#allocation2 + $0x48] sm:$0xff]
    %v133 = vld [vmem:[#allocation2 + $0x50] sm:$0xff]
    %v134 = vld [vmem:[#allocation2 + $0x58] sm:$0xff]
    %v135 = vld [vmem:[#allocation2 + $0x60] sm:$0xff]
    %v136 = vld [vmem:[#allocation2 + $0x68] sm:$0xff]
    %v137 = vld [vmem:[#allocation2 + $0x70] sm:$0xff]
    %v138 = vld [vmem:[#allocation2 + $0x78] sm:$0xff]
    %v139 = vld [vmem:[#allocation2 + $0x80] sm:$0xff]
    %v140 = vld [vmem:[#allocation2 + $0x88] sm:$0xff]
    %v141 = vld [vmem:[#allocation2 + $0x90] sm:$0xff]
    %v142 = vld [vmem:[#allocation2 + $0x98] sm:$0xff]
    %v143 = vld [vmem:[#allocation2 + $0xa0] sm:$0xff]
    %v144 = vld [vmem:[#allocation2 + $0xa8] sm:$0xff]
    %v145 = vld [vmem:[#allocation2 + $0xb0] sm:$0xff]
    %v146 = vld [vmem:[#allocation2 + $0xb8] sm:$0xff]
    %v147 = vld [vmem:[#allocation2 + $0xc0] sm:$0xff]
    %v148 = vld [vmem:[#allocation2 + $0xc8] sm:$0xff]
    %v149 = vld [vmem:[#allocation2 + $0xd0] sm:$0xff]
    %v150 = vld [vmem:[#allocation2 + $0xd8] sm:$0xff]
    %v151 = vld [vmem:[#allocation2 + $0xe0] sm:$0xff]
    %v152 = vld [vmem:[#allocation2 + $0xe8] sm:$0xff]
    %v153 = vld [vmem:[#allocation2 + $0xf0] sm:$0xff]
    %v154 = vld [vmem:[#allocation2 + $0xf8] sm:$0xff]
    %v155 = vld [vmem:[#allocation2 + $0x100] sm:$0xff]
    %v156 = vld [vmem:[#allocation2 + $0x108] sm:$0xff]
    %v157 = vld [vmem:[#allocation2 + $0x110] sm:$0xff]
    %v158 = vld [vmem:[#allocation2 + $0x118] sm:$0xff]
    %v159 = vld [vmem:[#allocation2 + $0x120] sm:$0xff]
    %v160 = vld [vmem:[#allocation2 + $0x128] sm:$0xff]
    %v161 = vld [vmem:[#allocation2 + $0x130] sm:$0xff]
    %v162 = vld [vmem:[#allocation2 + $0x138] sm:$0xff]
    %v163 = vld [vmem:[#allocation2 + $0x140] sm:$0xff]
    %v164 = vld [vmem:[#allocation2 + $0x148] sm:$0xff]
    %v165 = vld [vmem:[#allocation2 + $0x150] sm:$0xff]
    %v166 = vld [vmem:[#allocation2 + $0x158] sm:$0xff]
    %v167 = vld [vmem:[#allocation2 + $0x160] sm:$0xff]
    %v168 = vld [vmem:[#allocation2 + $0x168] sm:$0xff]
    %v169 = vld [vmem:[#allocation2 + $0x170] sm:$0xff]
    %v170 = vld [vmem:[#allocation2 + $0x178] sm:$0xff]
    %v171 = vld [vmem:[#allocation2 + $0x180] sm:$0xff]
    %v172 = vld [vmem:[#allocation2 + $0x188] sm:$0xff]
    %v173 = vld [vmem:[#allocation2 + $0x190] sm:$0xff]
    %v174 = vld [vmem:[#allocation2 + $0x198] sm:$0xff]
    %v175 = vld [vmem:[#allocation2 + $0x1a0] sm:$0xff]
    %v176 = vld [vmem:[#allocation2 + $0x1a8] sm:$0xff]
    %v177 = vld [vmem:[#allocation2 + $0x1b0] sm:$0xff]
    %v178 = vld [vmem:[#allocation2 + $0x1b8] sm:$0xff]
    %v179 = vld [vmem:[#allocation2 + $0x1c0] sm:$0xff]
    %v180 = vld [vmem:[#allocation2 + $0x1c8] sm:$0xff]
    %v181 = vld [vmem:[#allocation2 + $0x1d0] sm:$0xff]
    %v182 = vld [vmem:[#allocation2 + $0x1d8] sm:$0xff]
    %v183 = vld [vmem:[#allocation2 + $0x1e0] sm:$0xff]
    %v184 = vld [vmem:[#allocation2 + $0x1e8] sm:$0xff]
    %v185 = vld [vmem:[#allocation2 + $0x1f0] sm:$0xff]
    %v186 = vld [vmem:[#allocation2 + $0x1f8] sm:$0xff]
    %v187 = vld [vmem:[#allocation2 + $0x200] sm:$0xff]
    %v188 = vld [vmem:[#allocation2 + $0x208] sm:$0xff]
    %v189 = vld [vmem:[#allocation2 + $0x210] sm:$0xff]
    %v190 = vld [vmem:[#allocation2 + $0x218] sm:$0xff]
    %v191 = vld [vmem:[#allocation2 + $0x220] sm:$0xff]
    %v192 = vld [vmem:[#allocation2 + $0x228] sm:$0xff]
    %v193 = vld [vmem:[#allocation2 + $0x230] sm:$0xff]
    %v194 = vld [vmem:[#allocation2 + $0x238] sm:$0xff]
    %v195 = vld [vmem:[#allocation2 + $0x240] sm:$0xff]
    %v196 = vld [vmem:[#allocation2 + $0x248] sm:$0xff]
    %v197 = vld [vmem:[#allocation2 + $0x250] sm:$0xff]
    %v198 = vld [vmem:[#allocation2 + $0x258] sm:$0xff]
    %v199 = vld [vmem:[#allocation2 + $0x260] sm:$0xff]
    %v200 = vld [vmem:[#allocation2 + $0x268] sm:$0xff]
    %v201 = vld [vmem:[#allocation2 + $0x270] sm:$0xff]
    %v202 = vld [vmem:[#allocation2 + $0x278] sm:$0xff]
    %v203 = vld [vmem:[#allocation2 + $0x280] sm:$0xff]
    %v204 = vld [vmem:[#allocation2 + $0x288] sm:$0xff]
    %v205 = vld [vmem:[#allocation2 + $0x290] sm:$0xff]
    %v206 = vld [vmem:[#allocation2 + $0x298] sm:$0xff]
    %v207 = vld [vmem:[#allocation2 + $0x2a0] sm:$0xff]
    %v208 = vld [vmem:[#allocation2 + $0x2a8] sm:$0xff]
    %v209 = vld [vmem:[#allocation2 + $0x2b0] sm:$0xff]
    %v210 = vld [vmem:[#allocation2 + $0x2b8] sm:$0xff]
    %v211 = vld [vmem:[#allocation2 + $0x2c0] sm:$0xff]
    %v212 = vld [vmem:[#allocation2 + $0x2c8] sm:$0xff]
    %v213 = vld [vmem:[#allocation2 + $0x2d0] sm:$0xff]
    %v214 = vld [vmem:[#allocation2 + $0x2d8] sm:$0xff]
    %v215 = vld [vmem:[#allocation2 + $0x2e0] sm:$0xff]
    %v216 = vld [vmem:[#allocation2 + $0x2e8] sm:$0xff]
    %v217 = vld [vmem:[#allocation2 + $0x2f0] sm:$0xff]
    %v218 = vld [vmem:[#allocation2 + $0x2f8] sm:$0xff]
    %v219 = vld [vmem:[#allocation2 + $0x300] sm:$0xff]
    %v220 = vld [vmem:[#allocation2 + $0x308] sm:$0xff]
    %v221 = vld [vmem:[#allocation2 + $0x310] sm:$0xff]
    %v222 = vld [vmem:[#allocation2 + $0x318] sm:$0xff]
    %v223 = vld [vmem:[#allocation2 + $0x320] sm:$0xff]
    %v224 = vld [vmem:[#allocation2 + $0x328] sm:$0xff]
    %v225 = vld [vmem:[#allocation2 + $0x330] sm:$0xff]
    %v226 = vld [vmem:[#allocation2 + $0x338] sm:$0xff]
    %v227 = vld [vmem:[#allocation2 + $0x340] sm:$0xff]
    %v228 = vld [vmem:[#allocation2 + $0x348] sm:$0xff]
    %v229 = vld [vmem:[#allocation2 + $0x350] sm:$0xff]
    %v230 = vld [vmem:[#allocation2 + $0x358] sm:$0xff]
    %v231 = vld [vmem:[#allocation2 + $0x360] sm:$0xff]
    %v232 = vld [vmem:[#allocation2 + $0x368] sm:$0xff]
    %v233 = vld [vmem:[#allocation2 + $0x370] sm:$0xff]
    %v234 = vld [vmem:[#allocation2 + $0x378] sm:$0xff]
    %v235 = vld [vmem:[#allocation2 + $0x380] sm:$0xff]
    %v236 = vld [vmem:[#allocation2 + $0x388] sm:$0xff]
    %v237 = vld [vmem:[#allocation2 + $0x390] sm:$0xff]
    %v238 = vld [vmem:[#allocation2 + $0x398] sm:$0xff]
    %v239 = vld [vmem:[#allocation2 + $0x3a0] sm:$0xff]
    %v240 = vld [vmem:[#allocation2 + $0x3a8] sm:$0xff]
    %v241 = vld [vmem:[#allocation2 + $0x3b0] sm:$0xff]
    %v242 = vld [vmem:[#allocation2 + $0x3b8] sm:$0xff]
    %v243 = vld [vmem:[#allocation2 + $0x3c0] sm:$0xff]
    %v244 = vld [vmem:[#allocation2 + $0x3c8] sm:$0xff]
    %v245 = vld [vmem:[#allocation2 + $0x3d0] sm:$0xff]
    %v246 = vld [vmem:[#allocation2 + $0x3d8] sm:$0xff]
    %v247 = vld [vmem:[#allocation2 + $0x3e0] sm:$0xff]
    %v248 = vld [vmem:[#allocation2 + $0x3e8] sm:$0xff]
    %v249 = vld [vmem:[#allocation2 + $0x3f0] sm:$0xff]
    %v250 = vld [vmem:[#allocation2 + $0x3f8] sm:$0xff]
    %v251 = vld [vmem:[#allocation2 + $0x400] sm:$0xff]
    %v252 = vld [vmem:[#allocation2 + $0x408] sm:$0xff]
    %v253 = vld [vmem:[#allocation2 + $0x410] sm:$0xff]
    %v254 = vld [vmem:[#allocation2 + $0x418] sm:$0xff]
    %v255 = vld [vmem:[#allocation2 + $0x420] sm:$0xff]
    %v256 = vld [vmem:[#allocation2 + $0x428] sm:$0xff]
    %v257 = vld [vmem:[#allocation2 + $0x430] sm:$0xff]
    %v258 = vld [vmem:[#allocation2 + $0x438] sm:$0xff]
    %v259 = vld [vmem:[#allocation2 + $0x440] sm:$0xff]
    %v260 = vld [vmem:[#allocation2 + $0x448] sm:$0xff]
    %v261 = vld [vmem:[#allocation2 + $0x450] sm:$0xff]
    %v262 = vld [vmem:[#allocation2 + $0x458] sm:$0xff]
    %v263 = vld [vmem:[#allocation2 + $0x460] sm:$0xff]
    %v264 = vld [vmem:[#allocation2 + $0x468] sm:$0xff]
    %v265 = vld [vmem:[#allocation2 + $0x470] sm:$0xff]
    %v266 = vld [vmem:[#allocation2 + $0x478] sm:$0xff]
    %v267 = vld [vmem:[#allocation2 + $0x480] sm:$0xff]
    %v268 = vld [vmem:[#allocation2 + $0x488] sm:$0xff]
    %v269 = vld [vmem:[#allocation2 + $0x490] sm:$0xff]
    %v270 = vld [vmem:[#allocation2 + $0x498] sm:$0xff]
    %v271 = vld [vmem:[#allocation2 + $0x4a0] sm:$0xff]
    %v272 = vld [vmem:[#allocation2 + $0x4a8] sm:$0xff]
    %v273 = vld [vmem:[#allocation2 + $0x4b0] sm:$0xff]
    %v274 = vld [vmem:[#allocation2 + $0x4b8] sm:$0xff]
    %v275 = vld [vmem:[#allocation2 + $0x4c0] sm:$0xff]
    %v276 = vld [vmem:[#allocation2 + $0x4c8] sm:$0xff]
    %v277 = vld [vmem:[#allocation2 + $0x4d0] sm:$0xff]
    %v278 = vld [vmem:[#allocation2 + $0x4d8] sm:$0xff]
    %v279 = vld [vmem:[#allocation2 + $0x4e0] sm:$0xff]
    %v280 = vld [vmem:[#allocation2 + $0x4e8] sm:$0xff]
    %v281 = vld [vmem:[#allocation2 + $0x4f0] sm:$0xff]
    %v282 = vld [vmem:[#allocation2 + $0x4f8] sm:$0xff]
    %v283 = vld [vmem:[#allocation2 + $0x500] sm:$0xff]
    %v284 = vld [vmem:[#allocation2 + $0x508] sm:$0xff]
    %v285 = vld [vmem:[#allocation2 + $0x510] sm:$0xff]
    %v286 = vld [vmem:[#allocation2 + $0x518] sm:$0xff]
    %v287 = vld [vmem:[#allocation2 + $0x520] sm:$0xff]
    %v288 = vld [vmem:[#allocation2 + $0x528] sm:$0xff]
    %v289 = vld [vmem:[#allocation2 + $0x530] sm:$0xff]
    %v290 = vld [vmem:[#allocation2 + $0x538] sm:$0xff]
    %v291 = vld [vmem:[#allocation2 + $0x540] sm:$0xff]
    %v292 = vld [vmem:[#allocation2 + $0x548] sm:$0xff]
    %v293 = vld [vmem:[#allocation2 + $0x550] sm:$0xff]
    %v294 = vld [vmem:[#allocation2 + $0x558] sm:$0xff]
    %v295 = vld [vmem:[#allocation2 + $0x560] sm:$0xff]
    %v296 = vld [vmem:[#allocation2 + $0x568] sm:$0xff]
    %v297 = vld [vmem:[#allocation2 + $0x570] sm:$0xff]
    %v298 = vld [vmem:[#allocation2 + $0x578] sm:$0xff]
    %v299 = vld [vmem:[#allocation2 + $0x580] sm:$0xff]
    %v300 = vld [vmem:[#allocation2 + $0x588] sm:$0xff]
    %v301 = vld [vmem:[#allocation2 + $0x590] sm:$0xff]
    %v302 = vld [vmem:[#allocation2 + $0x598] sm:$0xff]
    %v303 = vld [vmem:[#allocation2 + $0x5a0] sm:$0xff]
    %v304 = vld [vmem:[#allocation2 + $0x5a8] sm:$0xff]
    %v305 = vld [vmem:[#allocation2 + $0x5b0] sm:$0xff]
    %v306 = vld [vmem:[#allocation2 + $0x5b8] sm:$0xff]
    %v307 = vld [vmem:[#allocation2 + $0x5c0] sm:$0xff]
    %v308 = vld [vmem:[#allocation2 + $0x5c8] sm:$0xff]
    %v309 = vld [vmem:[#allocation2 + $0x5d0] sm:$0xff]
    %v310 = vld [vmem:[#allocation2 + $0x5d8] sm:$0xff]
    %v311 = vld [vmem:[#allocation2 + $0x5e0] sm:$0xff]
    %v312 = vld [vmem:[#allocation2 + $0x5e8] sm:$0xff]
    %v313 = vld [vmem:[#allocation2 + $0x5f0] sm:$0xff]
    %v314 = vld [vmem:[#allocation2 + $0x5f8] sm:$0xff]
    %v315 = vld [vmem:[#allocation2 + $0x600] sm:$0xff]
    %v316 = vld [vmem:[#allocation2 + $0x608] sm:$0xff]
    %v317 = vld [vmem:[#allocation2 + $0x610] sm:$0xff]
    %v318 = vld [vmem:[#allocation2 + $0x618] sm:$0xff]
    %v319 = vld [vmem:[#allocation2 + $0x620] sm:$0xff]
    %v320 = vld [vmem:[#allocation2 + $0x628] sm:$0xff]
    %v321 = vld [vmem:[#allocation2 + $0x630] sm:$0xff]
    %v322 = vld [vmem:[#allocation2 + $0x638] sm:$0xff]
    %v323 = vld [vmem:[#allocation2 + $0x640] sm:$0xff]
    %v324 = vld [vmem:[#allocation2 + $0x648] sm:$0xff]
    %v325 = vld [vmem:[#allocation2 + $0x650] sm:$0xff]
    %v326 = vld [vmem:[#allocation2 + $0x658] sm:$0xff]
    %v327 = vld [vmem:[#allocation2 + $0x660] sm:$0xff]
    %v328 = vld [vmem:[#allocation2 + $0x668] sm:$0xff]
    %v329 = vld [vmem:[#allocation2 + $0x670] sm:$0xff]
    %v330 = vld [vmem:[#allocation2 + $0x678] sm:$0xff]
    %v331 = vld [vmem:[#allocation2 + $0x680] sm:$0xff]
    %v332 = vld [vmem:[#allocation2 + $0x688] sm:$0xff]
    %v333 = vld [vmem:[#allocation2 + $0x690] sm:$0xff]
    %v334 = vld [vmem:[#allocation2 + $0x698] sm:$0xff]
    %v335 = vld [vmem:[#allocation2 + $0x6a0] sm:$0xff]
    %v336 = vld [vmem:[#allocation2 + $0x6a8] sm:$0xff]
    %v337 = vld [vmem:[#allocation2 + $0x6b0] sm:$0xff]
    %v338 = vld [vmem:[#allocation2 + $0x6b8] sm:$0xff]
    %v339 = vld [vmem:[#allocation2 + $0x6c0] sm:$0xff]
    %v340 = vld [vmem:[#allocation2 + $0x6c8] sm:$0xff]
    %v341 = vld [vmem:[#allocation2 + $0x6d0] sm:$0xff]
    %v342 = vld [vmem:[#allocation2 + $0x6d8] sm:$0xff]
    %v343 = vld [vmem:[#allocation2 + $0x6e0] sm:$0xff]
    %v344 = vld [vmem:[#allocation2 + $0x6e8] sm:$0xff]
    %v345 = vld [vmem:[#allocation2 + $0x6f0] sm:$0xff]
    %v346 = vld [vmem:[#allocation2 + $0x6f8] sm:$0xff]
    %v347 = vld [vmem:[#allocation2 + $0x700] sm:$0xff]
    %v348 = vld [vmem:[#allocation2 + $0x708] sm:$0xff]
    %v349 = vld [vmem:[#allocation2 + $0x710] sm:$0xff]
    %v350 = vld [vmem:[#allocation2 + $0x718] sm:$0xff]
    %v351 = vld [vmem:[#allocation2 + $0x720] sm:$0xff]
    %v352 = vld [vmem:[#allocation2 + $0x728] sm:$0xff]
    %v353 = vld [vmem:[#allocation2 + $0x730] sm:$0xff]
    %v354 = vld [vmem:[#allocation2 + $0x738] sm:$0xff]
    %v355 = vld [vmem:[#allocation2 + $0x740] sm:$0xff]
    %v356 = vld [vmem:[#allocation2 + $0x748] sm:$0xff]
    %v357 = vld [vmem:[#allocation2 + $0x750] sm:$0xff]
    %v358 = vld [vmem:[#allocation2 + $0x758] sm:$0xff]
    %v359 = vld [vmem:[#allocation2 + $0x760] sm:$0xff]
    %v360 = vld [vmem:[#allocation2 + $0x768] sm:$0xff]
    %v361 = vld [vmem:[#allocation2 + $0x770] sm:$0xff]
    %v362 = vld [vmem:[#allocation2 + $0x778] sm:$0xff]
    %v363 = vld [vmem:[#allocation2 + $0x780] sm:$0xff]
    %v364 = vld [vmem:[#allocation2 + $0x788] sm:$0xff]
    %v365 = vld [vmem:[#allocation2 + $0x790] sm:$0xff]
    %v366 = vld [vmem:[#allocation2 + $0x798] sm:$0xff]
    %v367 = vld [vmem:[#allocation2 + $0x7a0] sm:$0xff]
    %v368 = vld [vmem:[#allocation2 + $0x7a8] sm:$0xff]
    %v369 = vld [vmem:[#allocation2 + $0x7b0] sm:$0xff]
    %v370 = vld [vmem:[#allocation2 + $0x7b8] sm:$0xff]
    %v371 = vld [vmem:[#allocation2 + $0x7c0] sm:$0xff]
    %v372 = vld [vmem:[#allocation2 + $0x7c8] sm:$0xff]
    %v373 = vld [vmem:[#allocation2 + $0x7d0] sm:$0xff]
    %v374 = vld [vmem:[#allocation2 + $0x7d8] sm:$0xff]
    %v375 = vld [vmem:[#allocation2 + $0x7e0] sm:$0xff]
    %v376 = vld [vmem:[#allocation2 + $0x7e8] sm:$0xff]
    %v377 = vld [vmem:[#allocation2 + $0x7f0] sm:$0xff]
    %v378 = vld [vmem:[#allocation2 + $0x7f8] sm:$0xff]
    %v379 = vld [vmem:[#allocation2 + $0x800] sm:$0xff]
    %v380 = vld [vmem:[#allocation2 + $0x808] sm:$0xff]
    %v381 = vld [vmem:[#allocation2 + $0x810] sm:$0xff]
    %v382 = vld [vmem:[#allocation2 + $0x818] sm:$0xff]
    %v383 = vld [vmem:[#allocation2 + $0x820] sm:$0xff]
    %v384 = vld [vmem:[#allocation2 + $0x828] sm:$0xff]
    %v385 = vld [vmem:[#allocation2 + $0x830] sm:$0xff]
    %v386 = vld [vmem:[#allocation2 + $0x838] sm:$0xff]
    %v387 = vld [vmem:[#allocation2 + $0x840] sm:$0xff]
    %v388 = vld [vmem:[#allocation2 + $0x848] sm:$0xff]
    %v389 = vld [vmem:[#allocation2 + $0x850] sm:$0xff]
    %v390 = vld [vmem:[#allocation2 + $0x858] sm:$0xff]
    %v391 = vld [vmem:[#allocation2 + $0x860] sm:$0xff]
    %v392 = vld [vmem:[#allocation2 + $0x868] sm:$0xff]
    %v393 = vld [vmem:[#allocation2 + $0x870] sm:$0xff]
    %v394 = vld [vmem:[#allocation2 + $0x878] sm:$0xff]
    %v395 = vld [vmem:[#allocation2 + $0x880] sm:$0xff]
    %v396 = vld [vmem:[#allocation2 + $0x888] sm:$0xff]
    %v397 = vld [vmem:[#allocation2 + $0x890] sm:$0xff]
    %v398 = vld [vmem:[#allocation2 + $0x898] sm:$0xff]
    %v399 = vld [vmem:[#allocation2 + $0x8a0] sm:$0xff]
    %v400 = vld [vmem:[#allocation2 + $0x8a8] sm:$0xff]
    %v401 = vld [vmem:[#allocation2 + $0x8b0] sm:$0xff]
    %v402 = vld [vmem:[#allocation2 + $0x8b8] sm:$0xff]
    %v403 = vld [vmem:[#allocation2 + $0x8c0] sm:$0xff]
    %v404 = vld [vmem:[#allocation2 + $0x8c8] sm:$0xff]
    %v405 = vld [vmem:[#allocation2 + $0x8d0] sm:$0xff]
    %v406 = vld [vmem:[#allocation2 + $0x8d8] sm:$0xff]
    %v407 = vld [vmem:[#allocation2 + $0x8e0] sm:$0xff]
    %v408 = vld [vmem:[#allocation2 + $0x8e8] sm:$0xff]
    %v409 = vld [vmem:[#allocation2 + $0x8f0] sm:$0xff]
    %v410 = vld [vmem:[#allocation2 + $0x8f8] sm:$0xff]
    %v411 = vld [vmem:[#allocation2 + $0x900] sm:$0xff]
    %v412 = vld [vmem:[#allocation2 + $0x908] sm:$0xff]
    %v413 = vld [vmem:[#allocation2 + $0x910] sm:$0xff]
    %v414 = vld [vmem:[#allocation2 + $0x918] sm:$0xff]
    %v415 = vld [vmem:[#allocation2 + $0x920] sm:$0xff]
    %v416 = vld [vmem:[#allocation2 + $0x928] sm:$0xff]
    %v417 = vld [vmem:[#allocation2 + $0x930] sm:$0xff]
    %v418 = vld [vmem:[#allocation2 + $0x938] sm:$0xff]
    %v419 = vld [vmem:[#allocation2 + $0x940] sm:$0xff]
    %v420 = vld [vmem:[#allocation2 + $0x948] sm:$0xff]
    %v421 = vld [vmem:[#allocation2 + $0x950] sm:$0xff]
    %v422 = vld [vmem:[#allocation2 + $0x958] sm:$0xff]
    %v423 = vld [vmem:[#allocation2 + $0x960] sm:$0xff]
    %v424 = vld [vmem:[#allocation2 + $0x968] sm:$0xff]
    %v425 = vld [vmem:[#allocation2 + $0x970] sm:$0xff]
    %v426 = vld [vmem:[#allocation2 + $0x978] sm:$0xff]
    %v427 = vld [vmem:[#allocation2 + $0x980] sm:$0xff]
    %v428 = vld [vmem:[#allocation2 + $0x988] sm:$0xff]
    %v429 = vld [vmem:[#allocation2 + $0x990] sm:$0xff]
    %v430 = vld [vmem:[#allocation2 + $0x998] sm:$0xff]
    %v431 = vld [vmem:[#allocation2 + $0x9a0] sm:$0xff]
    %v432 = vld [vmem:[#allocation2 + $0x9a8] sm:$0xff]
    %v433 = vld [vmem:[#allocation2 + $0x9b0] sm:$0xff]
    %v434 = vld [vmem:[#allocation2 + $0x9b8] sm:$0xff]
    %v435 = vld [vmem:[#allocation2 + $0x9c0] sm:$0xff]
    %v436 = vld [vmem:[#allocation2 + $0x9c8] sm:$0xff]
    %v437 = vld [vmem:[#allocation2 + $0x9d0] sm:$0xff]
    %v438 = vld [vmem:[#allocation2 + $0x9d8] sm:$0xff]
    %v439 = vld [vmem:[#allocation2 + $0x9e0] sm:$0xff]
    %v440 = vld [vmem:[#allocation2 + $0x9e8] sm:$0xff]
    %v441 = vld [vmem:[#allocation2 + $0x9f0] sm:$0xff]
    %v442 = vld [vmem:[#allocation2 + $0x9f8] sm:$0xff]
    %v443 = vld [vmem:[#allocation2 + $0xa00] sm:$0xff]
    %v444 = vld [vmem:[#allocation2 + $0xa08] sm:$0xff]
    %v445 = vld [vmem:[#allocation2 + $0xa10] sm:$0xff]
    %v446 = vld [vmem:[#allocation2 + $0xa18] sm:$0xff]
    %v447 = vld [vmem:[#allocation2 + $0xa20] sm:$0xff]
    %v448 = vld [vmem:[#allocation2 + $0xa28] sm:$0xff]
    %v449 = vld [vmem:[#allocation2 + $0xa30] sm:$0xff]
    %v450 = vld [vmem:[#allocation2 + $0xa38] sm:$0xff]
    %v451 = vld [vmem:[#allocation2 + $0xa40] sm:$0xff]
    %v452 = vld [vmem:[#allocation2 + $0xa48] sm:$0xff]
    %v453 = vld [vmem:[#allocation2 + $0xa50] sm:$0xff]
    %v454 = vld [vmem:[#allocation2 + $0xa58] sm:$0xff]
    %v455 = vld [vmem:[#allocation2 + $0xa60] sm:$0xff]
    %v456 = vld [vmem:[#allocation2 + $0xa68] sm:$0xff]
    %v457 = vld [vmem:[#allocation2 + $0xa70] sm:$0xff]
    %v458 = vld [vmem:[#allocation2 + $0xa78] sm:$0xff]
    %v459 = vld [vmem:[#allocation2 + $0xa80] sm:$0xff]
    %v460 = vld [vmem:[#allocation2 + $0xa88] sm:$0xff]
    %v461 = vld [vmem:[#allocation2 + $0xa90] sm:$0xff]
    %v462 = vld [vmem:[#allocation2 + $0xa98] sm:$0xff]
    %v463 = vld [vmem:[#allocation2 + $0xaa0] sm:$0xff]
    %v464 = vld [vmem:[#allocation2 + $0xaa8] sm:$0xff]
    %v465 = vld [vmem:[#allocation2 + $0xab0] sm:$0xff]
    %v466 = vld [vmem:[#allocation2 + $0xab8] sm:$0xff]
    %v467 = vld [vmem:[#allocation2 + $0xac0] sm:$0xff]
    %v468 = vld [vmem:[#allocation2 + $0xac8] sm:$0xff]
    %v469 = vld [vmem:[#allocation2 + $0xad0] sm:$0xff]
    %v470 = vld [vmem:[#allocation2 + $0xad8] sm:$0xff]
    %v471 = vld [vmem:[#allocation2 + $0xae0] sm:$0xff]
    %v472 = vld [vmem:[#allocation2 + $0xae8] sm:$0xff]
    %v473 = vld [vmem:[#allocation2 + $0xaf0] sm:$0xff]
    %v474 = vld [vmem:[#allocation2 + $0xaf8] sm:$0xff]
    %v475 = vld [vmem:[#allocation2 + $0xb00] sm:$0xff]
    %v476 = vld [vmem:[#allocation2 + $0xb08] sm:$0xff]
    %v477 = vld [vmem:[#allocation2 + $0xb10] sm:$0xff]
    %v478 = vld [vmem:[#allocation2 + $0xb18] sm:$0xff]
    %v479 = vld [vmem:[#allocation2 + $0xb20] sm:$0xff]
    %v480 = vld [vmem:[#allocation2 + $0xb28] sm:$0xff]
    %v481 = vld [vmem:[#allocation2 + $0xb30] sm:$0xff]
    %v482 = vld [vmem:[#allocation2 + $0xb38] sm:$0xff]
    %v483 = vld [vmem:[#allocation2 + $0xb40] sm:$0xff]
    %v484 = vld [vmem:[#allocation2 + $0xb48] sm:$0xff]
    %v485 = vld [vmem:[#allocation2 + $0xb50] sm:$0xff]
    %v486 = vld [vmem:[#allocation2 + $0xb58] sm:$0xff]
    %v487 = vld [vmem:[#allocation2 + $0xb60] sm:$0xff]
    %v488 = vld [vmem:[#allocation2 + $0xb68] sm:$0xff]
    %v489 = vld [vmem:[#allocation2 + $0xb70] sm:$0xff]
    %v490 = vld [vmem:[#allocation2 + $0xb78] sm:$0xff]
    %v491 = vld [vmem:[#allocation2 + $0xb80] sm:$0xff]
    %v492 = vld [vmem:[#allocation2 + $0xb88] sm:$0xff]
    %v493 = vld [vmem:[#allocation2 + $0xb90] sm:$0xff]
    %v494 = vld [vmem:[#allocation2 + $0xb98] sm:$0xff]
    %v495 = vld [vmem:[#allocation2 + $0xba0] sm:$0xff]
    %v496 = vld [vmem:[#allocation2 + $0xba8] sm:$0xff]
    %v497 = vld [vmem:[#allocation2 + $0xbb0] sm:$0xff]
    %v498 = vld [vmem:[#allocation2 + $0xbb8] sm:$0xff]
    %v499 = vld [vmem:[#allocation2 + $0xbc0] sm:$0xff]
    %v500 = vld [vmem:[#allocation2 + $0xbc8] sm:$0xff]
    %v501 = vld [vmem:[#allocation2 + $0xbd0] sm:$0xff]
    %v502 = vld [vmem:[#allocation2 + $0xbd8] sm:$0xff]
    %v503 = vld [vmem:[#allocation2 + $0xbe0] sm:$0xff]
    %v504 = vld [vmem:[#allocation2 + $0xbe8] sm:$0xff]
    %v505 = vld [vmem:[#allocation2 + $0xbf0] sm:$0xff]
    %v506 = vld [vmem:[#allocation2 + $0xbf8] sm:$0xff]
    %v507 = vld [vmem:[#allocation2 + $0xc00] sm:$0xff]
    %v508 = vld [vmem:[#allocation2 + $0xc08] sm:$0xff]
    %v509 = vld [vmem:[#allocation2 + $0xc10] sm:$0xff]
    %v510 = vld [vmem:[#allocation2 + $0xc18] sm:$0xff]
    %v511 = vld [vmem:[#allocation2 + $0xc20] sm:$0xff]
    %v512 = vld [vmem:[#allocation2 + $0xc28] sm:$0xff]
    %v513 = vld [vmem:[#allocation2 + $0xc30] sm:$0xff]
    %v514 = vld [vmem:[#allocation2 + $0xc38] sm:$0xff]
    %v515 = vld [vmem:[#allocation2 + $0xc40] sm:$0xff]
    %v516 = vld [vmem:[#allocation2 + $0xc48] sm:$0xff]
    %v517 = vld [vmem:[#allocation2 + $0xc50] sm:$0xff]
    %v518 = vld [vmem:[#allocation2 + $0xc58] sm:$0xff]
    %v519 = vld [vmem:[#allocation2 + $0xc60] sm:$0xff]
    %v520 = vld [vmem:[#allocation2 + $0xc68] sm:$0xff]
    %v521 = vld [vmem:[#allocation2 + $0xc70] sm:$0xff]
    %v522 = vld [vmem:[#allocation2 + $0xc78] sm:$0xff]
    %v523 = vld [vmem:[#allocation2 + $0xc80] sm:$0xff]
    %v524 = vld [vmem:[#allocation2 + $0xc88] sm:$0xff]
    %v525 = vld [vmem:[#allocation2 + $0xc90] sm:$0xff]
    %v526 = vld [vmem:[#allocation2 + $0xc98] sm:$0xff]
    %v527 = vld [vmem:[#allocation2 + $0xca0] sm:$0xff]
    %v528 = vld [vmem:[#allocation2 + $0xca8] sm:$0xff]
    %v529 = vld [vmem:[#allocation2 + $0xcb0] sm:$0xff]
    %v530 = vld [vmem:[#allocation2 + $0xcb8] sm:$0xff]
    %v531 = vld [vmem:[#allocation2 + $0xcc0] sm:$0xff]
    %v532 = vld [vmem:[#allocation2 + $0xcc8] sm:$0xff]
    %v533 = vld [vmem:[#allocation2 + $0xcd0] sm:$0xff]
    %v534 = vld [vmem:[#allocation2 + $0xcd8] sm:$0xff]
    %v535 = vld [vmem:[#allocation2 + $0xce0] sm:$0xff]
    %v536 = vld [vmem:[#allocation2 + $0xce8] sm:$0xff]
    %v537 = vld [vmem:[#allocation2 + $0xcf0] sm:$0xff]
    %v538 = vld [vmem:[#allocation2 + $0xcf8] sm:$0xff]
    %v539 = vld [vmem:[#allocation2 + $0xd00] sm:$0xff]
    %v540 = vld [vmem:[#allocation2 + $0xd08] sm:$0xff]
    %v541 = vld [vmem:[#allocation2 + $0xd10] sm:$0xff]
    %v542 = vld [vmem:[#allocation2 + $0xd18] sm:$0xff]
    %v543 = vld [vmem:[#allocation2 + $0xd20] sm:$0xff]
    %v544 = vld [vmem:[#allocation2 + $0xd28] sm:$0xff]
    %v545 = vld [vmem:[#allocation2 + $0xd30] sm:$0xff]
    %v546 = vld [vmem:[#allocation2 + $0xd38] sm:$0xff]
    %v547 = vld [vmem:[#allocation2 + $0xd40] sm:$0xff]
    %v548 = vld [vmem:[#allocation2 + $0xd48] sm:$0xff]
    %v549 = vld [vmem:[#allocation2 + $0xd50] sm:$0xff]
    %v550 = vld [vmem:[#allocation2 + $0xd58] sm:$0xff]
    %v551 = vld [vmem:[#allocation2 + $0xd60] sm:$0xff]
    %v552 = vld [vmem:[#allocation2 + $0xd68] sm:$0xff]
    %v553 = vld [vmem:[#allocation2 + $0xd70] sm:$0xff]
    %v554 = vld [vmem:[#allocation2 + $0xd78] sm:$0xff]
    %v555 = vld [vmem:[#allocation2 + $0xd80] sm:$0xff]
    %v556 = vld [vmem:[#allocation2 + $0xd88] sm:$0xff]
    %v557 = vld [vmem:[#allocation2 + $0xd90] sm:$0xff]
    %v558 = vld [vmem:[#allocation2 + $0xd98] sm:$0xff]
    %v559 = vld [vmem:[#allocation2 + $0xda0] sm:$0xff]
    %v560 = vld [vmem:[#allocation2 + $0xda8] sm:$0xff]
    %v561 = vld [vmem:[#allocation2 + $0xdb0] sm:$0xff]
    %v562 = vld [vmem:[#allocation2 + $0xdb8] sm:$0xff]
    %v563 = vld [vmem:[#allocation2 + $0xdc0] sm:$0xff]
    %v564 = vld [vmem:[#allocation2 + $0xdc8] sm:$0xff]
    %v565 = vld [vmem:[#allocation2 + $0xdd0] sm:$0xff]
    %v566 = vld [vmem:[#allocation2 + $0xdd8] sm:$0xff]
    %v567 = vld [vmem:[#allocation2 + $0xde0] sm:$0xff]
    %v568 = vld [vmem:[#allocation2 + $0xde8] sm:$0xff]
    %v569 = vld [vmem:[#allocation2 + $0xdf0] sm:$0xff]
    %v570 = vld [vmem:[#allocation2 + $0xdf8] sm:$0xff]
    %v571 = vld [vmem:[#allocation5] sm:$0xff]
    %v573 = vperm.slane %v571, 0
    %v574 = vperm.slane %v571, 1
    %v575 = vperm.slane %v571, 2
    %v576 = vperm.slane %v571, 3
    %v577 = vperm.slane %v571, 4
    %v578 = vperm.slane %v571, 5
    %v579 = vperm.slane %v571, 6
    %v580 = vperm.slane %v571, 7
    %v597 = vunpack.c.l.b16 %v115
    %v598 = vunpack.c.h.b16 %v115
    %v599 = vunpack.c.l.b16 %v116
    %v600 = vunpack.c.h.b16 %v116
    %v601 = vunpack.c.l.b16 %v117
    %v602 = vunpack.c.h.b16 %v117
    %v603 = vunpack.c.l.b16 %v118
    %v604 = vunpack.c.l.b16 %v119
    %v605 = vunpack.c.h.b16 %v119
    %v606 = vunpack.c.l.b16 %v120
    %v607 = vunpack.c.h.b16 %v120
    %v608 = vunpack.c.l.b16 %v121
    %v609 = vunpack.c.h.b16 %v121
    %v610 = vunpack.c.l.b16 %v122
    %v611 = vpack.c.b16 %v604, %v597
    %v612 = vpack.c.b16 %v605, %v598
    %v613 = vpack.c.b16 %v606, %v599
    %v614 = vpack.c.b16 %v607, %v600
    %v615 = vpack.c.b16 %v608, %v601
    %v616 = vpack.c.b16 %v609, %v602
    %v617 = vpack.c.b16 %v610, %v603
    %v1073 = vunpack.c.l.b16 %v123
    %v1074 = vunpack.c.h.b16 %v123
    %v1075 = vunpack.c.l.b16 %v124
    %v1076 = vunpack.c.h.b16 %v124
    %v1077 = vunpack.c.l.b16 %v125
    %v1078 = vunpack.c.h.b16 %v125
    %v1079 = vunpack.c.l.b16 %v126
    %v1080 = vunpack.c.h.b16 %v126
    %v1081 = vunpack.c.l.b16 %v127
    %v1082 = vunpack.c.h.b16 %v127
    %v1083 = vunpack.c.l.b16 %v128
    %v1084 = vunpack.c.h.b16 %v128
    %v1085 = vunpack.c.l.b16 %v129
    %v1086 = vunpack.c.h.b16 %v129
    %v1087 = vunpack.c.l.b16 %v130
    %v1088 = vunpack.c.h.b16 %v130
    %v1089 = vunpack.c.l.b16 %v131
    %v1090 = vunpack.c.h.b16 %v131
    %v1091 = vunpack.c.l.b16 %v132
    %v1092 = vunpack.c.h.b16 %v132
    %v1093 = vunpack.c.l.b16 %v133
    %v1094 = vunpack.c.h.b16 %v133
    %v1095 = vunpack.c.l.b16 %v134
    %v1096 = vunpack.c.h.b16 %v134
    %v1097 = vunpack.c.l.b16 %v135
    %v1098 = vunpack.c.h.b16 %v135
    %v1099 = vunpack.c.l.b16 %v136
    %v1100 = vunpack.c.h.b16 %v136
    %v1101 = vunpack.c.l.b16 %v137
    %v1102 = vunpack.c.h.b16 %v137
    %v1103 = vunpack.c.l.b16 %v138
    %v1104 = vunpack.c.h.b16 %v138
    %v1105 = vunpack.c.l.b16 %v139
    %v1106 = vunpack.c.h.b16 %v139
    %v1107 = vunpack.c.l.b16 %v140
    %v1108 = vunpack.c.h.b16 %v140
    %v1109 = vunpack.c.l.b16 %v141
    %v1110 = vunpack.c.h.b16 %v141
    %v1111 = vunpack.c.l.b16 %v142
    %v1112 = vunpack.c.h.b16 %v142
    %v1113 = vunpack.c.l.b16 %v143
    %v1114 = vunpack.c.h.b16 %v143
    %v1115 = vunpack.c.l.b16 %v144
    %v1116 = vunpack.c.h.b16 %v144
    %v1117 = vunpack.c.l.b16 %v145
    %v1118 = vunpack.c.h.b16 %v145
    %v1119 = vunpack.c.l.b16 %v146
    %v1120 = vunpack.c.h.b16 %v146
    %v1121 = vunpack.c.l.b16 %v147
    %v1122 = vunpack.c.h.b16 %v147
    %v1123 = vunpack.c.l.b16 %v148
    %v1124 = vunpack.c.h.b16 %v148
    %v1125 = vunpack.c.l.b16 %v149
    %v1126 = vunpack.c.h.b16 %v149
    %v1127 = vunpack.c.l.b16 %v150
    %v1128 = vunpack.c.h.b16 %v150
    %v1129 = vunpack.c.l.b16 %v151
    %v1130 = vunpack.c.h.b16 %v151
    %v1131 = vunpack.c.l.b16 %v152
    %v1132 = vunpack.c.h.b16 %v152
    %v1133 = vunpack.c.l.b16 %v153
    %v1134 = vunpack.c.h.b16 %v153
    %v1135 = vunpack.c.l.b16 %v154
    %v1136 = vunpack.c.h.b16 %v154
    %v1137 = vunpack.c.l.b16 %v155
    %v1138 = vunpack.c.h.b16 %v155
    %v1139 = vunpack.c.l.b16 %v156
    %v1140 = vunpack.c.h.b16 %v156
    %v1141 = vunpack.c.l.b16 %v157
    %v1142 = vunpack.c.h.b16 %v157
    %v1143 = vunpack.c.l.b16 %v158
    %v1144 = vunpack.c.h.b16 %v158
    %v1145 = vunpack.c.l.b16 %v159
    %v1146 = vunpack.c.h.b16 %v159
    %v1147 = vunpack.c.l.b16 %v160
    %v1148 = vunpack.c.h.b16 %v160
    %v1149 = vunpack.c.l.b16 %v161
    %v1150 = vunpack.c.h.b16 %v161
    %v1151 = vunpack.c.l.b16 %v162
    %v1152 = vunpack.c.h.b16 %v162
    %v1153 = vunpack.c.l.b16 %v163
    %v1154 = vunpack.c.h.b16 %v163
    %v1155 = vunpack.c.l.b16 %v164
    %v1156 = vunpack.c.h.b16 %v164
    %v1157 = vunpack.c.l.b16 %v165
    %v1158 = vunpack.c.h.b16 %v165
    %v1159 = vunpack.c.l.b16 %v166
    %v1160 = vunpack.c.h.b16 %v166
    %v1161 = vunpack.c.l.b16 %v167
    %v1162 = vunpack.c.h.b16 %v167
    %v1163 = vunpack.c.l.b16 %v168
    %v1164 = vunpack.c.h.b16 %v168
    %v1165 = vunpack.c.l.b16 %v169
    %v1166 = vunpack.c.h.b16 %v169
    %v1167 = vunpack.c.l.b16 %v170
    %v1168 = vunpack.c.h.b16 %v170
    %v1169 = vunpack.c.l.b16 %v171
    %v1170 = vunpack.c.h.b16 %v171
    %v1171 = vunpack.c.l.b16 %v172
    %v1172 = vunpack.c.h.b16 %v172
    %v1173 = vunpack.c.l.b16 %v173
    %v1174 = vunpack.c.h.b16 %v173
    %v1175 = vunpack.c.l.b16 %v174
    %v1176 = vunpack.c.h.b16 %v174
    %v1177 = vunpack.c.l.b16 %v175
    %v1178 = vunpack.c.h.b16 %v175
    %v1179 = vunpack.c.l.b16 %v176
    %v1180 = vunpack.c.h.b16 %v176
    %v1181 = vunpack.c.l.b16 %v177
    %v1182 = vunpack.c.h.b16 %v177
    %v1183 = vunpack.c.l.b16 %v178
    %v1184 = vunpack.c.h.b16 %v178
    %v1185 = vunpack.c.l.b16 %v179
    %v1186 = vunpack.c.h.b16 %v179
    %v1187 = vunpack.c.l.b16 %v180
    %v1188 = vunpack.c.h.b16 %v180
    %v1189 = vunpack.c.l.b16 %v181
    %v1190 = vunpack.c.h.b16 %v181
    %v1191 = vunpack.c.l.b16 %v182
    %v1192 = vunpack.c.h.b16 %v182
    %v1193 = vunpack.c.l.b16 %v183
    %v1194 = vunpack.c.h.b16 %v183
    %v1195 = vunpack.c.l.b16 %v184
    %v1196 = vunpack.c.h.b16 %v184
    %v1197 = vunpack.c.l.b16 %v185
    %v1198 = vunpack.c.h.b16 %v185
    %v1199 = vunpack.c.l.b16 %v186
    %v1200 = vunpack.c.h.b16 %v186
    %v1201 = vunpack.c.l.b16 %v187
    %v1202 = vunpack.c.h.b16 %v187
    %v1203 = vunpack.c.l.b16 %v188
    %v1204 = vunpack.c.h.b16 %v188
    %v1205 = vunpack.c.l.b16 %v189
    %v1206 = vunpack.c.h.b16 %v189
    %v1207 = vunpack.c.l.b16 %v190
    %v1208 = vunpack.c.h.b16 %v190
    %v1209 = vunpack.c.l.b16 %v191
    %v1210 = vunpack.c.h.b16 %v191
    %v1211 = vunpack.c.l.b16 %v192
    %v1212 = vunpack.c.h.b16 %v192
    %v1213 = vunpack.c.l.b16 %v193
    %v1214 = vunpack.c.h.b16 %v193
    %v1215 = vunpack.c.l.b16 %v194
    %v1216 = vunpack.c.h.b16 %v194
    %v1217 = vunpack.c.l.b16 %v195
    %v1218 = vunpack.c.h.b16 %v195
    %v1219 = vunpack.c.l.b16 %v196
    %v1220 = vunpack.c.h.b16 %v196
    %v1221 = vunpack.c.l.b16 %v197
    %v1222 = vunpack.c.h.b16 %v197
    %v1223 = vunpack.c.l.b16 %v198
    %v1224 = vunpack.c.h.b16 %v198
    %v1225 = vunpack.c.l.b16 %v199
    %v1226 = vunpack.c.h.b16 %v199
    %v1227 = vunpack.c.l.b16 %v200
    %v1228 = vunpack.c.h.b16 %v200
    %v1229 = vunpack.c.l.b16 %v201
    %v1230 = vunpack.c.h.b16 %v201
    %v1231 = vunpack.c.l.b16 %v202
    %v1232 = vunpack.c.h.b16 %v202
    %v1233 = vunpack.c.l.b16 %v203
    %v1234 = vunpack.c.h.b16 %v203
    %v1235 = vunpack.c.l.b16 %v204
    %v1236 = vunpack.c.h.b16 %v204
    %v1237 = vunpack.c.l.b16 %v205
    %v1238 = vunpack.c.h.b16 %v205
    %v1239 = vunpack.c.l.b16 %v206
    %v1240 = vunpack.c.h.b16 %v206
    %v1241 = vunpack.c.l.b16 %v207
    %v1242 = vunpack.c.h.b16 %v207
    %v1243 = vunpack.c.l.b16 %v208
    %v1244 = vunpack.c.h.b16 %v208
    %v1245 = vunpack.c.l.b16 %v209
    %v1246 = vunpack.c.h.b16 %v209
    %v1247 = vunpack.c.l.b16 %v210
    %v1248 = vunpack.c.h.b16 %v210
    %v1249 = vunpack.c.l.b16 %v211
    %v1250 = vunpack.c.h.b16 %v211
    %v1251 = vunpack.c.l.b16 %v212
    %v1252 = vunpack.c.h.b16 %v212
    %v1253 = vunpack.c.l.b16 %v213
    %v1254 = vunpack.c.h.b16 %v213
    %v1255 = vunpack.c.l.b16 %v214
    %v1256 = vunpack.c.h.b16 %v214
    %v1257 = vunpack.c.l.b16 %v215
    %v1258 = vunpack.c.h.b16 %v215
    %v1259 = vunpack.c.l.b16 %v216
    %v1260 = vunpack.c.h.b16 %v216
    %v1261 = vunpack.c.l.b16 %v217
    %v1262 = vunpack.c.h.b16 %v217
    %v1263 = vunpack.c.l.b16 %v218
    %v1264 = vunpack.c.h.b16 %v218
    %v1265 = vunpack.c.l.b16 %v219
    %v1266 = vunpack.c.h.b16 %v219
    %v1267 = vunpack.c.l.b16 %v220
    %v1268 = vunpack.c.h.b16 %v220
    %v1269 = vunpack.c.l.b16 %v221
    %v1270 = vunpack.c.h.b16 %v221
    %v1271 = vunpack.c.l.b16 %v222
    %v1272 = vunpack.c.h.b16 %v222
    %v1273 = vunpack.c.l.b16 %v223
    %v1274 = vunpack.c.h.b16 %v223
    %v1275 = vunpack.c.l.b16 %v224
    %v1276 = vunpack.c.h.b16 %v224
    %v1277 = vunpack.c.l.b16 %v225
    %v1278 = vunpack.c.h.b16 %v225
    %v1279 = vunpack.c.l.b16 %v226
    %v1280 = vunpack.c.h.b16 %v226
    %v1281 = vunpack.c.l.b16 %v227
    %v1282 = vunpack.c.h.b16 %v227
    %v1283 = vunpack.c.l.b16 %v228
    %v1284 = vunpack.c.h.b16 %v228
    %v1285 = vunpack.c.l.b16 %v229
    %v1286 = vunpack.c.h.b16 %v229
    %v1287 = vunpack.c.l.b16 %v230
    %v1288 = vunpack.c.h.b16 %v230
    %v1289 = vunpack.c.l.b16 %v231
    %v1290 = vunpack.c.h.b16 %v231
    %v1291 = vunpack.c.l.b16 %v232
    %v1292 = vunpack.c.h.b16 %v232
    %v1293 = vunpack.c.l.b16 %v233
    %v1294 = vunpack.c.h.b16 %v233
    %v1295 = vunpack.c.l.b16 %v234
    %v1296 = vunpack.c.h.b16 %v234
    %v1297 = vunpack.c.l.b16 %v235
    %v1298 = vunpack.c.h.b16 %v235
    %v1299 = vunpack.c.l.b16 %v236
    %v1300 = vunpack.c.h.b16 %v236
    %v1301 = vunpack.c.l.b16 %v237
    %v1302 = vunpack.c.h.b16 %v237
    %v1303 = vunpack.c.l.b16 %v238
    %v1304 = vunpack.c.h.b16 %v238
    %v1305 = vunpack.c.l.b16 %v239
    %v1306 = vunpack.c.h.b16 %v239
    %v1307 = vunpack.c.l.b16 %v240
    %v1308 = vunpack.c.h.b16 %v240
    %v1309 = vunpack.c.l.b16 %v241
    %v1310 = vunpack.c.h.b16 %v241
    %v1311 = vunpack.c.l.b16 %v242
    %v1312 = vunpack.c.h.b16 %v242
    %v1313 = vunpack.c.l.b16 %v243
    %v1314 = vunpack.c.h.b16 %v243
    %v1315 = vunpack.c.l.b16 %v244
    %v1316 = vunpack.c.h.b16 %v244
    %v1317 = vunpack.c.l.b16 %v245
    %v1318 = vunpack.c.h.b16 %v245
    %v1319 = vunpack.c.l.b16 %v246
    %v1320 = vunpack.c.h.b16 %v246
    %v1321 = vunpack.c.l.b16 %v247
    %v1322 = vunpack.c.h.b16 %v247
    %v1323 = vunpack.c.l.b16 %v248
    %v1324 = vunpack.c.h.b16 %v248
    %v1325 = vunpack.c.l.b16 %v249
    %v1326 = vunpack.c.h.b16 %v249
    %v1327 = vunpack.c.l.b16 %v250
    %v1328 = vunpack.c.h.b16 %v250
    %v1329 = vunpack.c.l.b16 %v251
    %v1330 = vunpack.c.h.b16 %v251
    %v1331 = vunpack.c.l.b16 %v252
    %v1332 = vunpack.c.h.b16 %v252
    %v1333 = vunpack.c.l.b16 %v253
    %v1334 = vunpack.c.h.b16 %v253
    %v1335 = vunpack.c.l.b16 %v254
    %v1336 = vunpack.c.h.b16 %v254
    %v1337 = vunpack.c.l.b16 %v255
    %v1338 = vunpack.c.h.b16 %v255
    %v1339 = vunpack.c.l.b16 %v256
    %v1340 = vunpack.c.h.b16 %v256
    %v1341 = vunpack.c.l.b16 %v257
    %v1342 = vunpack.c.h.b16 %v257
    %v1343 = vunpack.c.l.b16 %v258
    %v1344 = vunpack.c.h.b16 %v258
    %v1345 = vunpack.c.l.b16 %v259
    %v1346 = vunpack.c.h.b16 %v259
    %v1347 = vunpack.c.l.b16 %v260
    %v1348 = vunpack.c.h.b16 %v260
    %v1349 = vunpack.c.l.b16 %v261
    %v1350 = vunpack.c.h.b16 %v261
    %v1351 = vunpack.c.l.b16 %v262
    %v1352 = vunpack.c.h.b16 %v262
    %v1353 = vunpack.c.l.b16 %v263
    %v1354 = vunpack.c.h.b16 %v263
    %v1355 = vunpack.c.l.b16 %v264
    %v1356 = vunpack.c.h.b16 %v264
    %v1357 = vunpack.c.l.b16 %v265
    %v1358 = vunpack.c.h.b16 %v265
    %v1359 = vunpack.c.l.b16 %v266
    %v1360 = vunpack.c.h.b16 %v266
    %v1361 = vunpack.c.l.b16 %v267
    %v1362 = vunpack.c.h.b16 %v267
    %v1363 = vunpack.c.l.b16 %v268
    %v1364 = vunpack.c.h.b16 %v268
    %v1365 = vunpack.c.l.b16 %v269
    %v1366 = vunpack.c.h.b16 %v269
    %v1367 = vunpack.c.l.b16 %v270
    %v1368 = vunpack.c.h.b16 %v270
    %v1369 = vunpack.c.l.b16 %v271
    %v1370 = vunpack.c.h.b16 %v271
    %v1371 = vunpack.c.l.b16 %v272
    %v1372 = vunpack.c.h.b16 %v272
    %v1373 = vunpack.c.l.b16 %v273
    %v1374 = vunpack.c.h.b16 %v273
    %v1375 = vunpack.c.l.b16 %v274
    %v1376 = vunpack.c.h.b16 %v274
    %v1377 = vunpack.c.l.b16 %v275
    %v1378 = vunpack.c.h.b16 %v275
    %v1379 = vunpack.c.l.b16 %v276
    %v1380 = vunpack.c.h.b16 %v276
    %v1381 = vunpack.c.l.b16 %v277
    %v1382 = vunpack.c.h.b16 %v277
    %v1383 = vunpack.c.l.b16 %v278
    %v1384 = vunpack.c.h.b16 %v278
    %v1385 = vunpack.c.l.b16 %v279
    %v1386 = vunpack.c.h.b16 %v279
    %v1387 = vunpack.c.l.b16 %v280
    %v1388 = vunpack.c.h.b16 %v280
    %v1389 = vunpack.c.l.b16 %v281
    %v1390 = vunpack.c.h.b16 %v281
    %v1391 = vunpack.c.l.b16 %v282
    %v1392 = vunpack.c.h.b16 %v282
    %v1393 = vunpack.c.l.b16 %v283
    %v1394 = vunpack.c.h.b16 %v283
    %v1395 = vunpack.c.l.b16 %v284
    %v1396 = vunpack.c.h.b16 %v284
    %v1397 = vunpack.c.l.b16 %v285
    %v1398 = vunpack.c.h.b16 %v285
    %v1399 = vunpack.c.l.b16 %v286
    %v1400 = vunpack.c.h.b16 %v286
    %v1401 = vunpack.c.l.b16 %v287
    %v1402 = vunpack.c.h.b16 %v287
    %v1403 = vunpack.c.l.b16 %v288
    %v1404 = vunpack.c.h.b16 %v288
    %v1405 = vunpack.c.l.b16 %v289
    %v1406 = vunpack.c.h.b16 %v289
    %v1407 = vunpack.c.l.b16 %v290
    %v1408 = vunpack.c.h.b16 %v290
    %v1409 = vunpack.c.l.b16 %v291
    %v1410 = vunpack.c.h.b16 %v291
    %v1411 = vunpack.c.l.b16 %v292
    %v1412 = vunpack.c.h.b16 %v292
    %v1413 = vunpack.c.l.b16 %v293
    %v1414 = vunpack.c.h.b16 %v293
    %v1415 = vunpack.c.l.b16 %v294
    %v1416 = vunpack.c.h.b16 %v294
    %v1417 = vunpack.c.l.b16 %v295
    %v1418 = vunpack.c.h.b16 %v295
    %v1419 = vunpack.c.l.b16 %v296
    %v1420 = vunpack.c.h.b16 %v296
    %v1421 = vunpack.c.l.b16 %v297
    %v1422 = vunpack.c.h.b16 %v297
    %v1423 = vunpack.c.l.b16 %v298
    %v1424 = vunpack.c.h.b16 %v298
    %v1425 = vunpack.c.l.b16 %v299
    %v1426 = vunpack.c.h.b16 %v299
    %v1427 = vunpack.c.l.b16 %v300
    %v1428 = vunpack.c.h.b16 %v300
    %v1429 = vunpack.c.l.b16 %v301
    %v1430 = vunpack.c.h.b16 %v301
    %v1431 = vunpack.c.l.b16 %v302
    %v1432 = vunpack.c.h.b16 %v302
    %v1433 = vunpack.c.l.b16 %v303
    %v1434 = vunpack.c.h.b16 %v303
    %v1435 = vunpack.c.l.b16 %v304
    %v1436 = vunpack.c.h.b16 %v304
    %v1437 = vunpack.c.l.b16 %v305
    %v1438 = vunpack.c.h.b16 %v305
    %v1439 = vunpack.c.l.b16 %v306
    %v1440 = vunpack.c.h.b16 %v306
    %v1441 = vunpack.c.l.b16 %v307
    %v1442 = vunpack.c.h.b16 %v307
    %v1443 = vunpack.c.l.b16 %v308
    %v1444 = vunpack.c.h.b16 %v308
    %v1445 = vunpack.c.l.b16 %v309
    %v1446 = vunpack.c.h.b16 %v309
    %v1447 = vunpack.c.l.b16 %v310
    %v1448 = vunpack.c.h.b16 %v310
    %v1449 = vunpack.c.l.b16 %v311
    %v1450 = vunpack.c.h.b16 %v311
    %v1451 = vunpack.c.l.b16 %v312
    %v1452 = vunpack.c.h.b16 %v312
    %v1453 = vunpack.c.l.b16 %v313
    %v1454 = vunpack.c.h.b16 %v313
    %v1455 = vunpack.c.l.b16 %v314
    %v1456 = vunpack.c.h.b16 %v314
    %v1457 = vunpack.c.l.b16 %v315
    %v1458 = vunpack.c.h.b16 %v315
    %v1459 = vunpack.c.l.b16 %v316
    %v1460 = vunpack.c.h.b16 %v316
    %v1461 = vunpack.c.l.b16 %v317
    %v1462 = vunpack.c.h.b16 %v317
    %v1463 = vunpack.c.l.b16 %v318
    %v1464 = vunpack.c.h.b16 %v318
    %v1465 = vunpack.c.l.b16 %v319
    %v1466 = vunpack.c.h.b16 %v319
    %v1467 = vunpack.c.l.b16 %v320
    %v1468 = vunpack.c.h.b16 %v320
    %v1469 = vunpack.c.l.b16 %v321
    %v1470 = vunpack.c.h.b16 %v321
    %v1471 = vunpack.c.l.b16 %v322
    %v1472 = vunpack.c.h.b16 %v322
    %v1473 = vunpack.c.l.b16 %v323
    %v1474 = vunpack.c.h.b16 %v323
    %v1475 = vunpack.c.l.b16 %v324
    %v1476 = vunpack.c.h.b16 %v324
    %v1477 = vunpack.c.l.b16 %v325
    %v1478 = vunpack.c.h.b16 %v325
    %v1479 = vunpack.c.l.b16 %v326
    %v1480 = vunpack.c.h.b16 %v326
    %v1481 = vunpack.c.l.b16 %v327
    %v1482 = vunpack.c.h.b16 %v327
    %v1483 = vunpack.c.l.b16 %v328
    %v1484 = vunpack.c.h.b16 %v328
    %v1485 = vunpack.c.l.b16 %v329
    %v1486 = vunpack.c.h.b16 %v329
    %v1487 = vunpack.c.l.b16 %v330
    %v1488 = vunpack.c.h.b16 %v330
    %v1489 = vunpack.c.l.b16 %v331
    %v1490 = vunpack.c.h.b16 %v331
    %v1491 = vunpack.c.l.b16 %v332
    %v1492 = vunpack.c.h.b16 %v332
    %v1493 = vunpack.c.l.b16 %v333
    %v1494 = vunpack.c.h.b16 %v333
    %v1495 = vunpack.c.l.b16 %v334
    %v1496 = vunpack.c.h.b16 %v334
    %v1497 = vunpack.c.l.b16 %v335
    %v1498 = vunpack.c.h.b16 %v335
    %v1499 = vunpack.c.l.b16 %v336
    %v1500 = vunpack.c.h.b16 %v336
    %v1501 = vunpack.c.l.b16 %v337
    %v1502 = vunpack.c.h.b16 %v337
    %v1503 = vunpack.c.l.b16 %v338
    %v1504 = vunpack.c.h.b16 %v338
    %v1505 = vunpack.c.l.b16 %v339
    %v1506 = vunpack.c.h.b16 %v339
    %v1507 = vunpack.c.l.b16 %v340
    %v1508 = vunpack.c.h.b16 %v340
    %v1509 = vunpack.c.l.b16 %v341
    %v1510 = vunpack.c.h.b16 %v341
    %v1511 = vunpack.c.l.b16 %v342
    %v1512 = vunpack.c.h.b16 %v342
    %v1513 = vunpack.c.l.b16 %v343
    %v1514 = vunpack.c.h.b16 %v343
    %v1515 = vunpack.c.l.b16 %v344
    %v1516 = vunpack.c.h.b16 %v344
    %v1517 = vunpack.c.l.b16 %v345
    %v1518 = vunpack.c.h.b16 %v345
    %v1519 = vunpack.c.l.b16 %v346
    %v1520 = vunpack.c.h.b16 %v346
    %v1521 = vunpack.c.l.b16 %v347
    %v1522 = vunpack.c.h.b16 %v347
    %v1523 = vunpack.c.l.b16 %v348
    %v1524 = vunpack.c.h.b16 %v348
    %v1525 = vunpack.c.l.b16 %v349
    %v1526 = vunpack.c.h.b16 %v349
    %v1527 = vunpack.c.l.b16 %v350
    %v1528 = vunpack.c.h.b16 %v350
    %v1529 = vunpack.c.l.b16 %v351
    %v1530 = vunpack.c.h.b16 %v351
    %v1531 = vunpack.c.l.b16 %v352
    %v1532 = vunpack.c.h.b16 %v352
    %v1533 = vunpack.c.l.b16 %v353
    %v1534 = vunpack.c.h.b16 %v353
    %v1535 = vunpack.c.l.b16 %v354
    %v1536 = vunpack.c.h.b16 %v354
    %v1537 = vunpack.c.l.b16 %v355
    %v1538 = vunpack.c.h.b16 %v355
    %v1539 = vunpack.c.l.b16 %v356
    %v1540 = vunpack.c.h.b16 %v356
    %v1541 = vunpack.c.l.b16 %v357
    %v1542 = vunpack.c.h.b16 %v357
    %v1543 = vunpack.c.l.b16 %v358
    %v1544 = vunpack.c.h.b16 %v358
    %v1545 = vunpack.c.l.b16 %v359
    %v1546 = vunpack.c.h.b16 %v359
    %v1547 = vunpack.c.l.b16 %v360
    %v1548 = vunpack.c.h.b16 %v360
    %v1549 = vunpack.c.l.b16 %v361
    %v1550 = vunpack.c.h.b16 %v361
    %v1551 = vunpack.c.l.b16 %v362
    %v1552 = vunpack.c.h.b16 %v362
    %v1553 = vunpack.c.l.b16 %v363
    %v1554 = vunpack.c.h.b16 %v363
    %v1555 = vunpack.c.l.b16 %v364
    %v1556 = vunpack.c.h.b16 %v364
    %v1557 = vunpack.c.l.b16 %v365
    %v1558 = vunpack.c.h.b16 %v365
    %v1559 = vunpack.c.l.b16 %v366
    %v1560 = vunpack.c.h.b16 %v366
    %v1561 = vunpack.c.l.b16 %v367
    %v1562 = vunpack.c.h.b16 %v367
    %v1563 = vunpack.c.l.b16 %v368
    %v1564 = vunpack.c.h.b16 %v368
    %v1565 = vunpack.c.l.b16 %v369
    %v1566 = vunpack.c.h.b16 %v369
    %v1567 = vunpack.c.l.b16 %v370
    %v1568 = vunpack.c.h.b16 %v370
    %v1569 = vunpack.c.l.b16 %v371
    %v1570 = vunpack.c.h.b16 %v371
    %v1571 = vunpack.c.l.b16 %v372
    %v1572 = vunpack.c.h.b16 %v372
    %v1573 = vunpack.c.l.b16 %v373
    %v1574 = vunpack.c.h.b16 %v373
    %v1575 = vunpack.c.l.b16 %v374
    %v1576 = vunpack.c.h.b16 %v374
    %v1577 = vunpack.c.l.b16 %v375
    %v1578 = vunpack.c.h.b16 %v375
    %v1579 = vunpack.c.l.b16 %v376
    %v1580 = vunpack.c.h.b16 %v376
    %v1581 = vunpack.c.l.b16 %v377
    %v1582 = vunpack.c.h.b16 %v377
    %v1583 = vunpack.c.l.b16 %v378
    %v1584 = vunpack.c.h.b16 %v378
    %v1585 = vunpack.c.l.b16 %v379
    %v1586 = vunpack.c.h.b16 %v379
    %v1587 = vunpack.c.l.b16 %v380
    %v1588 = vunpack.c.h.b16 %v380
    %v1589 = vunpack.c.l.b16 %v381
    %v1590 = vunpack.c.h.b16 %v381
    %v1591 = vunpack.c.l.b16 %v382
    %v1592 = vunpack.c.h.b16 %v382
    %v1593 = vunpack.c.l.b16 %v383
    %v1594 = vunpack.c.h.b16 %v383
    %v1595 = vunpack.c.l.b16 %v384
    %v1596 = vunpack.c.h.b16 %v384
    %v1597 = vunpack.c.l.b16 %v385
    %v1598 = vunpack.c.h.b16 %v385
    %v1599 = vunpack.c.l.b16 %v386
    %v1600 = vunpack.c.h.b16 %v386
    %v1601 = vunpack.c.l.b16 %v387
    %v1602 = vunpack.c.h.b16 %v387
    %v1603 = vunpack.c.l.b16 %v388
    %v1604 = vunpack.c.h.b16 %v388
    %v1605 = vunpack.c.l.b16 %v389
    %v1606 = vunpack.c.h.b16 %v389
    %v1607 = vunpack.c.l.b16 %v390
    %v1608 = vunpack.c.h.b16 %v390
    %v1609 = vunpack.c.l.b16 %v391
    %v1610 = vunpack.c.h.b16 %v391
    %v1611 = vunpack.c.l.b16 %v392
    %v1612 = vunpack.c.h.b16 %v392
    %v1613 = vunpack.c.l.b16 %v393
    %v1614 = vunpack.c.h.b16 %v393
    %v1615 = vunpack.c.l.b16 %v394
    %v1616 = vunpack.c.h.b16 %v394
    %v1617 = vunpack.c.l.b16 %v395
    %v1618 = vunpack.c.h.b16 %v395
    %v1619 = vunpack.c.l.b16 %v396
    %v1620 = vunpack.c.h.b16 %v396
    %v1621 = vunpack.c.l.b16 %v397
    %v1622 = vunpack.c.h.b16 %v397
    %v1623 = vunpack.c.l.b16 %v398
    %v1624 = vunpack.c.h.b16 %v398
    %v1625 = vunpack.c.l.b16 %v399
    %v1626 = vunpack.c.h.b16 %v399
    %v1627 = vunpack.c.l.b16 %v400
    %v1628 = vunpack.c.h.b16 %v400
    %v1629 = vunpack.c.l.b16 %v401
    %v1630 = vunpack.c.h.b16 %v401
    %v1631 = vunpack.c.l.b16 %v402
    %v1632 = vunpack.c.h.b16 %v402
    %v1633 = vunpack.c.l.b16 %v403
    %v1634 = vunpack.c.h.b16 %v403
    %v1635 = vunpack.c.l.b16 %v404
    %v1636 = vunpack.c.h.b16 %v404
    %v1637 = vunpack.c.l.b16 %v405
    %v1638 = vunpack.c.h.b16 %v405
    %v1639 = vunpack.c.l.b16 %v406
    %v1640 = vunpack.c.h.b16 %v406
    %v1641 = vunpack.c.l.b16 %v407
    %v1642 = vunpack.c.h.b16 %v407
    %v1643 = vunpack.c.l.b16 %v408
    %v1644 = vunpack.c.h.b16 %v408
    %v1645 = vunpack.c.l.b16 %v409
    %v1646 = vunpack.c.h.b16 %v409
    %v1647 = vunpack.c.l.b16 %v410
    %v1648 = vunpack.c.h.b16 %v410
    %v1649 = vunpack.c.l.b16 %v411
    %v1650 = vunpack.c.h.b16 %v411
    %v1651 = vunpack.c.l.b16 %v412
    %v1652 = vunpack.c.h.b16 %v412
    %v1653 = vunpack.c.l.b16 %v413
    %v1654 = vunpack.c.h.b16 %v413
    %v1655 = vunpack.c.l.b16 %v414
    %v1656 = vunpack.c.h.b16 %v414
    %v1657 = vunpack.c.l.b16 %v415
    %v1658 = vunpack.c.h.b16 %v415
    %v1659 = vunpack.c.l.b16 %v416
    %v1660 = vunpack.c.h.b16 %v416
    %v1661 = vunpack.c.l.b16 %v417
    %v1662 = vunpack.c.h.b16 %v417
    %v1663 = vunpack.c.l.b16 %v418
    %v1664 = vunpack.c.h.b16 %v418
    %v1665 = vunpack.c.l.b16 %v419
    %v1666 = vunpack.c.h.b16 %v419
    %v1667 = vunpack.c.l.b16 %v420
    %v1668 = vunpack.c.h.b16 %v420
    %v1669 = vunpack.c.l.b16 %v421
    %v1670 = vunpack.c.h.b16 %v421
    %v1671 = vunpack.c.l.b16 %v422
    %v1672 = vunpack.c.h.b16 %v422
    %v1673 = vunpack.c.l.b16 %v423
    %v1674 = vunpack.c.h.b16 %v423
    %v1675 = vunpack.c.l.b16 %v424
    %v1676 = vunpack.c.h.b16 %v424
    %v1677 = vunpack.c.l.b16 %v425
    %v1678 = vunpack.c.h.b16 %v425
    %v1679 = vunpack.c.l.b16 %v426
    %v1680 = vunpack.c.h.b16 %v426
    %v1681 = vunpack.c.l.b16 %v427
    %v1682 = vunpack.c.h.b16 %v427
    %v1683 = vunpack.c.l.b16 %v428
    %v1684 = vunpack.c.h.b16 %v428
    %v1685 = vunpack.c.l.b16 %v429
    %v1686 = vunpack.c.h.b16 %v429
    %v1687 = vunpack.c.l.b16 %v430
    %v1688 = vunpack.c.h.b16 %v430
    %v1689 = vunpack.c.l.b16 %v431
    %v1690 = vunpack.c.h.b16 %v431
    %v1691 = vunpack.c.l.b16 %v432
    %v1692 = vunpack.c.h.b16 %v432
    %v1693 = vunpack.c.l.b16 %v433
    %v1694 = vunpack.c.h.b16 %v433
    %v1695 = vunpack.c.l.b16 %v434
    %v1696 = vunpack.c.h.b16 %v434
    %v1697 = vunpack.c.l.b16 %v435
    %v1698 = vunpack.c.h.b16 %v435
    %v1699 = vunpack.c.l.b16 %v436
    %v1700 = vunpack.c.h.b16 %v436
    %v1701 = vunpack.c.l.b16 %v437
    %v1702 = vunpack.c.h.b16 %v437
    %v1703 = vunpack.c.l.b16 %v438
    %v1704 = vunpack.c.h.b16 %v438
    %v1705 = vunpack.c.l.b16 %v439
    %v1706 = vunpack.c.h.b16 %v439
    %v1707 = vunpack.c.l.b16 %v440
    %v1708 = vunpack.c.h.b16 %v440
    %v1709 = vunpack.c.l.b16 %v441
    %v1710 = vunpack.c.h.b16 %v441
    %v1711 = vunpack.c.l.b16 %v442
    %v1712 = vunpack.c.h.b16 %v442
    %v1713 = vunpack.c.l.b16 %v443
    %v1714 = vunpack.c.h.b16 %v443
    %v1715 = vunpack.c.l.b16 %v444
    %v1716 = vunpack.c.h.b16 %v444
    %v1717 = vunpack.c.l.b16 %v445
    %v1718 = vunpack.c.h.b16 %v445
    %v1719 = vunpack.c.l.b16 %v446
    %v1720 = vunpack.c.h.b16 %v446
    %v1721 = vunpack.c.l.b16 %v447
    %v1722 = vunpack.c.h.b16 %v447
    %v1723 = vunpack.c.l.b16 %v448
    %v1724 = vunpack.c.h.b16 %v448
    %v1725 = vunpack.c.l.b16 %v449
    %v1726 = vunpack.c.h.b16 %v449
    %v1727 = vunpack.c.l.b16 %v450
    %v1728 = vunpack.c.h.b16 %v450
    %v1729 = vunpack.c.l.b16 %v451
    %v1730 = vunpack.c.h.b16 %v451
    %v1731 = vunpack.c.l.b16 %v452
    %v1732 = vunpack.c.h.b16 %v452
    %v1733 = vunpack.c.l.b16 %v453
    %v1734 = vunpack.c.h.b16 %v453
    %v1735 = vunpack.c.l.b16 %v454
    %v1736 = vunpack.c.h.b16 %v454
    %v1737 = vunpack.c.l.b16 %v455
    %v1738 = vunpack.c.h.b16 %v455
    %v1739 = vunpack.c.l.b16 %v456
    %v1740 = vunpack.c.h.b16 %v456
    %v1741 = vunpack.c.l.b16 %v457
    %v1742 = vunpack.c.h.b16 %v457
    %v1743 = vunpack.c.l.b16 %v458
    %v1744 = vunpack.c.h.b16 %v458
    %v1745 = vunpack.c.l.b16 %v459
    %v1746 = vunpack.c.h.b16 %v459
    %v1747 = vunpack.c.l.b16 %v460
    %v1748 = vunpack.c.h.b16 %v460
    %v1749 = vunpack.c.l.b16 %v461
    %v1750 = vunpack.c.h.b16 %v461
    %v1751 = vunpack.c.l.b16 %v462
    %v1752 = vunpack.c.h.b16 %v462
    %v1753 = vunpack.c.l.b16 %v463
    %v1754 = vunpack.c.h.b16 %v463
    %v1755 = vunpack.c.l.b16 %v464
    %v1756 = vunpack.c.h.b16 %v464
    %v1757 = vunpack.c.l.b16 %v465
    %v1758 = vunpack.c.h.b16 %v465
    %v1759 = vunpack.c.l.b16 %v466
    %v1760 = vunpack.c.h.b16 %v466
    %v1761 = vunpack.c.l.b16 %v467
    %v1762 = vunpack.c.h.b16 %v467
    %v1763 = vunpack.c.l.b16 %v468
    %v1764 = vunpack.c.h.b16 %v468
    %v1765 = vunpack.c.l.b16 %v469
    %v1766 = vunpack.c.h.b16 %v469
    %v1767 = vunpack.c.l.b16 %v470
    %v1768 = vunpack.c.h.b16 %v470
    %v1769 = vunpack.c.l.b16 %v471
    %v1770 = vunpack.c.h.b16 %v471
    %v1771 = vunpack.c.l.b16 %v472
    %v1772 = vunpack.c.h.b16 %v472
    %v1773 = vunpack.c.l.b16 %v473
    %v1774 = vunpack.c.h.b16 %v473
    %v1775 = vunpack.c.l.b16 %v474
    %v1776 = vunpack.c.h.b16 %v474
    %v1777 = vunpack.c.l.b16 %v475
    %v1778 = vunpack.c.h.b16 %v475
    %v1779 = vunpack.c.l.b16 %v476
    %v1780 = vunpack.c.h.b16 %v476
    %v1781 = vunpack.c.l.b16 %v477
    %v1782 = vunpack.c.h.b16 %v477
    %v1783 = vunpack.c.l.b16 %v478
    %v1784 = vunpack.c.h.b16 %v478
    %v1785 = vunpack.c.l.b16 %v479
    %v1786 = vunpack.c.h.b16 %v479
    %v1787 = vunpack.c.l.b16 %v480
    %v1788 = vunpack.c.h.b16 %v480
    %v1789 = vunpack.c.l.b16 %v481
    %v1790 = vunpack.c.h.b16 %v481
    %v1791 = vunpack.c.l.b16 %v482
    %v1792 = vunpack.c.h.b16 %v482
    %v1793 = vunpack.c.l.b16 %v483
    %v1794 = vunpack.c.h.b16 %v483
    %v1795 = vunpack.c.l.b16 %v484
    %v1796 = vunpack.c.h.b16 %v484
    %v1797 = vunpack.c.l.b16 %v485
    %v1798 = vunpack.c.h.b16 %v485
    %v1799 = vunpack.c.l.b16 %v486
    %v1800 = vunpack.c.h.b16 %v486
    %v1801 = vunpack.c.l.b16 %v487
    %v1802 = vunpack.c.h.b16 %v487
    %v1803 = vunpack.c.l.b16 %v488
    %v1804 = vunpack.c.h.b16 %v488
    %v1805 = vunpack.c.l.b16 %v489
    %v1806 = vunpack.c.h.b16 %v489
    %v1807 = vunpack.c.l.b16 %v490
    %v1808 = vunpack.c.h.b16 %v490
    %v1809 = vunpack.c.l.b16 %v491
    %v1810 = vunpack.c.h.b16 %v491
    %v1811 = vunpack.c.l.b16 %v492
    %v1812 = vunpack.c.h.b16 %v492
    %v1813 = vunpack.c.l.b16 %v493
    %v1814 = vunpack.c.h.b16 %v493
    %v1815 = vunpack.c.l.b16 %v494
    %v1816 = vunpack.c.h.b16 %v494
    %v1817 = vunpack.c.l.b16 %v495
    %v1818 = vunpack.c.h.b16 %v495
    %v1819 = vunpack.c.l.b16 %v496
    %v1820 = vunpack.c.h.b16 %v496
    %v1821 = vunpack.c.l.b16 %v497
    %v1822 = vunpack.c.h.b16 %v497
    %v1823 = vunpack.c.l.b16 %v498
    %v1824 = vunpack.c.h.b16 %v498
    %v1825 = vunpack.c.l.b16 %v499
    %v1826 = vunpack.c.h.b16 %v499
    %v1827 = vunpack.c.l.b16 %v500
    %v1828 = vunpack.c.h.b16 %v500
    %v1829 = vunpack.c.l.b16 %v501
    %v1830 = vunpack.c.h.b16 %v501
    %v1831 = vunpack.c.l.b16 %v502
    %v1832 = vunpack.c.h.b16 %v502
    %v1833 = vunpack.c.l.b16 %v503
    %v1834 = vunpack.c.h.b16 %v503
    %v1835 = vunpack.c.l.b16 %v504
    %v1836 = vunpack.c.h.b16 %v504
    %v1837 = vunpack.c.l.b16 %v505
    %v1838 = vunpack.c.h.b16 %v505
    %v1839 = vunpack.c.l.b16 %v506
    %v1840 = vunpack.c.h.b16 %v506
    %v1841 = vunpack.c.l.b16 %v507
    %v1842 = vunpack.c.h.b16 %v507
    %v1843 = vunpack.c.l.b16 %v508
    %v1844 = vunpack.c.h.b16 %v508
    %v1845 = vunpack.c.l.b16 %v509
    %v1846 = vunpack.c.h.b16 %v509
    %v1847 = vunpack.c.l.b16 %v510
    %v1848 = vunpack.c.h.b16 %v510
    %v1849 = vunpack.c.l.b16 %v511
    %v1850 = vunpack.c.h.b16 %v511
    %v1851 = vunpack.c.l.b16 %v512
    %v1852 = vunpack.c.h.b16 %v512
    %v1853 = vunpack.c.l.b16 %v513
    %v1854 = vunpack.c.h.b16 %v513
    %v1855 = vunpack.c.l.b16 %v514
    %v1856 = vunpack.c.h.b16 %v514
    %v1857 = vunpack.c.l.b16 %v515
    %v1858 = vunpack.c.h.b16 %v515
    %v1859 = vunpack.c.l.b16 %v516
    %v1860 = vunpack.c.h.b16 %v516
    %v1861 = vunpack.c.l.b16 %v517
    %v1862 = vunpack.c.h.b16 %v517
    %v1863 = vunpack.c.l.b16 %v518
    %v1864 = vunpack.c.h.b16 %v518
    %v1865 = vunpack.c.l.b16 %v519
    %v1866 = vunpack.c.h.b16 %v519
    %v1867 = vunpack.c.l.b16 %v520
    %v1868 = vunpack.c.h.b16 %v520
    %v1869 = vunpack.c.l.b16 %v521
    %v1870 = vunpack.c.h.b16 %v521
    %v1871 = vunpack.c.l.b16 %v522
    %v1872 = vunpack.c.h.b16 %v522
    %v1873 = vunpack.c.l.b16 %v523
    %v1874 = vunpack.c.h.b16 %v523
    %v1875 = vunpack.c.l.b16 %v524
    %v1876 = vunpack.c.h.b16 %v524
    %v1877 = vunpack.c.l.b16 %v525
    %v1878 = vunpack.c.h.b16 %v525
    %v1879 = vunpack.c.l.b16 %v526
    %v1880 = vunpack.c.h.b16 %v526
    %v1881 = vunpack.c.l.b16 %v527
    %v1882 = vunpack.c.h.b16 %v527
    %v1883 = vunpack.c.l.b16 %v528
    %v1884 = vunpack.c.h.b16 %v528
    %v1885 = vunpack.c.l.b16 %v529
    %v1886 = vunpack.c.h.b16 %v529
    %v1887 = vunpack.c.l.b16 %v530
    %v1888 = vunpack.c.h.b16 %v530
    %v1889 = vunpack.c.l.b16 %v531
    %v1890 = vunpack.c.h.b16 %v531
    %v1891 = vunpack.c.l.b16 %v532
    %v1892 = vunpack.c.h.b16 %v532
    %v1893 = vunpack.c.l.b16 %v533
    %v1894 = vunpack.c.h.b16 %v533
    %v1895 = vunpack.c.l.b16 %v534
    %v1896 = vunpack.c.h.b16 %v534
    %v1897 = vunpack.c.l.b16 %v535
    %v1898 = vunpack.c.h.b16 %v535
    %v1899 = vunpack.c.l.b16 %v536
    %v1900 = vunpack.c.h.b16 %v536
    %v1901 = vunpack.c.l.b16 %v537
    %v1902 = vunpack.c.h.b16 %v537
    %v1903 = vunpack.c.l.b16 %v538
    %v1904 = vunpack.c.h.b16 %v538
    %v1905 = vunpack.c.l.b16 %v539
    %v1906 = vunpack.c.h.b16 %v539
    %v1907 = vunpack.c.l.b16 %v540
    %v1908 = vunpack.c.h.b16 %v540
    %v1909 = vunpack.c.l.b16 %v541
    %v1910 = vunpack.c.h.b16 %v541
    %v1911 = vunpack.c.l.b16 %v542
    %v1912 = vunpack.c.h.b16 %v542
    %v1913 = vunpack.c.l.b16 %v543
    %v1914 = vunpack.c.h.b16 %v543
    %v1915 = vunpack.c.l.b16 %v544
    %v1916 = vunpack.c.h.b16 %v544
    %v1917 = vunpack.c.l.b16 %v545
    %v1918 = vunpack.c.h.b16 %v545
    %v1919 = vunpack.c.l.b16 %v546
    %v1920 = vunpack.c.h.b16 %v546
    %v1921 = vunpack.c.l.b16 %v547
    %v1922 = vunpack.c.h.b16 %v547
    %v1923 = vunpack.c.l.b16 %v548
    %v1924 = vunpack.c.h.b16 %v548
    %v1925 = vunpack.c.l.b16 %v549
    %v1926 = vunpack.c.h.b16 %v549
    %v1927 = vunpack.c.l.b16 %v550
    %v1928 = vunpack.c.h.b16 %v550
    %v1929 = vunpack.c.l.b16 %v551
    %v1930 = vunpack.c.h.b16 %v551
    %v1931 = vunpack.c.l.b16 %v552
    %v1932 = vunpack.c.h.b16 %v552
    %v1933 = vunpack.c.l.b16 %v553
    %v1934 = vunpack.c.h.b16 %v553
    %v1935 = vunpack.c.l.b16 %v554
    %v1936 = vunpack.c.h.b16 %v554
    %v1937 = vunpack.c.l.b16 %v555
    %v1938 = vunpack.c.h.b16 %v555
    %v1939 = vunpack.c.l.b16 %v556
    %v1940 = vunpack.c.h.b16 %v556
    %v1941 = vunpack.c.l.b16 %v557
    %v1942 = vunpack.c.h.b16 %v557
    %v1943 = vunpack.c.l.b16 %v558
    %v1944 = vunpack.c.h.b16 %v558
    %v1945 = vunpack.c.l.b16 %v559
    %v1946 = vunpack.c.h.b16 %v559
    %v1947 = vunpack.c.l.b16 %v560
    %v1948 = vunpack.c.h.b16 %v560
    %v1949 = vunpack.c.l.b16 %v561
    %v1950 = vunpack.c.h.b16 %v561
    %v1951 = vunpack.c.l.b16 %v562
    %v1952 = vunpack.c.h.b16 %v562
    %v1953 = vunpack.c.l.b16 %v563
    %v1954 = vunpack.c.h.b16 %v563
    %v1955 = vunpack.c.l.b16 %v564
    %v1956 = vunpack.c.h.b16 %v564
    %v1957 = vunpack.c.l.b16 %v565
    %v1958 = vunpack.c.h.b16 %v565
    %v1959 = vunpack.c.l.b16 %v566
    %v1960 = vunpack.c.h.b16 %v566
    %v1961 = vunpack.c.l.b16 %v567
    %v1962 = vunpack.c.h.b16 %v567
    %v1963 = vunpack.c.l.b16 %v568
    %v1964 = vunpack.c.h.b16 %v568
    %v1965 = vunpack.c.l.b16 %v569
    %v1966 = vunpack.c.h.b16 %v569
    %v1967 = vunpack.c.l.b16 %v570
    %v1968 = vunpack.c.h.b16 %v570
    %v1969 = vpack.c.b16 %v1081, %v1073
    %v1970 = vpack.c.b16 %v1082, %v1074
    %v1971 = vpack.c.b16 %v1083, %v1075
    %v1972 = vpack.c.b16 %v1084, %v1076
    %v1973 = vpack.c.b16 %v1085, %v1077
    %v1974 = vpack.c.b16 %v1086, %v1078
    %v1975 = vpack.c.b16 %v1087, %v1079
    %v1976 = vpack.c.b16 %v1088, %v1080
    %v1977 = vpack.c.b16 %v1097, %v1089
    %v1978 = vpack.c.b16 %v1098, %v1090
    %v1979 = vpack.c.b16 %v1099, %v1091
    %v1980 = vpack.c.b16 %v1100, %v1092
    %v1981 = vpack.c.b16 %v1101, %v1093
    %v1982 = vpack.c.b16 %v1102, %v1094
    %v1983 = vpack.c.b16 %v1103, %v1095
    %v1984 = vpack.c.b16 %v1104, %v1096
    %v1985 = vpack.c.b16 %v1113, %v1105
    %v1986 = vpack.c.b16 %v1114, %v1106
    %v1987 = vpack.c.b16 %v1115, %v1107
    %v1988 = vpack.c.b16 %v1116, %v1108
    %v1989 = vpack.c.b16 %v1117, %v1109
    %v1990 = vpack.c.b16 %v1118, %v1110
    %v1991 = vpack.c.b16 %v1119, %v1111
    %v1992 = vpack.c.b16 %v1120, %v1112
    %v1993 = vpack.c.b16 %v1129, %v1121
    %v1994 = vpack.c.b16 %v1130, %v1122
    %v1995 = vpack.c.b16 %v1131, %v1123
    %v1996 = vpack.c.b16 %v1132, %v1124
    %v1997 = vpack.c.b16 %v1133, %v1125
    %v1998 = vpack.c.b16 %v1134, %v1126
    %v1999 = vpack.c.b16 %v1135, %v1127
    %v2000 = vpack.c.b16 %v1136, %v1128
    %v2001 = vpack.c.b16 %v1145, %v1137
    %v2002 = vpack.c.b16 %v1146, %v1138
    %v2003 = vpack.c.b16 %v1147, %v1139
    %v2004 = vpack.c.b16 %v1148, %v1140
    %v2005 = vpack.c.b16 %v1149, %v1141
    %v2006 = vpack.c.b16 %v1150, %v1142
    %v2007 = vpack.c.b16 %v1151, %v1143
    %v2008 = vpack.c.b16 %v1152, %v1144
    %v2009 = vpack.c.b16 %v1161, %v1153
    %v2010 = vpack.c.b16 %v1162, %v1154
    %v2011 = vpack.c.b16 %v1163, %v1155
    %v2012 = vpack.c.b16 %v1164, %v1156
    %v2013 = vpack.c.b16 %v1165, %v1157
    %v2014 = vpack.c.b16 %v1166, %v1158
    %v2015 = vpack.c.b16 %v1167, %v1159
    %v2016 = vpack.c.b16 %v1168, %v1160
    %v2017 = vpack.c.b16 %v1177, %v1169
    %v2018 = vpack.c.b16 %v1178, %v1170
    %v2019 = vpack.c.b16 %v1179, %v1171
    %v2020 = vpack.c.b16 %v1180, %v1172
    %v2021 = vpack.c.b16 %v1181, %v1173
    %v2022 = vpack.c.b16 %v1182, %v1174
    %v2023 = vpack.c.b16 %v1183, %v1175
    %v2024 = vpack.c.b16 %v1184, %v1176
    %v2025 = vpack.c.b16 %v1193, %v1185
    %v2026 = vpack.c.b16 %v1194, %v1186
    %v2027 = vpack.c.b16 %v1195, %v1187
    %v2028 = vpack.c.b16 %v1196, %v1188
    %v2029 = vpack.c.b16 %v1197, %v1189
    %v2030 = vpack.c.b16 %v1198, %v1190
    %v2031 = vpack.c.b16 %v1199, %v1191
    %v2032 = vpack.c.b16 %v1200, %v1192
    %v2033 = vpack.c.b16 %v1209, %v1201
    %v2034 = vpack.c.b16 %v1210, %v1202
    %v2035 = vpack.c.b16 %v1211, %v1203
    %v2036 = vpack.c.b16 %v1212, %v1204
    %v2037 = vpack.c.b16 %v1213, %v1205
    %v2038 = vpack.c.b16 %v1214, %v1206
    %v2039 = vpack.c.b16 %v1215, %v1207
    %v2040 = vpack.c.b16 %v1216, %v1208
    %v2041 = vpack.c.b16 %v1225, %v1217
    %v2042 = vpack.c.b16 %v1226, %v1218
    %v2043 = vpack.c.b16 %v1227, %v1219
    %v2044 = vpack.c.b16 %v1228, %v1220
    %v2045 = vpack.c.b16 %v1229, %v1221
    %v2046 = vpack.c.b16 %v1230, %v1222
    %v2047 = vpack.c.b16 %v1231, %v1223
    %v2048 = vpack.c.b16 %v1232, %v1224
    %v2049 = vpack.c.b16 %v1241, %v1233
    %v2050 = vpack.c.b16 %v1242, %v1234
    %v2051 = vpack.c.b16 %v1243, %v1235
    %v2052 = vpack.c.b16 %v1244, %v1236
    %v2053 = vpack.c.b16 %v1245, %v1237
    %v2054 = vpack.c.b16 %v1246, %v1238
    %v2055 = vpack.c.b16 %v1247, %v1239
    %v2056 = vpack.c.b16 %v1248, %v1240
    %v2057 = vpack.c.b16 %v1257, %v1249
    %v2058 = vpack.c.b16 %v1258, %v1250
    %v2059 = vpack.c.b16 %v1259, %v1251
    %v2060 = vpack.c.b16 %v1260, %v1252
    %v2061 = vpack.c.b16 %v1261, %v1253
    %v2062 = vpack.c.b16 %v1262, %v1254
    %v2063 = vpack.c.b16 %v1263, %v1255
    %v2064 = vpack.c.b16 %v1264, %v1256
    %v2065 = vpack.c.b16 %v1273, %v1265
    %v2066 = vpack.c.b16 %v1274, %v1266
    %v2067 = vpack.c.b16 %v1275, %v1267
    %v2068 = vpack.c.b16 %v1276, %v1268
    %v2069 = vpack.c.b16 %v1277, %v1269
    %v2070 = vpack.c.b16 %v1278, %v1270
    %v2071 = vpack.c.b16 %v1279, %v1271
    %v2072 = vpack.c.b16 %v1280, %v1272
    %v2073 = vpack.c.b16 %v1289, %v1281
    %v2074 = vpack.c.b16 %v1290, %v1282
    %v2075 = vpack.c.b16 %v1291, %v1283
    %v2076 = vpack.c.b16 %v1292, %v1284
    %v2077 = vpack.c.b16 %v1293, %v1285
    %v2078 = vpack.c.b16 %v1294, %v1286
    %v2079 = vpack.c.b16 %v1295, %v1287
    %v2080 = vpack.c.b16 %v1296, %v1288
    %v2081 = vpack.c.b16 %v1305, %v1297
    %v2082 = vpack.c.b16 %v1306, %v1298
    %v2083 = vpack.c.b16 %v1307, %v1299
    %v2084 = vpack.c.b16 %v1308, %v1300
    %v2085 = vpack.c.b16 %v1309, %v1301
    %v2086 = vpack.c.b16 %v1310, %v1302
    %v2087 = vpack.c.b16 %v1311, %v1303
    %v2088 = vpack.c.b16 %v1312, %v1304
    %v2089 = vpack.c.b16 %v1321, %v1313
    %v2090 = vpack.c.b16 %v1322, %v1314
    %v2091 = vpack.c.b16 %v1323, %v1315
    %v2092 = vpack.c.b16 %v1324, %v1316
    %v2093 = vpack.c.b16 %v1325, %v1317
    %v2094 = vpack.c.b16 %v1326, %v1318
    %v2095 = vpack.c.b16 %v1327, %v1319
    %v2096 = vpack.c.b16 %v1328, %v1320
    %v2097 = vpack.c.b16 %v1337, %v1329
    %v2098 = vpack.c.b16 %v1338, %v1330
    %v2099 = vpack.c.b16 %v1339, %v1331
    %v2100 = vpack.c.b16 %v1340, %v1332
    %v2101 = vpack.c.b16 %v1341, %v1333
    %v2102 = vpack.c.b16 %v1342, %v1334
    %v2103 = vpack.c.b16 %v1343, %v1335
    %v2104 = vpack.c.b16 %v1344, %v1336
    %v2105 = vpack.c.b16 %v1353, %v1345
    %v2106 = vpack.c.b16 %v1354, %v1346
    %v2107 = vpack.c.b16 %v1355, %v1347
    %v2108 = vpack.c.b16 %v1356, %v1348
    %v2109 = vpack.c.b16 %v1357, %v1349
    %v2110 = vpack.c.b16 %v1358, %v1350
    %v2111 = vpack.c.b16 %v1359, %v1351
    %v2112 = vpack.c.b16 %v1360, %v1352
    %v2113 = vpack.c.b16 %v1369, %v1361
    %v2114 = vpack.c.b16 %v1370, %v1362
    %v2115 = vpack.c.b16 %v1371, %v1363
    %v2116 = vpack.c.b16 %v1372, %v1364
    %v2117 = vpack.c.b16 %v1373, %v1365
    %v2118 = vpack.c.b16 %v1374, %v1366
    %v2119 = vpack.c.b16 %v1375, %v1367
    %v2120 = vpack.c.b16 %v1376, %v1368
    %v2121 = vpack.c.b16 %v1385, %v1377
    %v2122 = vpack.c.b16 %v1386, %v1378
    %v2123 = vpack.c.b16 %v1387, %v1379
    %v2124 = vpack.c.b16 %v1388, %v1380
    %v2125 = vpack.c.b16 %v1389, %v1381
    %v2126 = vpack.c.b16 %v1390, %v1382
    %v2127 = vpack.c.b16 %v1391, %v1383
    %v2128 = vpack.c.b16 %v1392, %v1384
    %v2129 = vpack.c.b16 %v1401, %v1393
    %v2130 = vpack.c.b16 %v1402, %v1394
    %v2131 = vpack.c.b16 %v1403, %v1395
    %v2132 = vpack.c.b16 %v1404, %v1396
    %v2133 = vpack.c.b16 %v1405, %v1397
    %v2134 = vpack.c.b16 %v1406, %v1398
    %v2135 = vpack.c.b16 %v1407, %v1399
    %v2136 = vpack.c.b16 %v1408, %v1400
    %v2137 = vpack.c.b16 %v1417, %v1409
    %v2138 = vpack.c.b16 %v1418, %v1410
    %v2139 = vpack.c.b16 %v1419, %v1411
    %v2140 = vpack.c.b16 %v1420, %v1412
    %v2141 = vpack.c.b16 %v1421, %v1413
    %v2142 = vpack.c.b16 %v1422, %v1414
    %v2143 = vpack.c.b16 %v1423, %v1415
    %v2144 = vpack.c.b16 %v1424, %v1416
    %v2145 = vpack.c.b16 %v1433, %v1425
    %v2146 = vpack.c.b16 %v1434, %v1426
    %v2147 = vpack.c.b16 %v1435, %v1427
    %v2148 = vpack.c.b16 %v1436, %v1428
    %v2149 = vpack.c.b16 %v1437, %v1429
    %v2150 = vpack.c.b16 %v1438, %v1430
    %v2151 = vpack.c.b16 %v1439, %v1431
    %v2152 = vpack.c.b16 %v1440, %v1432
    %v2153 = vpack.c.b16 %v1449, %v1441
    %v2154 = vpack.c.b16 %v1450, %v1442
    %v2155 = vpack.c.b16 %v1451, %v1443
    %v2156 = vpack.c.b16 %v1452, %v1444
    %v2157 = vpack.c.b16 %v1453, %v1445
    %v2158 = vpack.c.b16 %v1454, %v1446
    %v2159 = vpack.c.b16 %v1455, %v1447
    %v2160 = vpack.c.b16 %v1456, %v1448
    %v2161 = vpack.c.b16 %v1465, %v1457
    %v2162 = vpack.c.b16 %v1466, %v1458
    %v2163 = vpack.c.b16 %v1467, %v1459
    %v2164 = vpack.c.b16 %v1468, %v1460
    %v2165 = vpack.c.b16 %v1469, %v1461
    %v2166 = vpack.c.b16 %v1470, %v1462
    %v2167 = vpack.c.b16 %v1471, %v1463
    %v2168 = vpack.c.b16 %v1472, %v1464
    %v2169 = vpack.c.b16 %v1481, %v1473
    %v2170 = vpack.c.b16 %v1482, %v1474
    %v2171 = vpack.c.b16 %v1483, %v1475
    %v2172 = vpack.c.b16 %v1484, %v1476
    %v2173 = vpack.c.b16 %v1485, %v1477
    %v2174 = vpack.c.b16 %v1486, %v1478
    %v2175 = vpack.c.b16 %v1487, %v1479
    %v2176 = vpack.c.b16 %v1488, %v1480
    %v2177 = vpack.c.b16 %v1497, %v1489
    %v2178 = vpack.c.b16 %v1498, %v1490
    %v2179 = vpack.c.b16 %v1499, %v1491
    %v2180 = vpack.c.b16 %v1500, %v1492
    %v2181 = vpack.c.b16 %v1501, %v1493
    %v2182 = vpack.c.b16 %v1502, %v1494
    %v2183 = vpack.c.b16 %v1503, %v1495
    %v2184 = vpack.c.b16 %v1504, %v1496
    %v2185 = vpack.c.b16 %v1513, %v1505
    %v2186 = vpack.c.b16 %v1514, %v1506
    %v2187 = vpack.c.b16 %v1515, %v1507
    %v2188 = vpack.c.b16 %v1516, %v1508
    %v2189 = vpack.c.b16 %v1517, %v1509
    %v2190 = vpack.c.b16 %v1518, %v1510
    %v2191 = vpack.c.b16 %v1519, %v1511
    %v2192 = vpack.c.b16 %v1520, %v1512
    %v2193 = vpack.c.b16 %v1529, %v1521
    %v2194 = vpack.c.b16 %v1530, %v1522
    %v2195 = vpack.c.b16 %v1531, %v1523
    %v2196 = vpack.c.b16 %v1532, %v1524
    %v2197 = vpack.c.b16 %v1533, %v1525
    %v2198 = vpack.c.b16 %v1534, %v1526
    %v2199 = vpack.c.b16 %v1535, %v1527
    %v2200 = vpack.c.b16 %v1536, %v1528
    %v2201 = vpack.c.b16 %v1545, %v1537
    %v2202 = vpack.c.b16 %v1546, %v1538
    %v2203 = vpack.c.b16 %v1547, %v1539
    %v2204 = vpack.c.b16 %v1548, %v1540
    %v2205 = vpack.c.b16 %v1549, %v1541
    %v2206 = vpack.c.b16 %v1550, %v1542
    %v2207 = vpack.c.b16 %v1551, %v1543
    %v2208 = vpack.c.b16 %v1552, %v1544
    %v2209 = vpack.c.b16 %v1561, %v1553
    %v2210 = vpack.c.b16 %v1562, %v1554
    %v2211 = vpack.c.b16 %v1563, %v1555
    %v2212 = vpack.c.b16 %v1564, %v1556
    %v2213 = vpack.c.b16 %v1565, %v1557
    %v2214 = vpack.c.b16 %v1566, %v1558
    %v2215 = vpack.c.b16 %v1567, %v1559
    %v2216 = vpack.c.b16 %v1568, %v1560
    %v2217 = vpack.c.b16 %v1577, %v1569
    %v2218 = vpack.c.b16 %v1578, %v1570
    %v2219 = vpack.c.b16 %v1579, %v1571
    %v2220 = vpack.c.b16 %v1580, %v1572
    %v2221 = vpack.c.b16 %v1581, %v1573
    %v2222 = vpack.c.b16 %v1582, %v1574
    %v2223 = vpack.c.b16 %v1583, %v1575
    %v2224 = vpack.c.b16 %v1584, %v1576
    %v2225 = vpack.c.b16 %v1593, %v1585
    %v2226 = vpack.c.b16 %v1594, %v1586
    %v2227 = vpack.c.b16 %v1595, %v1587
    %v2228 = vpack.c.b16 %v1596, %v1588
    %v2229 = vpack.c.b16 %v1597, %v1589
    %v2230 = vpack.c.b16 %v1598, %v1590
    %v2231 = vpack.c.b16 %v1599, %v1591
    %v2232 = vpack.c.b16 %v1600, %v1592
    %v2233 = vpack.c.b16 %v1609, %v1601
    %v2234 = vpack.c.b16 %v1610, %v1602
    %v2235 = vpack.c.b16 %v1611, %v1603
    %v2236 = vpack.c.b16 %v1612, %v1604
    %v2237 = vpack.c.b16 %v1613, %v1605
    %v2238 = vpack.c.b16 %v1614, %v1606
    %v2239 = vpack.c.b16 %v1615, %v1607
    %v2240 = vpack.c.b16 %v1616, %v1608
    %v2241 = vpack.c.b16 %v1625, %v1617
    %v2242 = vpack.c.b16 %v1626, %v1618
    %v2243 = vpack.c.b16 %v1627, %v1619
    %v2244 = vpack.c.b16 %v1628, %v1620
    %v2245 = vpack.c.b16 %v1629, %v1621
    %v2246 = vpack.c.b16 %v1630, %v1622
    %v2247 = vpack.c.b16 %v1631, %v1623
    %v2248 = vpack.c.b16 %v1632, %v1624
    %v2249 = vpack.c.b16 %v1641, %v1633
    %v2250 = vpack.c.b16 %v1642, %v1634
    %v2251 = vpack.c.b16 %v1643, %v1635
    %v2252 = vpack.c.b16 %v1644, %v1636
    %v2253 = vpack.c.b16 %v1645, %v1637
    %v2254 = vpack.c.b16 %v1646, %v1638
    %v2255 = vpack.c.b16 %v1647, %v1639
    %v2256 = vpack.c.b16 %v1648, %v1640
    %v2257 = vpack.c.b16 %v1657, %v1649
    %v2258 = vpack.c.b16 %v1658, %v1650
    %v2259 = vpack.c.b16 %v1659, %v1651
    %v2260 = vpack.c.b16 %v1660, %v1652
    %v2261 = vpack.c.b16 %v1661, %v1653
    %v2262 = vpack.c.b16 %v1662, %v1654
    %v2263 = vpack.c.b16 %v1663, %v1655
    %v2264 = vpack.c.b16 %v1664, %v1656
    %v2265 = vpack.c.b16 %v1673, %v1665
    %v2266 = vpack.c.b16 %v1674, %v1666
    %v2267 = vpack.c.b16 %v1675, %v1667
    %v2268 = vpack.c.b16 %v1676, %v1668
    %v2269 = vpack.c.b16 %v1677, %v1669
    %v2270 = vpack.c.b16 %v1678, %v1670
    %v2271 = vpack.c.b16 %v1679, %v1671
    %v2272 = vpack.c.b16 %v1680, %v1672
    %v2273 = vpack.c.b16 %v1689, %v1681
    %v2274 = vpack.c.b16 %v1690, %v1682
    %v2275 = vpack.c.b16 %v1691, %v1683
    %v2276 = vpack.c.b16 %v1692, %v1684
    %v2277 = vpack.c.b16 %v1693, %v1685
    %v2278 = vpack.c.b16 %v1694, %v1686
    %v2279 = vpack.c.b16 %v1695, %v1687
    %v2280 = vpack.c.b16 %v1696, %v1688
    %v2281 = vpack.c.b16 %v1705, %v1697
    %v2282 = vpack.c.b16 %v1706, %v1698
    %v2283 = vpack.c.b16 %v1707, %v1699
    %v2284 = vpack.c.b16 %v1708, %v1700
    %v2285 = vpack.c.b16 %v1709, %v1701
    %v2286 = vpack.c.b16 %v1710, %v1702
    %v2287 = vpack.c.b16 %v1711, %v1703
    %v2288 = vpack.c.b16 %v1712, %v1704
    %v2289 = vpack.c.b16 %v1721, %v1713
    %v2290 = vpack.c.b16 %v1722, %v1714
    %v2291 = vpack.c.b16 %v1723, %v1715
    %v2292 = vpack.c.b16 %v1724, %v1716
    %v2293 = vpack.c.b16 %v1725, %v1717
    %v2294 = vpack.c.b16 %v1726, %v1718
    %v2295 = vpack.c.b16 %v1727, %v1719
    %v2296 = vpack.c.b16 %v1728, %v1720
    %v2297 = vpack.c.b16 %v1737, %v1729
    %v2298 = vpack.c.b16 %v1738, %v1730
    %v2299 = vpack.c.b16 %v1739, %v1731
    %v2300 = vpack.c.b16 %v1740, %v1732
    %v2301 = vpack.c.b16 %v1741, %v1733
    %v2302 = vpack.c.b16 %v1742, %v1734
    %v2303 = vpack.c.b16 %v1743, %v1735
    %v2304 = vpack.c.b16 %v1744, %v1736
    %v2305 = vpack.c.b16 %v1753, %v1745
    %v2306 = vpack.c.b16 %v1754, %v1746
    %v2307 = vpack.c.b16 %v1755, %v1747
    %v2308 = vpack.c.b16 %v1756, %v1748
    %v2309 = vpack.c.b16 %v1757, %v1749
    %v2310 = vpack.c.b16 %v1758, %v1750
    %v2311 = vpack.c.b16 %v1759, %v1751
    %v2312 = vpack.c.b16 %v1760, %v1752
    %v2313 = vpack.c.b16 %v1769, %v1761
    %v2314 = vpack.c.b16 %v1770, %v1762
    %v2315 = vpack.c.b16 %v1771, %v1763
    %v2316 = vpack.c.b16 %v1772, %v1764
    %v2317 = vpack.c.b16 %v1773, %v1765
    %v2318 = vpack.c.b16 %v1774, %v1766
    %v2319 = vpack.c.b16 %v1775, %v1767
    %v2320 = vpack.c.b16 %v1776, %v1768
    %v2321 = vpack.c.b16 %v1785, %v1777
    %v2322 = vpack.c.b16 %v1786, %v1778
    %v2323 = vpack.c.b16 %v1787, %v1779
    %v2324 = vpack.c.b16 %v1788, %v1780
    %v2325 = vpack.c.b16 %v1789, %v1781
    %v2326 = vpack.c.b16 %v1790, %v1782
    %v2327 = vpack.c.b16 %v1791, %v1783
    %v2328 = vpack.c.b16 %v1792, %v1784
    %v2329 = vpack.c.b16 %v1801, %v1793
    %v2330 = vpack.c.b16 %v1802, %v1794
    %v2331 = vpack.c.b16 %v1803, %v1795
    %v2332 = vpack.c.b16 %v1804, %v1796
    %v2333 = vpack.c.b16 %v1805, %v1797
    %v2334 = vpack.c.b16 %v1806, %v1798
    %v2335 = vpack.c.b16 %v1807, %v1799
    %v2336 = vpack.c.b16 %v1808, %v1800
    %v2337 = vpack.c.b16 %v1817, %v1809
    %v2338 = vpack.c.b16 %v1818, %v1810
    %v2339 = vpack.c.b16 %v1819, %v1811
    %v2340 = vpack.c.b16 %v1820, %v1812
    %v2341 = vpack.c.b16 %v1821, %v1813
    %v2342 = vpack.c.b16 %v1822, %v1814
    %v2343 = vpack.c.b16 %v1823, %v1815
    %v2344 = vpack.c.b16 %v1824, %v1816
    %v2345 = vpack.c.b16 %v1833, %v1825
    %v2346 = vpack.c.b16 %v1834, %v1826
    %v2347 = vpack.c.b16 %v1835, %v1827
    %v2348 = vpack.c.b16 %v1836, %v1828
    %v2349 = vpack.c.b16 %v1837, %v1829
    %v2350 = vpack.c.b16 %v1838, %v1830
    %v2351 = vpack.c.b16 %v1839, %v1831
    %v2352 = vpack.c.b16 %v1840, %v1832
    %v2353 = vpack.c.b16 %v1849, %v1841
    %v2354 = vpack.c.b16 %v1850, %v1842
    %v2355 = vpack.c.b16 %v1851, %v1843
    %v2356 = vpack.c.b16 %v1852, %v1844
    %v2357 = vpack.c.b16 %v1853, %v1845
    %v2358 = vpack.c.b16 %v1854, %v1846
    %v2359 = vpack.c.b16 %v1855, %v1847
    %v2360 = vpack.c.b16 %v1856, %v1848
    %v2361 = vpack.c.b16 %v1865, %v1857
    %v2362 = vpack.c.b16 %v1866, %v1858
    %v2363 = vpack.c.b16 %v1867, %v1859
    %v2364 = vpack.c.b16 %v1868, %v1860
    %v2365 = vpack.c.b16 %v1869, %v1861
    %v2366 = vpack.c.b16 %v1870, %v1862
    %v2367 = vpack.c.b16 %v1871, %v1863
    %v2368 = vpack.c.b16 %v1872, %v1864
    %v2369 = vpack.c.b16 %v1881, %v1873
    %v2370 = vpack.c.b16 %v1882, %v1874
    %v2371 = vpack.c.b16 %v1883, %v1875
    %v2372 = vpack.c.b16 %v1884, %v1876
    %v2373 = vpack.c.b16 %v1885, %v1877
    %v2374 = vpack.c.b16 %v1886, %v1878
    %v2375 = vpack.c.b16 %v1887, %v1879
    %v2376 = vpack.c.b16 %v1888, %v1880
    %v2377 = vpack.c.b16 %v1897, %v1889
    %v2378 = vpack.c.b16 %v1898, %v1890
    %v2379 = vpack.c.b16 %v1899, %v1891
    %v2380 = vpack.c.b16 %v1900, %v1892
    %v2381 = vpack.c.b16 %v1901, %v1893
    %v2382 = vpack.c.b16 %v1902, %v1894
    %v2383 = vpack.c.b16 %v1903, %v1895
    %v2384 = vpack.c.b16 %v1904, %v1896
    %v2385 = vpack.c.b16 %v1913, %v1905
    %v2386 = vpack.c.b16 %v1914, %v1906
    %v2387 = vpack.c.b16 %v1915, %v1907
    %v2388 = vpack.c.b16 %v1916, %v1908
    %v2389 = vpack.c.b16 %v1917, %v1909
    %v2390 = vpack.c.b16 %v1918, %v1910
    %v2391 = vpack.c.b16 %v1919, %v1911
    %v2392 = vpack.c.b16 %v1920, %v1912
    %v2393 = vpack.c.b16 %v1929, %v1921
    %v2394 = vpack.c.b16 %v1930, %v1922
    %v2395 = vpack.c.b16 %v1931, %v1923
    %v2396 = vpack.c.b16 %v1932, %v1924
    %v2397 = vpack.c.b16 %v1933, %v1925
    %v2398 = vpack.c.b16 %v1934, %v1926
    %v2399 = vpack.c.b16 %v1935, %v1927
    %v2400 = vpack.c.b16 %v1936, %v1928
    %v2401 = vpack.c.b16 %v1945, %v1937
    %v2402 = vpack.c.b16 %v1946, %v1938
    %v2403 = vpack.c.b16 %v1947, %v1939
    %v2404 = vpack.c.b16 %v1948, %v1940
    %v2405 = vpack.c.b16 %v1949, %v1941
    %v2406 = vpack.c.b16 %v1950, %v1942
    %v2407 = vpack.c.b16 %v1951, %v1943
    %v2408 = vpack.c.b16 %v1952, %v1944
    %v2409 = vpack.c.b16 %v1961, %v1953
    %v2410 = vpack.c.b16 %v1962, %v1954
    %v2411 = vpack.c.b16 %v1963, %v1955
    %v2412 = vpack.c.b16 %v1964, %v1956
    %v2413 = vpack.c.b16 %v1965, %v1957
    %v2414 = vpack.c.b16 %v1966, %v1958
    %v2415 = vpack.c.b16 %v1967, %v1959
    %v2416 = vpack.c.b16 %v1968, %v1960
    %2865 = vmatpush.bf16.msra.mxu0 %v2025
    %2866 = vmatpush.bf16.msra.mxu0 %v2017
    %2867 = vmatpush.bf16.msra.mxu0 %v2009
    %2868 = vmatpush.bf16.msra.mxu0 %v2001
    %2869 = vmatpush.bf16.msra.mxu0 %v1993
    %2870 = vmatpush.bf16.msra.mxu0 %v1985
    %2871 = vmatpush.bf16.msra.mxu0 %v1977
    %2872 = vmatpush.bf16.msra.mxu0 %v1969
    %2873 = vmatmul.bf16.gmra.mxu0 %v611
    %v2874 = vpop.f32.mrf.mxu0
    %v2875 = vadd.f32 %v573, %v2874
    %v2876 = vpop.f32.mrf.mxu0
    %v2877 = vadd.f32 %v573, %v2876
    %2878 = vdwg.mxu0
    %2879 = vmatpush.bf16.msra.mxu0 %v2089
    %2880 = vmatpush.bf16.msra.mxu0 %v2081
    %2881 = vmatpush.bf16.msra.mxu0 %v2073
    %2882 = vmatpush.bf16.msra.mxu0 %v2065
    %2883 = vmatpush.bf16.msra.mxu0 %v2057
    %2884 = vmatpush.bf16.msra.mxu0 %v2049
    %2885 = vmatpush.bf16.msra.mxu0 %v2041
    %2886 = vmatpush.bf16.msra.mxu0 %v2033
    %2887 = vmatmul.bf16.gmra.mxu0 %v612
    %v2888 = vpop.f32.mrf.mxu0
    %v2889 = vadd.f32 %v2875, %v2888
    %v2890 = vpop.f32.mrf.mxu0
    %v2891 = vadd.f32 %v2877, %v2890
    %2892 = vdwg.mxu0
    %2893 = vmatpush.bf16.msra.mxu0 %v2153
    %2894 = vmatpush.bf16.msra.mxu0 %v2145
    %2895 = vmatpush.bf16.msra.mxu0 %v2137
    %2896 = vmatpush.bf16.msra.mxu0 %v2129
    %2897 = vmatpush.bf16.msra.mxu0 %v2121
    %2898 = vmatpush.bf16.msra.mxu0 %v2113
    %2899 = vmatpush.bf16.msra.mxu0 %v2105
    %2900 = vmatpush.bf16.msra.mxu0 %v2097
    %2901 = vmatmul.bf16.gmra.mxu0 %v613
    %v2902 = vpop.f32.mrf.mxu0
    %v2903 = vadd.f32 %v2889, %v2902
    %v2904 = vpop.f32.mrf.mxu0
    %v2905 = vadd.f32 %v2891, %v2904
    %2906 = vdwg.mxu0
    %2907 = vmatpush.bf16.msra.mxu0 %v2217
    %2908 = vmatpush.bf16.msra.mxu0 %v2209
    %2909 = vmatpush.bf16.msra.mxu0 %v2201
    %2910 = vmatpush.bf16.msra.mxu0 %v2193
    %2911 = vmatpush.bf16.msra.mxu0 %v2185
    %2912 = vmatpush.bf16.msra.mxu0 %v2177
    %2913 = vmatpush.bf16.msra.mxu0 %v2169
    %2914 = vmatpush.bf16.msra.mxu0 %v2161
    %2915 = vmatmul.bf16.gmra.mxu0 %v614
    %v2916 = vpop.f32.mrf.mxu0
    %v2917 = vadd.f32 %v2903, %v2916
    %v2918 = vpop.f32.mrf.mxu0
    %v2919 = vadd.f32 %v2905, %v2918
    %2920 = vdwg.mxu0
    %2921 = vmatpush.bf16.msra.mxu0 %v2281
    %2922 = vmatpush.bf16.msra.mxu0 %v2273
    %2923 = vmatpush.bf16.msra.mxu0 %v2265
    %2924 = vmatpush.bf16.msra.mxu0 %v2257
    %2925 = vmatpush.bf16.msra.mxu0 %v2249
    %2926 = vmatpush.bf16.msra.mxu0 %v2241
    %2927 = vmatpush.bf16.msra.mxu0 %v2233
    %2928 = vmatpush.bf16.msra.mxu0 %v2225
    %2929 = vmatmul.bf16.gmra.mxu0 %v615
    %v2930 = vpop.f32.mrf.mxu0
    %v2931 = vadd.f32 %v2917, %v2930
    %v2932 = vpop.f32.mrf.mxu0
    %v2933 = vadd.f32 %v2919, %v2932
    %2934 = vdwg.mxu0
    %2935 = vmatpush.bf16.msra.mxu0 %v2345
    %2936 = vmatpush.bf16.msra.mxu0 %v2337
    %2937 = vmatpush.bf16.msra.mxu0 %v2329
    %2938 = vmatpush.bf16.msra.mxu0 %v2321
    %2939 = vmatpush.bf16.msra.mxu0 %v2313
    %2940 = vmatpush.bf16.msra.mxu0 %v2305
    %2941 = vmatpush.bf16.msra.mxu0 %v2297
    %2942 = vmatpush.bf16.msra.mxu0 %v2289
    %2943 = vmatmul.bf16.gmra.mxu0 %v616
    %v2944 = vpop.f32.mrf.mxu0
    %v2945 = vadd.f32 %v2931, %v2944
    %v2946 = vpop.f32.mrf.mxu0
    %v2947 = vadd.f32 %v2933, %v2946
    %2948 = vdwg.mxu0
    %2949 = vmatpush.bf16.msra.mxu0 %v2409
    %2950 = vmatpush.bf16.msra.mxu0 %v2401
    %2951 = vmatpush.bf16.msra.mxu0 %v2393
    %2952 = vmatpush.bf16.msra.mxu0 %v2385
    %2953 = vmatpush.bf16.msra.mxu0 %v2377
    %2954 = vmatpush.bf16.msra.mxu0 %v2369
    %2955 = vmatpush.bf16.msra.mxu0 %v2361
    %2956 = vmatpush.bf16.msra.mxu0 %v2353
    %2957 = vmatmul.bf16.gmra.mxu0 %v617
    %v2958 = vpop.f32.mrf.mxu0
    %v2959 = vadd.f32 %v2945, %v2958
    %v2960 = vpop.f32.mrf.mxu0
    %v2961 = vadd.f32 %v2947, %v2960
    %2962 = vdwg.mxu0
    %2963 = vmatpush.bf16.msra.mxu0 %v2026
    %2964 = vmatpush.bf16.msra.mxu0 %v2018
    %2965 = vmatpush.bf16.msra.mxu0 %v2010
    %2966 = vmatpush.bf16.msra.mxu0 %v2002
    %2967 = vmatpush.bf16.msra.mxu0 %v1994
    %2968 = vmatpush.bf16.msra.mxu0 %v1986
    %2969 = vmatpush.bf16.msra.mxu0 %v1978
    %2970 = vmatpush.bf16.msra.mxu0 %v1970
    %2971 = vmatmul.bf16.gmra.mxu0 %v611
    %v2972 = vpop.f32.mrf.mxu0
    %v2973 = vadd.f32 %v574, %v2972
    %v2974 = vpop.f32.mrf.mxu0
    %v2975 = vadd.f32 %v574, %v2974
    %2976 = vdwg.mxu0
    %2977 = vmatpush.bf16.msra.mxu0 %v2090
    %2978 = vmatpush.bf16.msra.mxu0 %v2082
    %2979 = vmatpush.bf16.msra.mxu0 %v2074
    %2980 = vmatpush.bf16.msra.mxu0 %v2066
    %2981 = vmatpush.bf16.msra.mxu0 %v2058
    %2982 = vmatpush.bf16.msra.mxu0 %v2050
    %2983 = vmatpush.bf16.msra.mxu0 %v2042
    %2984 = vmatpush.bf16.msra.mxu0 %v2034
    %2985 = vmatmul.bf16.gmra.mxu0 %v612
    %v2986 = vpop.f32.mrf.mxu0
    %v2987 = vadd.f32 %v2973, %v2986
    %v2988 = vpop.f32.mrf.mxu0
    %v2989 = vadd.f32 %v2975, %v2988
    %2990 = vdwg.mxu0
    %2991 = vmatpush.bf16.msra.mxu0 %v2154
    %2992 = vmatpush.bf16.msra.mxu0 %v2146
    %2993 = vmatpush.bf16.msra.mxu0 %v2138
    %2994 = vmatpush.bf16.msra.mxu0 %v2130
    %2995 = vmatpush.bf16.msra.mxu0 %v2122
    %2996 = vmatpush.bf16.msra.mxu0 %v2114
    %2997 = vmatpush.bf16.msra.mxu0 %v2106
    %2998 = vmatpush.bf16.msra.mxu0 %v2098
    %2999 = vmatmul.bf16.gmra.mxu0 %v613
    %v3000 = vpop.f32.mrf.mxu0
    %v3001 = vadd.f32 %v2987, %v3000
    %v3002 = vpop.f32.mrf.mxu0
    %v3003 = vadd.f32 %v2989, %v3002
    %3004 = vdwg.mxu0
    %3005 = vmatpush.bf16.msra.mxu0 %v2218
    %3006 = vmatpush.bf16.msra.mxu0 %v2210
    %3007 = vmatpush.bf16.msra.mxu0 %v2202
    %3008 = vmatpush.bf16.msra.mxu0 %v2194
    %3009 = vmatpush.bf16.msra.mxu0 %v2186
    %3010 = vmatpush.bf16.msra.mxu0 %v2178
    %3011 = vmatpush.bf16.msra.mxu0 %v2170
    %3012 = vmatpush.bf16.msra.mxu0 %v2162
    %3013 = vmatmul.bf16.gmra.mxu0 %v614
    %v3014 = vpop.f32.mrf.mxu0
    %v3015 = vadd.f32 %v3001, %v3014
    %v3016 = vpop.f32.mrf.mxu0
    %v3017 = vadd.f32 %v3003, %v3016
    %3018 = vdwg.mxu0
    %3019 = vmatpush.bf16.msra.mxu0 %v2282
    %3020 = vmatpush.bf16.msra.mxu0 %v2274
    %3021 = vmatpush.bf16.msra.mxu0 %v2266
    %3022 = vmatpush.bf16.msra.mxu0 %v2258
    %3023 = vmatpush.bf16.msra.mxu0 %v2250
    %3024 = vmatpush.bf16.msra.mxu0 %v2242
    %3025 = vmatpush.bf16.msra.mxu0 %v2234
    %3026 = vmatpush.bf16.msra.mxu0 %v2226
    %3027 = vmatmul.bf16.gmra.mxu0 %v615
    %v3028 = vpop.f32.mrf.mxu0
    %v3029 = vadd.f32 %v3015, %v3028
    %v3030 = vpop.f32.mrf.mxu0
    %v3031 = vadd.f32 %v3017, %v3030
    %3032 = vdwg.mxu0
    %3033 = vmatpush.bf16.msra.mxu0 %v2346
    %3034 = vmatpush.bf16.msra.mxu0 %v2338
    %3035 = vmatpush.bf16.msra.mxu0 %v2330
    %3036 = vmatpush.bf16.msra.mxu0 %v2322
    %3037 = vmatpush.bf16.msra.mxu0 %v2314
    %3038 = vmatpush.bf16.msra.mxu0 %v2306
    %3039 = vmatpush.bf16.msra.mxu0 %v2298
    %3040 = vmatpush.bf16.msra.mxu0 %v2290
    %3041 = vmatmul.bf16.gmra.mxu0 %v616
    %v3042 = vpop.f32.mrf.mxu0
    %v3043 = vadd.f32 %v3029, %v3042
    %v3044 = vpop.f32.mrf.mxu0
    %v3045 = vadd.f32 %v3031, %v3044
    %3046 = vdwg.mxu0
    %3047 = vmatpush.bf16.msra.mxu0 %v2410
    %3048 = vmatpush.bf16.msra.mxu0 %v2402
    %3049 = vmatpush.bf16.msra.mxu0 %v2394
    %3050 = vmatpush.bf16.msra.mxu0 %v2386
    %3051 = vmatpush.bf16.msra.mxu0 %v2378
    %3052 = vmatpush.bf16.msra.mxu0 %v2370
    %3053 = vmatpush.bf16.msra.mxu0 %v2362
    %3054 = vmatpush.bf16.msra.mxu0 %v2354
    %3055 = vmatmul.bf16.gmra.mxu0 %v617
    %v3056 = vpop.f32.mrf.mxu0
    %v3057 = vadd.f32 %v3043, %v3056
    %v3058 = vpop.f32.mrf.mxu0
    %v3059 = vadd.f32 %v3045, %v3058
    %3060 = vdwg.mxu0
    %3061 = vmatpush.bf16.msra.mxu0 %v2027
    %3062 = vmatpush.bf16.msra.mxu0 %v2019
    %3063 = vmatpush.bf16.msra.mxu0 %v2011
    %3064 = vmatpush.bf16.msra.mxu0 %v2003
    %3065 = vmatpush.bf16.msra.mxu0 %v1995
    %3066 = vmatpush.bf16.msra.mxu0 %v1987
    %3067 = vmatpush.bf16.msra.mxu0 %v1979
    %3068 = vmatpush.bf16.msra.mxu0 %v1971
    %3069 = vmatmul.bf16.gmra.mxu0 %v611
    %v3070 = vpop.f32.mrf.mxu0
    %v3071 = vadd.f32 %v575, %v3070
    %v3072 = vpop.f32.mrf.mxu0
    %v3073 = vadd.f32 %v575, %v3072
    %3074 = vdwg.mxu0
    %3075 = vmatpush.bf16.msra.mxu0 %v2091
    %3076 = vmatpush.bf16.msra.mxu0 %v2083
    %3077 = vmatpush.bf16.msra.mxu0 %v2075
    %3078 = vmatpush.bf16.msra.mxu0 %v2067
    %3079 = vmatpush.bf16.msra.mxu0 %v2059
    %3080 = vmatpush.bf16.msra.mxu0 %v2051
    %3081 = vmatpush.bf16.msra.mxu0 %v2043
    %3082 = vmatpush.bf16.msra.mxu0 %v2035
    %3083 = vmatmul.bf16.gmra.mxu0 %v612
    %v3084 = vpop.f32.mrf.mxu0
    %v3085 = vadd.f32 %v3071, %v3084
    %v3086 = vpop.f32.mrf.mxu0
    %v3087 = vadd.f32 %v3073, %v3086
    %3088 = vdwg.mxu0
    %3089 = vmatpush.bf16.msra.mxu0 %v2155
    %3090 = vmatpush.bf16.msra.mxu0 %v2147
    %3091 = vmatpush.bf16.msra.mxu0 %v2139
    %3092 = vmatpush.bf16.msra.mxu0 %v2131
    %3093 = vmatpush.bf16.msra.mxu0 %v2123
    %3094 = vmatpush.bf16.msra.mxu0 %v2115
    %3095 = vmatpush.bf16.msra.mxu0 %v2107
    %3096 = vmatpush.bf16.msra.mxu0 %v2099
    %3097 = vmatmul.bf16.gmra.mxu0 %v613
    %v3098 = vpop.f32.mrf.mxu0
    %v3099 = vadd.f32 %v3085, %v3098
    %v3100 = vpop.f32.mrf.mxu0
    %v3101 = vadd.f32 %v3087, %v3100
    %3102 = vdwg.mxu0
    %3103 = vmatpush.bf16.msra.mxu0 %v2219
    %3104 = vmatpush.bf16.msra.mxu0 %v2211
    %3105 = vmatpush.bf16.msra.mxu0 %v2203
    %3106 = vmatpush.bf16.msra.mxu0 %v2195
    %3107 = vmatpush.bf16.msra.mxu0 %v2187
    %3108 = vmatpush.bf16.msra.mxu0 %v2179
    %3109 = vmatpush.bf16.msra.mxu0 %v2171
    %3110 = vmatpush.bf16.msra.mxu0 %v2163
    %3111 = vmatmul.bf16.gmra.mxu0 %v614
    %v3112 = vpop.f32.mrf.mxu0
    %v3113 = vadd.f32 %v3099, %v3112
    %v3114 = vpop.f32.mrf.mxu0
    %v3115 = vadd.f32 %v3101, %v3114
    %3116 = vdwg.mxu0
    %3117 = vmatpush.bf16.msra.mxu0 %v2283
    %3118 = vmatpush.bf16.msra.mxu0 %v2275
    %3119 = vmatpush.bf16.msra.mxu0 %v2267
    %3120 = vmatpush.bf16.msra.mxu0 %v2259
    %3121 = vmatpush.bf16.msra.mxu0 %v2251
    %3122 = vmatpush.bf16.msra.mxu0 %v2243
    %3123 = vmatpush.bf16.msra.mxu0 %v2235
    %3124 = vmatpush.bf16.msra.mxu0 %v2227
    %3125 = vmatmul.bf16.gmra.mxu0 %v615
    %v3126 = vpop.f32.mrf.mxu0
    %v3127 = vadd.f32 %v3113, %v3126
    %v3128 = vpop.f32.mrf.mxu0
    %v3129 = vadd.f32 %v3115, %v3128
    %3130 = vdwg.mxu0
    %3131 = vmatpush.bf16.msra.mxu0 %v2347
    %3132 = vmatpush.bf16.msra.mxu0 %v2339
    %3133 = vmatpush.bf16.msra.mxu0 %v2331
    %3134 = vmatpush.bf16.msra.mxu0 %v2323
    %3135 = vmatpush.bf16.msra.mxu0 %v2315
    %3136 = vmatpush.bf16.msra.mxu0 %v2307
    %3137 = vmatpush.bf16.msra.mxu0 %v2299
    %3138 = vmatpush.bf16.msra.mxu0 %v2291
    %3139 = vmatmul.bf16.gmra.mxu0 %v616
    %v3140 = vpop.f32.mrf.mxu0
    %v3141 = vadd.f32 %v3127, %v3140
    %v3142 = vpop.f32.mrf.mxu0
    %v3143 = vadd.f32 %v3129, %v3142
    %3144 = vdwg.mxu0
    %3145 = vmatpush.bf16.msra.mxu0 %v2411
    %3146 = vmatpush.bf16.msra.mxu0 %v2403
    %3147 = vmatpush.bf16.msra.mxu0 %v2395
    %3148 = vmatpush.bf16.msra.mxu0 %v2387
    %3149 = vmatpush.bf16.msra.mxu0 %v2379
    %3150 = vmatpush.bf16.msra.mxu0 %v2371
    %3151 = vmatpush.bf16.msra.mxu0 %v2363
    %3152 = vmatpush.bf16.msra.mxu0 %v2355
    %3153 = vmatmul.bf16.gmra.mxu0 %v617
    %v3154 = vpop.f32.mrf.mxu0
    %v3155 = vadd.f32 %v3141, %v3154
    %v3156 = vpop.f32.mrf.mxu0
    %v3157 = vadd.f32 %v3143, %v3156
    %3158 = vdwg.mxu0
    %3159 = vmatpush.bf16.msra.mxu0 %v2028
    %3160 = vmatpush.bf16.msra.mxu0 %v2020
    %3161 = vmatpush.bf16.msra.mxu0 %v2012
    %3162 = vmatpush.bf16.msra.mxu0 %v2004
    %3163 = vmatpush.bf16.msra.mxu0 %v1996
    %3164 = vmatpush.bf16.msra.mxu0 %v1988
    %3165 = vmatpush.bf16.msra.mxu0 %v1980
    %3166 = vmatpush.bf16.msra.mxu0 %v1972
    %3167 = vmatmul.bf16.gmra.mxu0 %v611
    %v3168 = vpop.f32.mrf.mxu0
    %v3169 = vadd.f32 %v576, %v3168
    %v3170 = vpop.f32.mrf.mxu0
    %v3171 = vadd.f32 %v576, %v3170
    %3172 = vdwg.mxu0
    %3173 = vmatpush.bf16.msra.mxu0 %v2092
    %3174 = vmatpush.bf16.msra.mxu0 %v2084
    %3175 = vmatpush.bf16.msra.mxu0 %v2076
    %3176 = vmatpush.bf16.msra.mxu0 %v2068
    %3177 = vmatpush.bf16.msra.mxu0 %v2060
    %3178 = vmatpush.bf16.msra.mxu0 %v2052
    %3179 = vmatpush.bf16.msra.mxu0 %v2044
    %3180 = vmatpush.bf16.msra.mxu0 %v2036
    %3181 = vmatmul.bf16.gmra.mxu0 %v612
    %v3182 = vpop.f32.mrf.mxu0
    %v3183 = vadd.f32 %v3169, %v3182
    %v3184 = vpop.f32.mrf.mxu0
    %v3185 = vadd.f32 %v3171, %v3184
    %3186 = vdwg.mxu0
    %3187 = vmatpush.bf16.msra.mxu0 %v2156
    %3188 = vmatpush.bf16.msra.mxu0 %v2148
    %3189 = vmatpush.bf16.msra.mxu0 %v2140
    %3190 = vmatpush.bf16.msra.mxu0 %v2132
    %3191 = vmatpush.bf16.msra.mxu0 %v2124
    %3192 = vmatpush.bf16.msra.mxu0 %v2116
    %3193 = vmatpush.bf16.msra.mxu0 %v2108
    %3194 = vmatpush.bf16.msra.mxu0 %v2100
    %3195 = vmatmul.bf16.gmra.mxu0 %v613
    %v3196 = vpop.f32.mrf.mxu0
    %v3197 = vadd.f32 %v3183, %v3196
    %v3198 = vpop.f32.mrf.mxu0
    %v3199 = vadd.f32 %v3185, %v3198
    %3200 = vdwg.mxu0
    %3201 = vmatpush.bf16.msra.mxu0 %v2220
    %3202 = vmatpush.bf16.msra.mxu0 %v2212
    %3203 = vmatpush.bf16.msra.mxu0 %v2204
    %3204 = vmatpush.bf16.msra.mxu0 %v2196
    %3205 = vmatpush.bf16.msra.mxu0 %v2188
    %3206 = vmatpush.bf16.msra.mxu0 %v2180
    %3207 = vmatpush.bf16.msra.mxu0 %v2172
    %3208 = vmatpush.bf16.msra.mxu0 %v2164
    %3209 = vmatmul.bf16.gmra.mxu0 %v614
    %v3210 = vpop.f32.mrf.mxu0
    %v3211 = vadd.f32 %v3197, %v3210
    %v3212 = vpop.f32.mrf.mxu0
    %v3213 = vadd.f32 %v3199, %v3212
    %3214 = vdwg.mxu0
    %3215 = vmatpush.bf16.msra.mxu0 %v2284
    %3216 = vmatpush.bf16.msra.mxu0 %v2276
    %3217 = vmatpush.bf16.msra.mxu0 %v2268
    %3218 = vmatpush.bf16.msra.mxu0 %v2260
    %3219 = vmatpush.bf16.msra.mxu0 %v2252
    %3220 = vmatpush.bf16.msra.mxu0 %v2244
    %3221 = vmatpush.bf16.msra.mxu0 %v2236
    %3222 = vmatpush.bf16.msra.mxu0 %v2228
    %3223 = vmatmul.bf16.gmra.mxu0 %v615
    %v3224 = vpop.f32.mrf.mxu0
    %v3225 = vadd.f32 %v3211, %v3224
    %v3226 = vpop.f32.mrf.mxu0
    %v3227 = vadd.f32 %v3213, %v3226
    %3228 = vdwg.mxu0
    %3229 = vmatpush.bf16.msra.mxu0 %v2348
    %3230 = vmatpush.bf16.msra.mxu0 %v2340
    %3231 = vmatpush.bf16.msra.mxu0 %v2332
    %3232 = vmatpush.bf16.msra.mxu0 %v2324
    %3233 = vmatpush.bf16.msra.mxu0 %v2316
    %3234 = vmatpush.bf16.msra.mxu0 %v2308
    %3235 = vmatpush.bf16.msra.mxu0 %v2300
    %3236 = vmatpush.bf16.msra.mxu0 %v2292
    %3237 = vmatmul.bf16.gmra.mxu0 %v616
    %v3238 = vpop.f32.mrf.mxu0
    %v3239 = vadd.f32 %v3225, %v3238
    %v3240 = vpop.f32.mrf.mxu0
    %v3241 = vadd.f32 %v3227, %v3240
    %3242 = vdwg.mxu0
    %3243 = vmatpush.bf16.msra.mxu0 %v2412
    %3244 = vmatpush.bf16.msra.mxu0 %v2404
    %3245 = vmatpush.bf16.msra.mxu0 %v2396
    %3246 = vmatpush.bf16.msra.mxu0 %v2388
    %3247 = vmatpush.bf16.msra.mxu0 %v2380
    %3248 = vmatpush.bf16.msra.mxu0 %v2372
    %3249 = vmatpush.bf16.msra.mxu0 %v2364
    %3250 = vmatpush.bf16.msra.mxu0 %v2356
    %3251 = vmatmul.bf16.gmra.mxu0 %v617
    %v3252 = vpop.f32.mrf.mxu0
    %v3253 = vadd.f32 %v3239, %v3252
    %v3254 = vpop.f32.mrf.mxu0
    %v3255 = vadd.f32 %v3241, %v3254
    %3256 = vdwg.mxu0
    %3257 = vmatpush.bf16.msra.mxu0 %v2029
    %3258 = vmatpush.bf16.msra.mxu0 %v2021
    %3259 = vmatpush.bf16.msra.mxu0 %v2013
    %3260 = vmatpush.bf16.msra.mxu0 %v2005
    %3261 = vmatpush.bf16.msra.mxu0 %v1997
    %3262 = vmatpush.bf16.msra.mxu0 %v1989
    %3263 = vmatpush.bf16.msra.mxu0 %v1981
    %3264 = vmatpush.bf16.msra.mxu0 %v1973
    %3265 = vmatmul.bf16.gmra.mxu0 %v611
    %v3266 = vpop.f32.mrf.mxu0
    %v3267 = vadd.f32 %v577, %v3266
    %v3268 = vpop.f32.mrf.mxu0
    %v3269 = vadd.f32 %v577, %v3268
    %3270 = vdwg.mxu0
    %3271 = vmatpush.bf16.msra.mxu0 %v2093
    %3272 = vmatpush.bf16.msra.mxu0 %v2085
    %3273 = vmatpush.bf16.msra.mxu0 %v2077
    %3274 = vmatpush.bf16.msra.mxu0 %v2069
    %3275 = vmatpush.bf16.msra.mxu0 %v2061
    %3276 = vmatpush.bf16.msra.mxu0 %v2053
    %3277 = vmatpush.bf16.msra.mxu0 %v2045
    %3278 = vmatpush.bf16.msra.mxu0 %v2037
    %3279 = vmatmul.bf16.gmra.mxu0 %v612
    %v3280 = vpop.f32.mrf.mxu0
    %v3281 = vadd.f32 %v3267, %v3280
    %v3282 = vpop.f32.mrf.mxu0
    %v3283 = vadd.f32 %v3269, %v3282
    %3284 = vdwg.mxu0
    %3285 = vmatpush.bf16.msra.mxu0 %v2157
    %3286 = vmatpush.bf16.msra.mxu0 %v2149
    %3287 = vmatpush.bf16.msra.mxu0 %v2141
    %3288 = vmatpush.bf16.msra.mxu0 %v2133
    %3289 = vmatpush.bf16.msra.mxu0 %v2125
    %3290 = vmatpush.bf16.msra.mxu0 %v2117
    %3291 = vmatpush.bf16.msra.mxu0 %v2109
    %3292 = vmatpush.bf16.msra.mxu0 %v2101
    %3293 = vmatmul.bf16.gmra.mxu0 %v613
    %v3294 = vpop.f32.mrf.mxu0
    %v3295 = vadd.f32 %v3281, %v3294
    %v3296 = vpop.f32.mrf.mxu0
    %v3297 = vadd.f32 %v3283, %v3296
    %3298 = vdwg.mxu0
    %3299 = vmatpush.bf16.msra.mxu0 %v2221
    %3300 = vmatpush.bf16.msra.mxu0 %v2213
    %3301 = vmatpush.bf16.msra.mxu0 %v2205
    %3302 = vmatpush.bf16.msra.mxu0 %v2197
    %3303 = vmatpush.bf16.msra.mxu0 %v2189
    %3304 = vmatpush.bf16.msra.mxu0 %v2181
    %3305 = vmatpush.bf16.msra.mxu0 %v2173
    %3306 = vmatpush.bf16.msra.mxu0 %v2165
    %3307 = vmatmul.bf16.gmra.mxu0 %v614
    %v3308 = vpop.f32.mrf.mxu0
    %v3309 = vadd.f32 %v3295, %v3308
    %v3310 = vpop.f32.mrf.mxu0
    %v3311 = vadd.f32 %v3297, %v3310
    %3312 = vdwg.mxu0
    %3313 = vmatpush.bf16.msra.mxu0 %v2285
    %3314 = vmatpush.bf16.msra.mxu0 %v2277
    %3315 = vmatpush.bf16.msra.mxu0 %v2269
    %3316 = vmatpush.bf16.msra.mxu0 %v2261
    %3317 = vmatpush.bf16.msra.mxu0 %v2253
    %3318 = vmatpush.bf16.msra.mxu0 %v2245
    %3319 = vmatpush.bf16.msra.mxu0 %v2237
    %3320 = vmatpush.bf16.msra.mxu0 %v2229
    %3321 = vmatmul.bf16.gmra.mxu0 %v615
    %v3322 = vpop.f32.mrf.mxu0
    %v3323 = vadd.f32 %v3309, %v3322
    %v3324 = vpop.f32.mrf.mxu0
    %v3325 = vadd.f32 %v3311, %v3324
    %3326 = vdwg.mxu0
    %3327 = vmatpush.bf16.msra.mxu0 %v2349
    %3328 = vmatpush.bf16.msra.mxu0 %v2341
    %3329 = vmatpush.bf16.msra.mxu0 %v2333
    %3330 = vmatpush.bf16.msra.mxu0 %v2325
    %3331 = vmatpush.bf16.msra.mxu0 %v2317
    %3332 = vmatpush.bf16.msra.mxu0 %v2309
    %3333 = vmatpush.bf16.msra.mxu0 %v2301
    %3334 = vmatpush.bf16.msra.mxu0 %v2293
    %3335 = vmatmul.bf16.gmra.mxu0 %v616
    %v3336 = vpop.f32.mrf.mxu0
    %v3337 = vadd.f32 %v3323, %v3336
    %v3338 = vpop.f32.mrf.mxu0
    %v3339 = vadd.f32 %v3325, %v3338
    %3340 = vdwg.mxu0
    %3341 = vmatpush.bf16.msra.mxu0 %v2413
    %3342 = vmatpush.bf16.msra.mxu0 %v2405
    %3343 = vmatpush.bf16.msra.mxu0 %v2397
    %3344 = vmatpush.bf16.msra.mxu0 %v2389
    %3345 = vmatpush.bf16.msra.mxu0 %v2381
    %3346 = vmatpush.bf16.msra.mxu0 %v2373
    %3347 = vmatpush.bf16.msra.mxu0 %v2365
    %3348 = vmatpush.bf16.msra.mxu0 %v2357
    %3349 = vmatmul.bf16.gmra.mxu0 %v617
    %v3350 = vpop.f32.mrf.mxu0
    %v3351 = vadd.f32 %v3337, %v3350
    %v3352 = vpop.f32.mrf.mxu0
    %v3353 = vadd.f32 %v3339, %v3352
    %3354 = vdwg.mxu0
    %3355 = vmatpush.bf16.msra.mxu0 %v2030
    %3356 = vmatpush.bf16.msra.mxu0 %v2022
    %3357 = vmatpush.bf16.msra.mxu0 %v2014
    %3358 = vmatpush.bf16.msra.mxu0 %v2006
    %3359 = vmatpush.bf16.msra.mxu0 %v1998
    %3360 = vmatpush.bf16.msra.mxu0 %v1990
    %3361 = vmatpush.bf16.msra.mxu0 %v1982
    %3362 = vmatpush.bf16.msra.mxu0 %v1974
    %3363 = vmatmul.bf16.gmra.mxu0 %v611
    %v3364 = vpop.f32.mrf.mxu0
    %v3365 = vadd.f32 %v578, %v3364
    %v3366 = vpop.f32.mrf.mxu0
    %v3367 = vadd.f32 %v578, %v3366
    %3368 = vdwg.mxu0
    %3369 = vmatpush.bf16.msra.mxu0 %v2094
    %3370 = vmatpush.bf16.msra.mxu0 %v2086
    %3371 = vmatpush.bf16.msra.mxu0 %v2078
    %3372 = vmatpush.bf16.msra.mxu0 %v2070
    %3373 = vmatpush.bf16.msra.mxu0 %v2062
    %3374 = vmatpush.bf16.msra.mxu0 %v2054
    %3375 = vmatpush.bf16.msra.mxu0 %v2046
    %3376 = vmatpush.bf16.msra.mxu0 %v2038
    %3377 = vmatmul.bf16.gmra.mxu0 %v612
    %v3378 = vpop.f32.mrf.mxu0
    %v3379 = vadd.f32 %v3365, %v3378
    %v3380 = vpop.f32.mrf.mxu0
    %v3381 = vadd.f32 %v3367, %v3380
    %3382 = vdwg.mxu0
    %3383 = vmatpush.bf16.msra.mxu0 %v2158
    %3384 = vmatpush.bf16.msra.mxu0 %v2150
    %3385 = vmatpush.bf16.msra.mxu0 %v2142
    %3386 = vmatpush.bf16.msra.mxu0 %v2134
    %3387 = vmatpush.bf16.msra.mxu0 %v2126
    %3388 = vmatpush.bf16.msra.mxu0 %v2118
    %3389 = vmatpush.bf16.msra.mxu0 %v2110
    %3390 = vmatpush.bf16.msra.mxu0 %v2102
    %3391 = vmatmul.bf16.gmra.mxu0 %v613
    %v3392 = vpop.f32.mrf.mxu0
    %v3393 = vadd.f32 %v3379, %v3392
    %v3394 = vpop.f32.mrf.mxu0
    %v3395 = vadd.f32 %v3381, %v3394
    %3396 = vdwg.mxu0
    %3397 = vmatpush.bf16.msra.mxu0 %v2222
    %3398 = vmatpush.bf16.msra.mxu0 %v2214
    %3399 = vmatpush.bf16.msra.mxu0 %v2206
    %3400 = vmatpush.bf16.msra.mxu0 %v2198
    %3401 = vmatpush.bf16.msra.mxu0 %v2190
    %3402 = vmatpush.bf16.msra.mxu0 %v2182
    %3403 = vmatpush.bf16.msra.mxu0 %v2174
    %3404 = vmatpush.bf16.msra.mxu0 %v2166
    %3405 = vmatmul.bf16.gmra.mxu0 %v614
    %v3406 = vpop.f32.mrf.mxu0
    %v3407 = vadd.f32 %v3393, %v3406
    %v3408 = vpop.f32.mrf.mxu0
    %v3409 = vadd.f32 %v3395, %v3408
    %3410 = vdwg.mxu0
    %3411 = vmatpush.bf16.msra.mxu0 %v2286
    %3412 = vmatpush.bf16.msra.mxu0 %v2278
    %3413 = vmatpush.bf16.msra.mxu0 %v2270
    %3414 = vmatpush.bf16.msra.mxu0 %v2262
    %3415 = vmatpush.bf16.msra.mxu0 %v2254
    %3416 = vmatpush.bf16.msra.mxu0 %v2246
    %3417 = vmatpush.bf16.msra.mxu0 %v2238
    %3418 = vmatpush.bf16.msra.mxu0 %v2230
    %3419 = vmatmul.bf16.gmra.mxu0 %v615
    %v3420 = vpop.f32.mrf.mxu0
    %v3421 = vadd.f32 %v3407, %v3420
    %v3422 = vpop.f32.mrf.mxu0
    %v3423 = vadd.f32 %v3409, %v3422
    %3424 = vdwg.mxu0
    %3425 = vmatpush.bf16.msra.mxu0 %v2350
    %3426 = vmatpush.bf16.msra.mxu0 %v2342
    %3427 = vmatpush.bf16.msra.mxu0 %v2334
    %3428 = vmatpush.bf16.msra.mxu0 %v2326
    %3429 = vmatpush.bf16.msra.mxu0 %v2318
    %3430 = vmatpush.bf16.msra.mxu0 %v2310
    %3431 = vmatpush.bf16.msra.mxu0 %v2302
    %3432 = vmatpush.bf16.msra.mxu0 %v2294
    %3433 = vmatmul.bf16.gmra.mxu0 %v616
    %v3434 = vpop.f32.mrf.mxu0
    %v3435 = vadd.f32 %v3421, %v3434
    %v3436 = vpop.f32.mrf.mxu0
    %v3437 = vadd.f32 %v3423, %v3436
    %3438 = vdwg.mxu0
    %3439 = vmatpush.bf16.msra.mxu0 %v2414
    %3440 = vmatpush.bf16.msra.mxu0 %v2406
    %3441 = vmatpush.bf16.msra.mxu0 %v2398
    %3442 = vmatpush.bf16.msra.mxu0 %v2390
    %3443 = vmatpush.bf16.msra.mxu0 %v2382
    %3444 = vmatpush.bf16.msra.mxu0 %v2374
    %3445 = vmatpush.bf16.msra.mxu0 %v2366
    %3446 = vmatpush.bf16.msra.mxu0 %v2358
    %3447 = vmatmul.bf16.gmra.mxu0 %v617
    %v3448 = vpop.f32.mrf.mxu0
    %v3449 = vadd.f32 %v3435, %v3448
    %v3450 = vpop.f32.mrf.mxu0
    %v3451 = vadd.f32 %v3437, %v3450
    %3452 = vdwg.mxu0
    %3453 = vmatpush.bf16.msra.mxu0 %v2031
    %3454 = vmatpush.bf16.msra.mxu0 %v2023
    %3455 = vmatpush.bf16.msra.mxu0 %v2015
    %3456 = vmatpush.bf16.msra.mxu0 %v2007
    %3457 = vmatpush.bf16.msra.mxu0 %v1999
    %3458 = vmatpush.bf16.msra.mxu0 %v1991
    %3459 = vmatpush.bf16.msra.mxu0 %v1983
    %3460 = vmatpush.bf16.msra.mxu0 %v1975
    %3461 = vmatmul.bf16.gmra.mxu0 %v611
    %v3462 = vpop.f32.mrf.mxu0
    %v3463 = vadd.f32 %v579, %v3462
    %v3464 = vpop.f32.mrf.mxu0
    %v3465 = vadd.f32 %v579, %v3464
    %3466 = vdwg.mxu0
    %3467 = vmatpush.bf16.msra.mxu0 %v2095
    %3468 = vmatpush.bf16.msra.mxu0 %v2087
    %3469 = vmatpush.bf16.msra.mxu0 %v2079
    %3470 = vmatpush.bf16.msra.mxu0 %v2071
    %3471 = vmatpush.bf16.msra.mxu0 %v2063
    %3472 = vmatpush.bf16.msra.mxu0 %v2055
    %3473 = vmatpush.bf16.msra.mxu0 %v2047
    %3474 = vmatpush.bf16.msra.mxu0 %v2039
    %3475 = vmatmul.bf16.gmra.mxu0 %v612
    %v3476 = vpop.f32.mrf.mxu0
    %v3477 = vadd.f32 %v3463, %v3476
    %v3478 = vpop.f32.mrf.mxu0
    %v3479 = vadd.f32 %v3465, %v3478
    %3480 = vdwg.mxu0
    %3481 = vmatpush.bf16.msra.mxu0 %v2159
    %3482 = vmatpush.bf16.msra.mxu0 %v2151
    %3483 = vmatpush.bf16.msra.mxu0 %v2143
    %3484 = vmatpush.bf16.msra.mxu0 %v2135
    %3485 = vmatpush.bf16.msra.mxu0 %v2127
    %3486 = vmatpush.bf16.msra.mxu0 %v2119
    %3487 = vmatpush.bf16.msra.mxu0 %v2111
    %3488 = vmatpush.bf16.msra.mxu0 %v2103
    %3489 = vmatmul.bf16.gmra.mxu0 %v613
    %v3490 = vpop.f32.mrf.mxu0
    %v3491 = vadd.f32 %v3477, %v3490
    %v3492 = vpop.f32.mrf.mxu0
    %v3493 = vadd.f32 %v3479, %v3492
    %3494 = vdwg.mxu0
    %3495 = vmatpush.bf16.msra.mxu0 %v2223
    %3496 = vmatpush.bf16.msra.mxu0 %v2215
    %3497 = vmatpush.bf16.msra.mxu0 %v2207
    %3498 = vmatpush.bf16.msra.mxu0 %v2199
    %3499 = vmatpush.bf16.msra.mxu0 %v2191
    %3500 = vmatpush.bf16.msra.mxu0 %v2183
    %3501 = vmatpush.bf16.msra.mxu0 %v2175
    %3502 = vmatpush.bf16.msra.mxu0 %v2167
    %3503 = vmatmul.bf16.gmra.mxu0 %v614
    %v3504 = vpop.f32.mrf.mxu0
    %v3505 = vadd.f32 %v3491, %v3504
    %v3506 = vpop.f32.mrf.mxu0
    %v3507 = vadd.f32 %v3493, %v3506
    %3508 = vdwg.mxu0
    %3509 = vmatpush.bf16.msra.mxu0 %v2287
    %3510 = vmatpush.bf16.msra.mxu0 %v2279
    %3511 = vmatpush.bf16.msra.mxu0 %v2271
    %3512 = vmatpush.bf16.msra.mxu0 %v2263
    %3513 = vmatpush.bf16.msra.mxu0 %v2255
    %3514 = vmatpush.bf16.msra.mxu0 %v2247
    %3515 = vmatpush.bf16.msra.mxu0 %v2239
    %3516 = vmatpush.bf16.msra.mxu0 %v2231
    %3517 = vmatmul.bf16.gmra.mxu0 %v615
    %v3518 = vpop.f32.mrf.mxu0
    %v3519 = vadd.f32 %v3505, %v3518
    %v3520 = vpop.f32.mrf.mxu0
    %v3521 = vadd.f32 %v3507, %v3520
    %3522 = vdwg.mxu0
    %3523 = vmatpush.bf16.msra.mxu0 %v2351
    %3524 = vmatpush.bf16.msra.mxu0 %v2343
    %3525 = vmatpush.bf16.msra.mxu0 %v2335
    %3526 = vmatpush.bf16.msra.mxu0 %v2327
    %3527 = vmatpush.bf16.msra.mxu0 %v2319
    %3528 = vmatpush.bf16.msra.mxu0 %v2311
    %3529 = vmatpush.bf16.msra.mxu0 %v2303
    %3530 = vmatpush.bf16.msra.mxu0 %v2295
    %3531 = vmatmul.bf16.gmra.mxu0 %v616
    %v3532 = vpop.f32.mrf.mxu0
    %v3533 = vadd.f32 %v3519, %v3532
    %v3534 = vpop.f32.mrf.mxu0
    %v3535 = vadd.f32 %v3521, %v3534
    %3536 = vdwg.mxu0
    %3537 = vmatpush.bf16.msra.mxu0 %v2415
    %3538 = vmatpush.bf16.msra.mxu0 %v2407
    %3539 = vmatpush.bf16.msra.mxu0 %v2399
    %3540 = vmatpush.bf16.msra.mxu0 %v2391
    %3541 = vmatpush.bf16.msra.mxu0 %v2383
    %3542 = vmatpush.bf16.msra.mxu0 %v2375
    %3543 = vmatpush.bf16.msra.mxu0 %v2367
    %3544 = vmatpush.bf16.msra.mxu0 %v2359
    %3545 = vmatmul.bf16.gmra.mxu0 %v617
    %v3546 = vpop.f32.mrf.mxu0
    %v3547 = vadd.f32 %v3533, %v3546
    %v3548 = vpop.f32.mrf.mxu0
    %v3549 = vadd.f32 %v3535, %v3548
    %3550 = vdwg.mxu0
    %3551 = vmatpush.bf16.msra.mxu0 %v2032
    %3552 = vmatpush.bf16.msra.mxu0 %v2024
    %3553 = vmatpush.bf16.msra.mxu0 %v2016
    %3554 = vmatpush.bf16.msra.mxu0 %v2008
    %3555 = vmatpush.bf16.msra.mxu0 %v2000
    %3556 = vmatpush.bf16.msra.mxu0 %v1992
    %3557 = vmatpush.bf16.msra.mxu0 %v1984
    %3558 = vmatpush.bf16.msra.mxu0 %v1976
    %3559 = vmatmul.bf16.gmra.mxu0 %v611
    %v3560 = vpop.f32.mrf.mxu0
    %v3561 = vadd.f32 %v580, %v3560
    %v3562 = vpop.f32.mrf.mxu0
    %v3563 = vadd.f32 %v580, %v3562
    %3564 = vdwg.mxu0
    %3565 = vmatpush.bf16.msra.mxu0 %v2096
    %3566 = vmatpush.bf16.msra.mxu0 %v2088
    %3567 = vmatpush.bf16.msra.mxu0 %v2080
    %3568 = vmatpush.bf16.msra.mxu0 %v2072
    %3569 = vmatpush.bf16.msra.mxu0 %v2064
    %3570 = vmatpush.bf16.msra.mxu0 %v2056
    %3571 = vmatpush.bf16.msra.mxu0 %v2048
    %3572 = vmatpush.bf16.msra.mxu0 %v2040
    %3573 = vmatmul.bf16.gmra.mxu0 %v612
    %v3574 = vpop.f32.mrf.mxu0
    %v3575 = vadd.f32 %v3561, %v3574
    %v3576 = vpop.f32.mrf.mxu0
    %v3577 = vadd.f32 %v3563, %v3576
    %3578 = vdwg.mxu0
    %3579 = vmatpush.bf16.msra.mxu0 %v2160
    %3580 = vmatpush.bf16.msra.mxu0 %v2152
    %3581 = vmatpush.bf16.msra.mxu0 %v2144
    %3582 = vmatpush.bf16.msra.mxu0 %v2136
    %3583 = vmatpush.bf16.msra.mxu0 %v2128
    %3584 = vmatpush.bf16.msra.mxu0 %v2120
    %3585 = vmatpush.bf16.msra.mxu0 %v2112
    %3586 = vmatpush.bf16.msra.mxu0 %v2104
    %3587 = vmatmul.bf16.gmra.mxu0 %v613
    %v3588 = vpop.f32.mrf.mxu0
    %v3589 = vadd.f32 %v3575, %v3588
    %v3590 = vpop.f32.mrf.mxu0
    %v3591 = vadd.f32 %v3577, %v3590
    %3592 = vdwg.mxu0
    %3593 = vmatpush.bf16.msra.mxu0 %v2224
    %3594 = vmatpush.bf16.msra.mxu0 %v2216
    %3595 = vmatpush.bf16.msra.mxu0 %v2208
    %3596 = vmatpush.bf16.msra.mxu0 %v2200
    %3597 = vmatpush.bf16.msra.mxu0 %v2192
    %3598 = vmatpush.bf16.msra.mxu0 %v2184
    %3599 = vmatpush.bf16.msra.mxu0 %v2176
    %3600 = vmatpush.bf16.msra.mxu0 %v2168
    %3601 = vmatmul.bf16.gmra.mxu0 %v614
    %v3602 = vpop.f32.mrf.mxu0
    %v3603 = vadd.f32 %v3589, %v3602
    %v3604 = vpop.f32.mrf.mxu0
    %v3605 = vadd.f32 %v3591, %v3604
    %3606 = vdwg.mxu0
    %3607 = vmatpush.bf16.msra.mxu0 %v2288
    %3608 = vmatpush.bf16.msra.mxu0 %v2280
    %3609 = vmatpush.bf16.msra.mxu0 %v2272
    %3610 = vmatpush.bf16.msra.mxu0 %v2264
    %3611 = vmatpush.bf16.msra.mxu0 %v2256
    %3612 = vmatpush.bf16.msra.mxu0 %v2248
    %3613 = vmatpush.bf16.msra.mxu0 %v2240
    %3614 = vmatpush.bf16.msra.mxu0 %v2232
    %3615 = vmatmul.bf16.gmra.mxu0 %v615
    %v3616 = vpop.f32.mrf.mxu0
    %v3617 = vadd.f32 %v3603, %v3616
    %v3618 = vpop.f32.mrf.mxu0
    %v3619 = vadd.f32 %v3605, %v3618
    %3620 = vdwg.mxu0
    %3621 = vmatpush.bf16.msra.mxu0 %v2352
    %3622 = vmatpush.bf16.msra.mxu0 %v2344
    %3623 = vmatpush.bf16.msra.mxu0 %v2336
    %3624 = vmatpush.bf16.msra.mxu0 %v2328
    %3625 = vmatpush.bf16.msra.mxu0 %v2320
    %3626 = vmatpush.bf16.msra.mxu0 %v2312
    %3627 = vmatpush.bf16.msra.mxu0 %v2304
    %3628 = vmatpush.bf16.msra.mxu0 %v2296
    %3629 = vmatmul.bf16.gmra.mxu0 %v616
    %v3630 = vpop.f32.mrf.mxu0
    %v3631 = vadd.f32 %v3617, %v3630
    %v3632 = vpop.f32.mrf.mxu0
    %v3633 = vadd.f32 %v3619, %v3632
    %3634 = vdwg.mxu0
    %3635 = vmatpush.bf16.msra.mxu0 %v2416
    %3636 = vmatpush.bf16.msra.mxu0 %v2408
    %3637 = vmatpush.bf16.msra.mxu0 %v2400
    %3638 = vmatpush.bf16.msra.mxu0 %v2392
    %3639 = vmatpush.bf16.msra.mxu0 %v2384
    %3640 = vmatpush.bf16.msra.mxu0 %v2376
    %3641 = vmatpush.bf16.msra.mxu0 %v2368
    %3642 = vmatpush.bf16.msra.mxu0 %v2360
    %3643 = vmatmul.bf16.gmra.mxu0 %v617
    %v3644 = vpop.f32.mrf.mxu0
    %v3645 = vadd.f32 %v3631, %v3644
    %v3646 = vpop.f32.mrf.mxu0
    %v3647 = vadd.f32 %v3633, %v3646
    %3648 = vdwg.mxu0
    %v3649 = vmax.f32 %v2959, 0.0
    %v3650 = vmax.f32 %v3057, 0.0
    %v3651 = vmax.f32 %v3155, 0.0
    %v3652 = vmax.f32 %v3253, 0.0
    %v3653 = vmax.f32 %v3351, 0.0
    %v3654 = vmax.f32 %v3449, 0.0
    %v3655 = vmax.f32 %v3547, 0.0
    %v3656 = vmax.f32 %v3645, 0.0
    %v3657 = vmax.f32 %v2961, 0.0
    %v3658 = vmax.f32 %v3059, 0.0
    %v3659 = vmax.f32 %v3157, 0.0
    %v3660 = vmax.f32 %v3255, 0.0
    %v3661 = vmax.f32 %v3353, 0.0
    %v3662 = vmax.f32 %v3451, 0.0
    %v3663 = vmax.f32 %v3549, 0.0
    %v3664 = vmax.f32 %v3647, 0.0
    %v3665 = vpack.c.bf16 %v3657, %v3649
    %v3666 = vpack.c.bf16 %v3658, %v3650
    %v3667 = vpack.c.bf16 %v3659, %v3651
    %v3668 = vpack.c.bf16 %v3660, %v3652
    %v3669 = vpack.c.bf16 %v3661, %v3653
    %v3670 = vpack.c.bf16 %v3662, %v3654
    %v3671 = vpack.c.bf16 %v3663, %v3655
    %v3672 = vpack.c.bf16 %v3664, %v3656
    %v3673 = vld [vmem:[#allocation7] sm:$0xff]
    %v3674 = vld [vmem:[#allocation7 + $0x8] sm:$0xff]
    %v3675 = vld [vmem:[#allocation7 + $0x10] sm:$0xff]
    %v3676 = vld [vmem:[#allocation7 + $0x18] sm:$0xff]
    %v3677 = vld [vmem:[#allocation7 + $0x20] sm:$0xff]
    %v3678 = vld [vmem:[#allocation7 + $0x28] sm:$0xff]
    %v3679 = vld [vmem:[#allocation7 + $0x30] sm:$0xff]
    %v3680 = vld [vmem:[#allocation7 + $0x38] sm:$0xff]
    %v3681 = vld [vmem:[#allocation7 + $0x40] sm:$0xff]
    %v3682 = vld [vmem:[#allocation7 + $0x48] sm:$0xff]
    %v3683 = vld [vmem:[#allocation7 + $0x50] sm:$0xff]
    %v3684 = vld [vmem:[#allocation7 + $0x58] sm:$0xff]
    %v3685 = vld [vmem:[#allocation7 + $0x60] sm:$0xff]
    %v3686 = vld [vmem:[#allocation7 + $0x68] sm:$0xff]
    %v3687 = vld [vmem:[#allocation7 + $0x70] sm:$0xff]
    %v3688 = vld [vmem:[#allocation7 + $0x78] sm:$0xff]
    %v3689 = vld [vmem:[#allocation7 + $0x80] sm:$0xff]
    %v3690 = vld [vmem:[#allocation7 + $0x88] sm:$0xff]
    %v3691 = vld [vmem:[#allocation7 + $0x90] sm:$0xff]
    %v3692 = vld [vmem:[#allocation7 + $0x98] sm:$0xff]
    %v3693 = vld [vmem:[#allocation7 + $0xa0] sm:$0xff]
    %v3694 = vld [vmem:[#allocation7 + $0xa8] sm:$0xff]
    %v3695 = vld [vmem:[#allocation7 + $0xb0] sm:$0xff]
    %v3696 = vld [vmem:[#allocation7 + $0xb8] sm:$0xff]
    %v3697 = vld [vmem:[#allocation7 + $0xc0] sm:$0xff]
    %v3698 = vld [vmem:[#allocation7 + $0xc8] sm:$0xff]
    %v3699 = vld [vmem:[#allocation7 + $0xd0] sm:$0xff]
    %v3700 = vld [vmem:[#allocation7 + $0xd8] sm:$0xff]
    %v3701 = vld [vmem:[#allocation7 + $0xe0] sm:$0xff]
    %v3702 = vld [vmem:[#allocation7 + $0xe8] sm:$0xff]
    %v3703 = vld [vmem:[#allocation7 + $0xf0] sm:$0xff]
    %v3704 = vld [vmem:[#allocation7 + $0xf8] sm:$0xff]
    %v3705 = vld [vmem:[#allocation7 + $0x100] sm:$0xff]
    %v3706 = vld [vmem:[#allocation7 + $0x108] sm:$0xff]
    %v3707 = vld [vmem:[#allocation7 + $0x110] sm:$0xff]
    %v3708 = vld [vmem:[#allocation7 + $0x118] sm:$0xff]
    %v3709 = vld [vmem:[#allocation7 + $0x120] sm:$0xff]
    %v3710 = vld [vmem:[#allocation7 + $0x128] sm:$0xff]
    %v3711 = vld [vmem:[#allocation7 + $0x130] sm:$0xff]
    %v3712 = vld [vmem:[#allocation7 + $0x138] sm:$0xff]
    %v3713 = vld [vmem:[#allocation7 + $0x140] sm:$0xff]
    %v3714 = vld [vmem:[#allocation7 + $0x148] sm:$0xff]
    %v3715 = vld [vmem:[#allocation7 + $0x150] sm:$0xff]
    %v3716 = vld [vmem:[#allocation7 + $0x158] sm:$0xff]
    %v3717 = vld [vmem:[#allocation7 + $0x160] sm:$0xff]
    %v3718 = vld [vmem:[#allocation7 + $0x168] sm:$0xff]
    %v3719 = vld [vmem:[#allocation7 + $0x170] sm:$0xff]
    %v3720 = vld [vmem:[#allocation7 + $0x178] sm:$0xff]
    %v3721 = vld [vmem:[#allocation7 + $0x180] sm:$0xff]
    %v3722 = vld [vmem:[#allocation7 + $0x188] sm:$0xff]
    %v3723 = vld [vmem:[#allocation7 + $0x190] sm:$0xff]
    %v3724 = vld [vmem:[#allocation7 + $0x198] sm:$0xff]
    %v3725 = vld [vmem:[#allocation7 + $0x1a0] sm:$0xff]
    %v3726 = vld [vmem:[#allocation7 + $0x1a8] sm:$0xff]
    %v3727 = vld [vmem:[#allocation7 + $0x1b0] sm:$0xff]
    %v3728 = vld [vmem:[#allocation7 + $0x1b8] sm:$0xff]
    %v3729 = vld [vmem:[#allocation7 + $0x1c0] sm:$0xff]
    %v3730 = vld [vmem:[#allocation7 + $0x1c8] sm:$0xff]
    %v3731 = vld [vmem:[#allocation7 + $0x1d0] sm:$0xff]
    %v3732 = vld [vmem:[#allocation7 + $0x1d8] sm:$0xff]
    %v3733 = vld [vmem:[#allocation7 + $0x1e0] sm:$0xff]
    %v3734 = vld [vmem:[#allocation7 + $0x1e8] sm:$0xff]
    %v3735 = vld [vmem:[#allocation7 + $0x1f0] sm:$0xff]
    %v3736 = vld [vmem:[#allocation7 + $0x1f8] sm:$0xff]
    %v3737 = vld [vmem:[#allocation7 + $0x200] sm:$0xff]
    %v3738 = vld [vmem:[#allocation7 + $0x208] sm:$0xff]
    %v3739 = vld [vmem:[#allocation7 + $0x210] sm:$0xff]
    %v3740 = vld [vmem:[#allocation7 + $0x218] sm:$0xff]
    %v3741 = vld [vmem:[#allocation7 + $0x220] sm:$0xff]
    %v3742 = vld [vmem:[#allocation7 + $0x228] sm:$0xff]
    %v3743 = vld [vmem:[#allocation7 + $0x230] sm:$0xff]
    %v3744 = vld [vmem:[#allocation7 + $0x238] sm:$0xff]
    %v3745 = vld [vmem:[#allocation7 + $0x240] sm:$0xff]
    %v3746 = vld [vmem:[#allocation7 + $0x248] sm:$0xff]
    %v3747 = vld [vmem:[#allocation7 + $0x250] sm:$0xff]
    %v3748 = vld [vmem:[#allocation7 + $0x258] sm:$0xff]
    %v3749 = vld [vmem:[#allocation7 + $0x260] sm:$0xff]
    %v3750 = vld [vmem:[#allocation7 + $0x268] sm:$0xff]
    %v3751 = vld [vmem:[#allocation7 + $0x270] sm:$0xff]
    %v3752 = vld [vmem:[#allocation7 + $0x278] sm:$0xff]
    %v3753 = vld [vmem:[#allocation7 + $0x280] sm:$0xff]
    %v3754 = vld [vmem:[#allocation7 + $0x288] sm:$0xff]
    %v3755 = vld [vmem:[#allocation7 + $0x290] sm:$0xff]
    %v3756 = vld [vmem:[#allocation7 + $0x298] sm:$0xff]
    %v3757 = vld [vmem:[#allocation7 + $0x2a0] sm:$0xff]
    %v3758 = vld [vmem:[#allocation7 + $0x2a8] sm:$0xff]
    %v3759 = vld [vmem:[#allocation7 + $0x2b0] sm:$0xff]
    %v3760 = vld [vmem:[#allocation7 + $0x2b8] sm:$0xff]
    %v3761 = vld [vmem:[#allocation7 + $0x2c0] sm:$0xff]
    %v3762 = vld [vmem:[#allocation7 + $0x2c8] sm:$0xff]
    %v3763 = vld [vmem:[#allocation7 + $0x2d0] sm:$0xff]
    %v3764 = vld [vmem:[#allocation7 + $0x2d8] sm:$0xff]
    %v3765 = vld [vmem:[#allocation7 + $0x2e0] sm:$0xff]
    %v3766 = vld [vmem:[#allocation7 + $0x2e8] sm:$0xff]
    %v3767 = vld [vmem:[#allocation7 + $0x2f0] sm:$0xff]
    %v3768 = vld [vmem:[#allocation7 + $0x2f8] sm:$0xff]
    %v3769 = vld [vmem:[#allocation7 + $0x300] sm:$0xff]
    %v3770 = vld [vmem:[#allocation7 + $0x308] sm:$0xff]
    %v3771 = vld [vmem:[#allocation7 + $0x310] sm:$0xff]
    %v3772 = vld [vmem:[#allocation7 + $0x318] sm:$0xff]
    %v3773 = vld [vmem:[#allocation7 + $0x320] sm:$0xff]
    %v3774 = vld [vmem:[#allocation7 + $0x328] sm:$0xff]
    %v3775 = vld [vmem:[#allocation7 + $0x330] sm:$0xff]
    %v3776 = vld [vmem:[#allocation7 + $0x338] sm:$0xff]
    %v3777 = vld [vmem:[#allocation7 + $0x340] sm:$0xff]
    %v3778 = vld [vmem:[#allocation7 + $0x348] sm:$0xff]
    %v3779 = vld [vmem:[#allocation7 + $0x350] sm:$0xff]
    %v3780 = vld [vmem:[#allocation7 + $0x358] sm:$0xff]
    %v3781 = vld [vmem:[#allocation7 + $0x360] sm:$0xff]
    %v3782 = vld [vmem:[#allocation7 + $0x368] sm:$0xff]
    %v3783 = vld [vmem:[#allocation7 + $0x370] sm:$0xff]
    %v3784 = vld [vmem:[#allocation7 + $0x378] sm:$0xff]
    %v3785 = vld [vmem:[#allocation7 + $0x380] sm:$0xff]
    %v3786 = vld [vmem:[#allocation7 + $0x388] sm:$0xff]
    %v3787 = vld [vmem:[#allocation7 + $0x390] sm:$0xff]
    %v3788 = vld [vmem:[#allocation7 + $0x398] sm:$0xff]
    %v3789 = vld [vmem:[#allocation7 + $0x3a0] sm:$0xff]
    %v3790 = vld [vmem:[#allocation7 + $0x3a8] sm:$0xff]
    %v3791 = vld [vmem:[#allocation7 + $0x3b0] sm:$0xff]
    %v3792 = vld [vmem:[#allocation7 + $0x3b8] sm:$0xff]
    %v3793 = vld [vmem:[#allocation7 + $0x3c0] sm:$0xff]
    %v3794 = vld [vmem:[#allocation7 + $0x3c8] sm:$0xff]
    %v3795 = vld [vmem:[#allocation7 + $0x3d0] sm:$0xff]
    %v3796 = vld [vmem:[#allocation7 + $0x3d8] sm:$0xff]
    %v3797 = vld [vmem:[#allocation7 + $0x3e0] sm:$0xff]
    %v3798 = vld [vmem:[#allocation7 + $0x3e8] sm:$0xff]
    %v3799 = vld [vmem:[#allocation7 + $0x3f0] sm:$0xff]
    %v3800 = vld [vmem:[#allocation7 + $0x3f8] sm:$0xff]
    %v3801 = vld [vmem:[#allocation7 + $0x400] sm:$0xff]
    %v3802 = vld [vmem:[#allocation7 + $0x408] sm:$0xff]
    %v3803 = vld [vmem:[#allocation7 + $0x410] sm:$0xff]
    %v3804 = vld [vmem:[#allocation7 + $0x418] sm:$0xff]
    %v3805 = vld [vmem:[#allocation7 + $0x420] sm:$0xff]
    %v3806 = vld [vmem:[#allocation7 + $0x428] sm:$0xff]
    %v3807 = vld [vmem:[#allocation7 + $0x430] sm:$0xff]
    %v3808 = vld [vmem:[#allocation7 + $0x438] sm:$0xff]
    %v3809 = vld [vmem:[#allocation7 + $0x440] sm:$0xff]
    %v3810 = vld [vmem:[#allocation7 + $0x448] sm:$0xff]
    %v3811 = vld [vmem:[#allocation7 + $0x450] sm:$0xff]
    %v3812 = vld [vmem:[#allocation7 + $0x458] sm:$0xff]
    %v3813 = vld [vmem:[#allocation7 + $0x460] sm:$0xff]
    %v3814 = vld [vmem:[#allocation7 + $0x468] sm:$0xff]
    %v3815 = vld [vmem:[#allocation7 + $0x470] sm:$0xff]
    %v3816 = vld [vmem:[#allocation7 + $0x478] sm:$0xff]
    %v3817 = vld [vmem:[#allocation7 + $0x480] sm:$0xff]
    %v3818 = vld [vmem:[#allocation7 + $0x488] sm:$0xff]
    %v3819 = vld [vmem:[#allocation7 + $0x490] sm:$0xff]
    %v3820 = vld [vmem:[#allocation7 + $0x498] sm:$0xff]
    %v3821 = vld [vmem:[#allocation7 + $0x4a0] sm:$0xff]
    %v3822 = vld [vmem:[#allocation7 + $0x4a8] sm:$0xff]
    %v3823 = vld [vmem:[#allocation7 + $0x4b0] sm:$0xff]
    %v3824 = vld [vmem:[#allocation7 + $0x4b8] sm:$0xff]
    %v3825 = vld [vmem:[#allocation7 + $0x4c0] sm:$0xff]
    %v3826 = vld [vmem:[#allocation7 + $0x4c8] sm:$0xff]
    %v3827 = vld [vmem:[#allocation7 + $0x4d0] sm:$0xff]
    %v3828 = vld [vmem:[#allocation7 + $0x4d8] sm:$0xff]
    %v3829 = vld [vmem:[#allocation7 + $0x4e0] sm:$0xff]
    %v3830 = vld [vmem:[#allocation7 + $0x4e8] sm:$0xff]
    %v3831 = vld [vmem:[#allocation7 + $0x4f0] sm:$0xff]
    %v3832 = vld [vmem:[#allocation7 + $0x4f8] sm:$0xff]
    %v3833 = vld [vmem:[#allocation7 + $0x500] sm:$0xff]
    %v3834 = vld [vmem:[#allocation7 + $0x508] sm:$0xff]
    %v3835 = vld [vmem:[#allocation7 + $0x510] sm:$0xff]
    %v3836 = vld [vmem:[#allocation7 + $0x518] sm:$0xff]
    %v3837 = vld [vmem:[#allocation7 + $0x520] sm:$0xff]
    %v3838 = vld [vmem:[#allocation7 + $0x528] sm:$0xff]
    %v3839 = vld [vmem:[#allocation7 + $0x530] sm:$0xff]
    %v3840 = vld [vmem:[#allocation7 + $0x538] sm:$0xff]
    %v3841 = vld [vmem:[#allocation7 + $0x540] sm:$0xff]
    %v3842 = vld [vmem:[#allocation7 + $0x548] sm:$0xff]
    %v3843 = vld [vmem:[#allocation7 + $0x550] sm:$0xff]
    %v3844 = vld [vmem:[#allocation7 + $0x558] sm:$0xff]
    %v3845 = vld [vmem:[#allocation7 + $0x560] sm:$0xff]
    %v3846 = vld [vmem:[#allocation7 + $0x568] sm:$0xff]
    %v3847 = vld [vmem:[#allocation7 + $0x570] sm:$0xff]
    %v3848 = vld [vmem:[#allocation7 + $0x578] sm:$0xff]
    %v3849 = vld [vmem:[#allocation7 + $0x580] sm:$0xff]
    %v3850 = vld [vmem:[#allocation7 + $0x588] sm:$0xff]
    %v3851 = vld [vmem:[#allocation7 + $0x590] sm:$0xff]
    %v3852 = vld [vmem:[#allocation7 + $0x598] sm:$0xff]
    %v3853 = vld [vmem:[#allocation7 + $0x5a0] sm:$0xff]
    %v3854 = vld [vmem:[#allocation7 + $0x5a8] sm:$0xff]
    %v3855 = vld [vmem:[#allocation7 + $0x5b0] sm:$0xff]
    %v3856 = vld [vmem:[#allocation7 + $0x5b8] sm:$0xff]
    %v3857 = vld [vmem:[#allocation7 + $0x5c0] sm:$0xff]
    %v3858 = vld [vmem:[#allocation7 + $0x5c8] sm:$0xff]
    %v3859 = vld [vmem:[#allocation7 + $0x5d0] sm:$0xff]
    %v3860 = vld [vmem:[#allocation7 + $0x5d8] sm:$0xff]
    %v3861 = vld [vmem:[#allocation7 + $0x5e0] sm:$0xff]
    %v3862 = vld [vmem:[#allocation7 + $0x5e8] sm:$0xff]
    %v3863 = vld [vmem:[#allocation7 + $0x5f0] sm:$0xff]
    %v3864 = vld [vmem:[#allocation7 + $0x5f8] sm:$0xff]
    %v3865 = vld [vmem:[#allocation7 + $0x600] sm:$0xff]
    %v3866 = vld [vmem:[#allocation7 + $0x608] sm:$0xff]
    %v3867 = vld [vmem:[#allocation7 + $0x610] sm:$0xff]
    %v3868 = vld [vmem:[#allocation7 + $0x618] sm:$0xff]
    %v3869 = vld [vmem:[#allocation7 + $0x620] sm:$0xff]
    %v3870 = vld [vmem:[#allocation7 + $0x628] sm:$0xff]
    %v3871 = vld [vmem:[#allocation7 + $0x630] sm:$0xff]
    %v3872 = vld [vmem:[#allocation7 + $0x638] sm:$0xff]
    %v3873 = vld [vmem:[#allocation7 + $0x640] sm:$0xff]
    %v3874 = vld [vmem:[#allocation7 + $0x648] sm:$0xff]
    %v3875 = vld [vmem:[#allocation7 + $0x650] sm:$0xff]
    %v3876 = vld [vmem:[#allocation7 + $0x658] sm:$0xff]
    %v3877 = vld [vmem:[#allocation7 + $0x660] sm:$0xff]
    %v3878 = vld [vmem:[#allocation7 + $0x668] sm:$0xff]
    %v3879 = vld [vmem:[#allocation7 + $0x670] sm:$0xff]
    %v3880 = vld [vmem:[#allocation7 + $0x678] sm:$0xff]
    %v3881 = vld [vmem:[#allocation7 + $0x680] sm:$0xff]
    %v3882 = vld [vmem:[#allocation7 + $0x688] sm:$0xff]
    %v3883 = vld [vmem:[#allocation7 + $0x690] sm:$0xff]
    %v3884 = vld [vmem:[#allocation7 + $0x698] sm:$0xff]
    %v3885 = vld [vmem:[#allocation7 + $0x6a0] sm:$0xff]
    %v3886 = vld [vmem:[#allocation7 + $0x6a8] sm:$0xff]
    %v3887 = vld [vmem:[#allocation7 + $0x6b0] sm:$0xff]
    %v3888 = vld [vmem:[#allocation7 + $0x6b8] sm:$0xff]
    %v3889 = vld [vmem:[#allocation7 + $0x6c0] sm:$0xff]
    %v3890 = vld [vmem:[#allocation7 + $0x6c8] sm:$0xff]
    %v3891 = vld [vmem:[#allocation7 + $0x6d0] sm:$0xff]
    %v3892 = vld [vmem:[#allocation7 + $0x6d8] sm:$0xff]
    %v3893 = vld [vmem:[#allocation7 + $0x6e0] sm:$0xff]
    %v3894 = vld [vmem:[#allocation7 + $0x6e8] sm:$0xff]
    %v3895 = vld [vmem:[#allocation7 + $0x6f0] sm:$0xff]
    %v3896 = vld [vmem:[#allocation7 + $0x6f8] sm:$0xff]
    %v3897 = vld [vmem:[#allocation7 + $0x700] sm:$0xff]
    %v3898 = vld [vmem:[#allocation7 + $0x708] sm:$0xff]
    %v3899 = vld [vmem:[#allocation7 + $0x710] sm:$0xff]
    %v3900 = vld [vmem:[#allocation7 + $0x718] sm:$0xff]
    %v3901 = vld [vmem:[#allocation7 + $0x720] sm:$0xff]
    %v3902 = vld [vmem:[#allocation7 + $0x728] sm:$0xff]
    %v3903 = vld [vmem:[#allocation7 + $0x730] sm:$0xff]
    %v3904 = vld [vmem:[#allocation7 + $0x738] sm:$0xff]
    %v3905 = vld [vmem:[#allocation7 + $0x740] sm:$0xff]
    %v3906 = vld [vmem:[#allocation7 + $0x748] sm:$0xff]
    %v3907 = vld [vmem:[#allocation7 + $0x750] sm:$0xff]
    %v3908 = vld [vmem:[#allocation7 + $0x758] sm:$0xff]
    %v3909 = vld [vmem:[#allocation7 + $0x760] sm:$0xff]
    %v3910 = vld [vmem:[#allocation7 + $0x768] sm:$0xff]
    %v3911 = vld [vmem:[#allocation7 + $0x770] sm:$0xff]
    %v3912 = vld [vmem:[#allocation7 + $0x778] sm:$0xff]
    %v3913 = vld [vmem:[#allocation7 + $0x780] sm:$0xff]
    %v3914 = vld [vmem:[#allocation7 + $0x788] sm:$0xff]
    %v3915 = vld [vmem:[#allocation7 + $0x790] sm:$0xff]
    %v3916 = vld [vmem:[#allocation7 + $0x798] sm:$0xff]
    %v3917 = vld [vmem:[#allocation7 + $0x7a0] sm:$0xff]
    %v3918 = vld [vmem:[#allocation7 + $0x7a8] sm:$0xff]
    %v3919 = vld [vmem:[#allocation7 + $0x7b0] sm:$0xff]
    %v3920 = vld [vmem:[#allocation7 + $0x7b8] sm:$0xff]
    %v3921 = vld [vmem:[#allocation7 + $0x7c0] sm:$0xff]
    %v3922 = vld [vmem:[#allocation7 + $0x7c8] sm:$0xff]
    %v3923 = vld [vmem:[#allocation7 + $0x7d0] sm:$0xff]
    %v3924 = vld [vmem:[#allocation7 + $0x7d8] sm:$0xff]
    %v3925 = vld [vmem:[#allocation7 + $0x7e0] sm:$0xff]
    %v3926 = vld [vmem:[#allocation7 + $0x7e8] sm:$0xff]
    %v3927 = vld [vmem:[#allocation7 + $0x7f0] sm:$0xff]
    %v3928 = vld [vmem:[#allocation7 + $0x7f8] sm:$0xff]
    %v3929 = vld [vmem:[#allocation8] sm:$0xf]
    %v3931 = vperm.slane %v3929, 0
    %v3932 = vperm.slane %v3929, 1
    %v3933 = vperm.slane %v3929, 2
    %v3934 = vperm.slane %v3929, 3
    %v4195 = vunpack.c.l.b16 %v3673
    %v4196 = vunpack.c.h.b16 %v3673
    %v4197 = vunpack.c.l.b16 %v3674
    %v4198 = vunpack.c.h.b16 %v3674
    %v4199 = vunpack.c.l.b16 %v3675
    %v4200 = vunpack.c.h.b16 %v3675
    %v4201 = vunpack.c.l.b16 %v3676
    %v4202 = vunpack.c.h.b16 %v3676
    %v4203 = vunpack.c.l.b16 %v3677
    %v4204 = vunpack.c.h.b16 %v3677
    %v4205 = vunpack.c.l.b16 %v3678
    %v4206 = vunpack.c.h.b16 %v3678
    %v4207 = vunpack.c.l.b16 %v3679
    %v4208 = vunpack.c.h.b16 %v3679
    %v4209 = vunpack.c.l.b16 %v3680
    %v4210 = vunpack.c.h.b16 %v3680
    %v4211 = vunpack.c.l.b16 %v3681
    %v4212 = vunpack.c.h.b16 %v3681
    %v4213 = vunpack.c.l.b16 %v3682
    %v4214 = vunpack.c.h.b16 %v3682
    %v4215 = vunpack.c.l.b16 %v3683
    %v4216 = vunpack.c.h.b16 %v3683
    %v4217 = vunpack.c.l.b16 %v3684
    %v4218 = vunpack.c.h.b16 %v3684
    %v4219 = vunpack.c.l.b16 %v3685
    %v4220 = vunpack.c.h.b16 %v3685
    %v4221 = vunpack.c.l.b16 %v3686
    %v4222 = vunpack.c.h.b16 %v3686
    %v4223 = vunpack.c.l.b16 %v3687
    %v4224 = vunpack.c.h.b16 %v3687
    %v4225 = vunpack.c.l.b16 %v3688
    %v4226 = vunpack.c.h.b16 %v3688
    %v4227 = vunpack.c.l.b16 %v3689
    %v4228 = vunpack.c.h.b16 %v3689
    %v4229 = vunpack.c.l.b16 %v3690
    %v4230 = vunpack.c.h.b16 %v3690
    %v4231 = vunpack.c.l.b16 %v3691
    %v4232 = vunpack.c.h.b16 %v3691
    %v4233 = vunpack.c.l.b16 %v3692
    %v4234 = vunpack.c.h.b16 %v3692
    %v4235 = vunpack.c.l.b16 %v3693
    %v4236 = vunpack.c.h.b16 %v3693
    %v4237 = vunpack.c.l.b16 %v3694
    %v4238 = vunpack.c.h.b16 %v3694
    %v4239 = vunpack.c.l.b16 %v3695
    %v4240 = vunpack.c.h.b16 %v3695
    %v4241 = vunpack.c.l.b16 %v3696
    %v4242 = vunpack.c.h.b16 %v3696
    %v4243 = vunpack.c.l.b16 %v3697
    %v4244 = vunpack.c.h.b16 %v3697
    %v4245 = vunpack.c.l.b16 %v3698
    %v4246 = vunpack.c.h.b16 %v3698
    %v4247 = vunpack.c.l.b16 %v3699
    %v4248 = vunpack.c.h.b16 %v3699
    %v4249 = vunpack.c.l.b16 %v3700
    %v4250 = vunpack.c.h.b16 %v3700
    %v4251 = vunpack.c.l.b16 %v3701
    %v4252 = vunpack.c.h.b16 %v3701
    %v4253 = vunpack.c.l.b16 %v3702
    %v4254 = vunpack.c.h.b16 %v3702
    %v4255 = vunpack.c.l.b16 %v3703
    %v4256 = vunpack.c.h.b16 %v3703
    %v4257 = vunpack.c.l.b16 %v3704
    %v4258 = vunpack.c.h.b16 %v3704
    %v4259 = vunpack.c.l.b16 %v3705
    %v4260 = vunpack.c.h.b16 %v3705
    %v4261 = vunpack.c.l.b16 %v3706
    %v4262 = vunpack.c.h.b16 %v3706
    %v4263 = vunpack.c.l.b16 %v3707
    %v4264 = vunpack.c.h.b16 %v3707
    %v4265 = vunpack.c.l.b16 %v3708
    %v4266 = vunpack.c.h.b16 %v3708
    %v4267 = vunpack.c.l.b16 %v3709
    %v4268 = vunpack.c.h.b16 %v3709
    %v4269 = vunpack.c.l.b16 %v3710
    %v4270 = vunpack.c.h.b16 %v3710
    %v4271 = vunpack.c.l.b16 %v3711
    %v4272 = vunpack.c.h.b16 %v3711
    %v4273 = vunpack.c.l.b16 %v3712
    %v4274 = vunpack.c.h.b16 %v3712
    %v4275 = vunpack.c.l.b16 %v3713
    %v4276 = vunpack.c.h.b16 %v3713
    %v4277 = vunpack.c.l.b16 %v3714
    %v4278 = vunpack.c.h.b16 %v3714
    %v4279 = vunpack.c.l.b16 %v3715
    %v4280 = vunpack.c.h.b16 %v3715
    %v4281 = vunpack.c.l.b16 %v3716
    %v4282 = vunpack.c.h.b16 %v3716
    %v4283 = vunpack.c.l.b16 %v3717
    %v4284 = vunpack.c.h.b16 %v3717
    %v4285 = vunpack.c.l.b16 %v3718
    %v4286 = vunpack.c.h.b16 %v3718
    %v4287 = vunpack.c.l.b16 %v3719
    %v4288 = vunpack.c.h.b16 %v3719
    %v4289 = vunpack.c.l.b16 %v3720
    %v4290 = vunpack.c.h.b16 %v3720
    %v4291 = vunpack.c.l.b16 %v3721
    %v4292 = vunpack.c.h.b16 %v3721
    %v4293 = vunpack.c.l.b16 %v3722
    %v4294 = vunpack.c.h.b16 %v3722
    %v4295 = vunpack.c.l.b16 %v3723
    %v4296 = vunpack.c.h.b16 %v3723
    %v4297 = vunpack.c.l.b16 %v3724
    %v4298 = vunpack.c.h.b16 %v3724
    %v4299 = vunpack.c.l.b16 %v3725
    %v4300 = vunpack.c.h.b16 %v3725
    %v4301 = vunpack.c.l.b16 %v3726
    %v4302 = vunpack.c.h.b16 %v3726
    %v4303 = vunpack.c.l.b16 %v3727
    %v4304 = vunpack.c.h.b16 %v3727
    %v4305 = vunpack.c.l.b16 %v3728
    %v4306 = vunpack.c.h.b16 %v3728
    %v4307 = vunpack.c.l.b16 %v3729
    %v4308 = vunpack.c.h.b16 %v3729
    %v4309 = vunpack.c.l.b16 %v3730
    %v4310 = vunpack.c.h.b16 %v3730
    %v4311 = vunpack.c.l.b16 %v3731
    %v4312 = vunpack.c.h.b16 %v3731
    %v4313 = vunpack.c.l.b16 %v3732
    %v4314 = vunpack.c.h.b16 %v3732
    %v4315 = vunpack.c.l.b16 %v3733
    %v4316 = vunpack.c.h.b16 %v3733
    %v4317 = vunpack.c.l.b16 %v3734
    %v4318 = vunpack.c.h.b16 %v3734
    %v4319 = vunpack.c.l.b16 %v3735
    %v4320 = vunpack.c.h.b16 %v3735
    %v4321 = vunpack.c.l.b16 %v3736
    %v4322 = vunpack.c.h.b16 %v3736
    %v4323 = vunpack.c.l.b16 %v3737
    %v4324 = vunpack.c.h.b16 %v3737
    %v4325 = vunpack.c.l.b16 %v3738
    %v4326 = vunpack.c.h.b16 %v3738
    %v4327 = vunpack.c.l.b16 %v3739
    %v4328 = vunpack.c.h.b16 %v3739
    %v4329 = vunpack.c.l.b16 %v3740
    %v4330 = vunpack.c.h.b16 %v3740
    %v4331 = vunpack.c.l.b16 %v3741
    %v4332 = vunpack.c.h.b16 %v3741
    %v4333 = vunpack.c.l.b16 %v3742
    %v4334 = vunpack.c.h.b16 %v3742
    %v4335 = vunpack.c.l.b16 %v3743
    %v4336 = vunpack.c.h.b16 %v3743
    %v4337 = vunpack.c.l.b16 %v3744
    %v4338 = vunpack.c.h.b16 %v3744
    %v4339 = vunpack.c.l.b16 %v3745
    %v4340 = vunpack.c.h.b16 %v3745
    %v4341 = vunpack.c.l.b16 %v3746
    %v4342 = vunpack.c.h.b16 %v3746
    %v4343 = vunpack.c.l.b16 %v3747
    %v4344 = vunpack.c.h.b16 %v3747
    %v4345 = vunpack.c.l.b16 %v3748
    %v4346 = vunpack.c.h.b16 %v3748
    %v4347 = vunpack.c.l.b16 %v3749
    %v4348 = vunpack.c.h.b16 %v3749
    %v4349 = vunpack.c.l.b16 %v3750
    %v4350 = vunpack.c.h.b16 %v3750
    %v4351 = vunpack.c.l.b16 %v3751
    %v4352 = vunpack.c.h.b16 %v3751
    %v4353 = vunpack.c.l.b16 %v3752
    %v4354 = vunpack.c.h.b16 %v3752
    %v4355 = vunpack.c.l.b16 %v3753
    %v4356 = vunpack.c.h.b16 %v3753
    %v4357 = vunpack.c.l.b16 %v3754
    %v4358 = vunpack.c.h.b16 %v3754
    %v4359 = vunpack.c.l.b16 %v3755
    %v4360 = vunpack.c.h.b16 %v3755
    %v4361 = vunpack.c.l.b16 %v3756
    %v4362 = vunpack.c.h.b16 %v3756
    %v4363 = vunpack.c.l.b16 %v3757
    %v4364 = vunpack.c.h.b16 %v3757
    %v4365 = vunpack.c.l.b16 %v3758
    %v4366 = vunpack.c.h.b16 %v3758
    %v4367 = vunpack.c.l.b16 %v3759
    %v4368 = vunpack.c.h.b16 %v3759
    %v4369 = vunpack.c.l.b16 %v3760
    %v4370 = vunpack.c.h.b16 %v3760
    %v4371 = vunpack.c.l.b16 %v3761
    %v4372 = vunpack.c.h.b16 %v3761
    %v4373 = vunpack.c.l.b16 %v3762
    %v4374 = vunpack.c.h.b16 %v3762
    %v4375 = vunpack.c.l.b16 %v3763
    %v4376 = vunpack.c.h.b16 %v3763
    %v4377 = vunpack.c.l.b16 %v3764
    %v4378 = vunpack.c.h.b16 %v3764
    %v4379 = vunpack.c.l.b16 %v3765
    %v4380 = vunpack.c.h.b16 %v3765
    %v4381 = vunpack.c.l.b16 %v3766
    %v4382 = vunpack.c.h.b16 %v3766
    %v4383 = vunpack.c.l.b16 %v3767
    %v4384 = vunpack.c.h.b16 %v3767
    %v4385 = vunpack.c.l.b16 %v3768
    %v4386 = vunpack.c.h.b16 %v3768
    %v4387 = vunpack.c.l.b16 %v3769
    %v4388 = vunpack.c.h.b16 %v3769
    %v4389 = vunpack.c.l.b16 %v3770
    %v4390 = vunpack.c.h.b16 %v3770
    %v4391 = vunpack.c.l.b16 %v3771
    %v4392 = vunpack.c.h.b16 %v3771
    %v4393 = vunpack.c.l.b16 %v3772
    %v4394 = vunpack.c.h.b16 %v3772
    %v4395 = vunpack.c.l.b16 %v3773
    %v4396 = vunpack.c.h.b16 %v3773
    %v4397 = vunpack.c.l.b16 %v3774
    %v4398 = vunpack.c.h.b16 %v3774
    %v4399 = vunpack.c.l.b16 %v3775
    %v4400 = vunpack.c.h.b16 %v3775
    %v4401 = vunpack.c.l.b16 %v3776
    %v4402 = vunpack.c.h.b16 %v3776
    %v4403 = vunpack.c.l.b16 %v3777
    %v4404 = vunpack.c.h.b16 %v3777
    %v4405 = vunpack.c.l.b16 %v3778
    %v4406 = vunpack.c.h.b16 %v3778
    %v4407 = vunpack.c.l.b16 %v3779
    %v4408 = vunpack.c.h.b16 %v3779
    %v4409 = vunpack.c.l.b16 %v3780
    %v4410 = vunpack.c.h.b16 %v3780
    %v4411 = vunpack.c.l.b16 %v3781
    %v4412 = vunpack.c.h.b16 %v3781
    %v4413 = vunpack.c.l.b16 %v3782
    %v4414 = vunpack.c.h.b16 %v3782
    %v4415 = vunpack.c.l.b16 %v3783
    %v4416 = vunpack.c.h.b16 %v3783
    %v4417 = vunpack.c.l.b16 %v3784
    %v4418 = vunpack.c.h.b16 %v3784
    %v4419 = vunpack.c.l.b16 %v3785
    %v4420 = vunpack.c.h.b16 %v3785
    %v4421 = vunpack.c.l.b16 %v3786
    %v4422 = vunpack.c.h.b16 %v3786
    %v4423 = vunpack.c.l.b16 %v3787
    %v4424 = vunpack.c.h.b16 %v3787
    %v4425 = vunpack.c.l.b16 %v3788
    %v4426 = vunpack.c.h.b16 %v3788
    %v4427 = vunpack.c.l.b16 %v3789
    %v4428 = vunpack.c.h.b16 %v3789
    %v4429 = vunpack.c.l.b16 %v3790
    %v4430 = vunpack.c.h.b16 %v3790
    %v4431 = vunpack.c.l.b16 %v3791
    %v4432 = vunpack.c.h.b16 %v3791
    %v4433 = vunpack.c.l.b16 %v3792
    %v4434 = vunpack.c.h.b16 %v3792
    %v4435 = vunpack.c.l.b16 %v3793
    %v4436 = vunpack.c.h.b16 %v3793
    %v4437 = vunpack.c.l.b16 %v3794
    %v4438 = vunpack.c.h.b16 %v3794
    %v4439 = vunpack.c.l.b16 %v3795
    %v4440 = vunpack.c.h.b16 %v3795
    %v4441 = vunpack.c.l.b16 %v3796
    %v4442 = vunpack.c.h.b16 %v3796
    %v4443 = vunpack.c.l.b16 %v3797
    %v4444 = vunpack.c.h.b16 %v3797
    %v4445 = vunpack.c.l.b16 %v3798
    %v4446 = vunpack.c.h.b16 %v3798
    %v4447 = vunpack.c.l.b16 %v3799
    %v4448 = vunpack.c.h.b16 %v3799
    %v4449 = vunpack.c.l.b16 %v3800
    %v4450 = vunpack.c.h.b16 %v3800
    %v4451 = vunpack.c.l.b16 %v3801
    %v4452 = vunpack.c.h.b16 %v3801
    %v4453 = vunpack.c.l.b16 %v3802
    %v4454 = vunpack.c.h.b16 %v3802
    %v4455 = vunpack.c.l.b16 %v3803
    %v4456 = vunpack.c.h.b16 %v3803
    %v4457 = vunpack.c.l.b16 %v3804
    %v4458 = vunpack.c.h.b16 %v3804
    %v4459 = vunpack.c.l.b16 %v3805
    %v4460 = vunpack.c.h.b16 %v3805
    %v4461 = vunpack.c.l.b16 %v3806
    %v4462 = vunpack.c.h.b16 %v3806
    %v4463 = vunpack.c.l.b16 %v3807
    %v4464 = vunpack.c.h.b16 %v3807
    %v4465 = vunpack.c.l.b16 %v3808
    %v4466 = vunpack.c.h.b16 %v3808
    %v4467 = vunpack.c.l.b16 %v3809
    %v4468 = vunpack.c.h.b16 %v3809
    %v4469 = vunpack.c.l.b16 %v3810
    %v4470 = vunpack.c.h.b16 %v3810
    %v4471 = vunpack.c.l.b16 %v3811
    %v4472 = vunpack.c.h.b16 %v3811
    %v4473 = vunpack.c.l.b16 %v3812
    %v4474 = vunpack.c.h.b16 %v3812
    %v4475 = vunpack.c.l.b16 %v3813
    %v4476 = vunpack.c.h.b16 %v3813
    %v4477 = vunpack.c.l.b16 %v3814
    %v4478 = vunpack.c.h.b16 %v3814
    %v4479 = vunpack.c.l.b16 %v3815
    %v4480 = vunpack.c.h.b16 %v3815
    %v4481 = vunpack.c.l.b16 %v3816
    %v4482 = vunpack.c.h.b16 %v3816
    %v4483 = vunpack.c.l.b16 %v3817
    %v4484 = vunpack.c.h.b16 %v3817
    %v4485 = vunpack.c.l.b16 %v3818
    %v4486 = vunpack.c.h.b16 %v3818
    %v4487 = vunpack.c.l.b16 %v3819
    %v4488 = vunpack.c.h.b16 %v3819
    %v4489 = vunpack.c.l.b16 %v3820
    %v4490 = vunpack.c.h.b16 %v3820
    %v4491 = vunpack.c.l.b16 %v3821
    %v4492 = vunpack.c.h.b16 %v3821
    %v4493 = vunpack.c.l.b16 %v3822
    %v4494 = vunpack.c.h.b16 %v3822
    %v4495 = vunpack.c.l.b16 %v3823
    %v4496 = vunpack.c.h.b16 %v3823
    %v4497 = vunpack.c.l.b16 %v3824
    %v4498 = vunpack.c.h.b16 %v3824
    %v4499 = vunpack.c.l.b16 %v3825
    %v4500 = vunpack.c.h.b16 %v3825
    %v4501 = vunpack.c.l.b16 %v3826
    %v4502 = vunpack.c.h.b16 %v3826
    %v4503 = vunpack.c.l.b16 %v3827
    %v4504 = vunpack.c.h.b16 %v3827
    %v4505 = vunpack.c.l.b16 %v3828
    %v4506 = vunpack.c.h.b16 %v3828
    %v4507 = vunpack.c.l.b16 %v3829
    %v4508 = vunpack.c.h.b16 %v3829
    %v4509 = vunpack.c.l.b16 %v3830
    %v4510 = vunpack.c.h.b16 %v3830
    %v4511 = vunpack.c.l.b16 %v3831
    %v4512 = vunpack.c.h.b16 %v3831
    %v4513 = vunpack.c.l.b16 %v3832
    %v4514 = vunpack.c.h.b16 %v3832
    %v4515 = vunpack.c.l.b16 %v3833
    %v4516 = vunpack.c.h.b16 %v3833
    %v4517 = vunpack.c.l.b16 %v3834
    %v4518 = vunpack.c.h.b16 %v3834
    %v4519 = vunpack.c.l.b16 %v3835
    %v4520 = vunpack.c.h.b16 %v3835
    %v4521 = vunpack.c.l.b16 %v3836
    %v4522 = vunpack.c.h.b16 %v3836
    %v4523 = vunpack.c.l.b16 %v3837
    %v4524 = vunpack.c.h.b16 %v3837
    %v4525 = vunpack.c.l.b16 %v3838
    %v4526 = vunpack.c.h.b16 %v3838
    %v4527 = vunpack.c.l.b16 %v3839
    %v4528 = vunpack.c.h.b16 %v3839
    %v4529 = vunpack.c.l.b16 %v3840
    %v4530 = vunpack.c.h.b16 %v3840
    %v4531 = vunpack.c.l.b16 %v3841
    %v4532 = vunpack.c.h.b16 %v3841
    %v4533 = vunpack.c.l.b16 %v3842
    %v4534 = vunpack.c.h.b16 %v3842
    %v4535 = vunpack.c.l.b16 %v3843
    %v4536 = vunpack.c.h.b16 %v3843
    %v4537 = vunpack.c.l.b16 %v3844
    %v4538 = vunpack.c.h.b16 %v3844
    %v4539 = vunpack.c.l.b16 %v3845
    %v4540 = vunpack.c.h.b16 %v3845
    %v4541 = vunpack.c.l.b16 %v3846
    %v4542 = vunpack.c.h.b16 %v3846
    %v4543 = vunpack.c.l.b16 %v3847
    %v4544 = vunpack.c.h.b16 %v3847
    %v4545 = vunpack.c.l.b16 %v3848
    %v4546 = vunpack.c.h.b16 %v3848
    %v4547 = vunpack.c.l.b16 %v3849
    %v4548 = vunpack.c.h.b16 %v3849
    %v4549 = vunpack.c.l.b16 %v3850
    %v4550 = vunpack.c.h.b16 %v3850
    %v4551 = vunpack.c.l.b16 %v3851
    %v4552 = vunpack.c.h.b16 %v3851
    %v4553 = vunpack.c.l.b16 %v3852
    %v4554 = vunpack.c.h.b16 %v3852
    %v4555 = vunpack.c.l.b16 %v3853
    %v4556 = vunpack.c.h.b16 %v3853
    %v4557 = vunpack.c.l.b16 %v3854
    %v4558 = vunpack.c.h.b16 %v3854
    %v4559 = vunpack.c.l.b16 %v3855
    %v4560 = vunpack.c.h.b16 %v3855
    %v4561 = vunpack.c.l.b16 %v3856
    %v4562 = vunpack.c.h.b16 %v3856
    %v4563 = vunpack.c.l.b16 %v3857
    %v4564 = vunpack.c.h.b16 %v3857
    %v4565 = vunpack.c.l.b16 %v3858
    %v4566 = vunpack.c.h.b16 %v3858
    %v4567 = vunpack.c.l.b16 %v3859
    %v4568 = vunpack.c.h.b16 %v3859
    %v4569 = vunpack.c.l.b16 %v3860
    %v4570 = vunpack.c.h.b16 %v3860
    %v4571 = vunpack.c.l.b16 %v3861
    %v4572 = vunpack.c.h.b16 %v3861
    %v4573 = vunpack.c.l.b16 %v3862
    %v4574 = vunpack.c.h.b16 %v3862
    %v4575 = vunpack.c.l.b16 %v3863
    %v4576 = vunpack.c.h.b16 %v3863
    %v4577 = vunpack.c.l.b16 %v3864
    %v4578 = vunpack.c.h.b16 %v3864
    %v4579 = vunpack.c.l.b16 %v3865
    %v4580 = vunpack.c.h.b16 %v3865
    %v4581 = vunpack.c.l.b16 %v3866
    %v4582 = vunpack.c.h.b16 %v3866
    %v4583 = vunpack.c.l.b16 %v3867
    %v4584 = vunpack.c.h.b16 %v3867
    %v4585 = vunpack.c.l.b16 %v3868
    %v4586 = vunpack.c.h.b16 %v3868
    %v4587 = vunpack.c.l.b16 %v3869
    %v4588 = vunpack.c.h.b16 %v3869
    %v4589 = vunpack.c.l.b16 %v3870
    %v4590 = vunpack.c.h.b16 %v3870
    %v4591 = vunpack.c.l.b16 %v3871
    %v4592 = vunpack.c.h.b16 %v3871
    %v4593 = vunpack.c.l.b16 %v3872
    %v4594 = vunpack.c.h.b16 %v3872
    %v4595 = vunpack.c.l.b16 %v3873
    %v4596 = vunpack.c.h.b16 %v3873
    %v4597 = vunpack.c.l.b16 %v3874
    %v4598 = vunpack.c.h.b16 %v3874
    %v4599 = vunpack.c.l.b16 %v3875
    %v4600 = vunpack.c.h.b16 %v3875
    %v4601 = vunpack.c.l.b16 %v3876
    %v4602 = vunpack.c.h.b16 %v3876
    %v4603 = vunpack.c.l.b16 %v3877
    %v4604 = vunpack.c.h.b16 %v3877
    %v4605 = vunpack.c.l.b16 %v3878
    %v4606 = vunpack.c.h.b16 %v3878
    %v4607 = vunpack.c.l.b16 %v3879
    %v4608 = vunpack.c.h.b16 %v3879
    %v4609 = vunpack.c.l.b16 %v3880
    %v4610 = vunpack.c.h.b16 %v3880
    %v4611 = vunpack.c.l.b16 %v3881
    %v4612 = vunpack.c.h.b16 %v3881
    %v4613 = vunpack.c.l.b16 %v3882
    %v4614 = vunpack.c.h.b16 %v3882
    %v4615 = vunpack.c.l.b16 %v3883
    %v4616 = vunpack.c.h.b16 %v3883
    %v4617 = vunpack.c.l.b16 %v3884
    %v4618 = vunpack.c.h.b16 %v3884
    %v4619 = vunpack.c.l.b16 %v3885
    %v4620 = vunpack.c.h.b16 %v3885
    %v4621 = vunpack.c.l.b16 %v3886
    %v4622 = vunpack.c.h.b16 %v3886
    %v4623 = vunpack.c.l.b16 %v3887
    %v4624 = vunpack.c.h.b16 %v3887
    %v4625 = vunpack.c.l.b16 %v3888
    %v4626 = vunpack.c.h.b16 %v3888
    %v4627 = vunpack.c.l.b16 %v3889
    %v4628 = vunpack.c.h.b16 %v3889
    %v4629 = vunpack.c.l.b16 %v3890
    %v4630 = vunpack.c.h.b16 %v3890
    %v4631 = vunpack.c.l.b16 %v3891
    %v4632 = vunpack.c.h.b16 %v3891
    %v4633 = vunpack.c.l.b16 %v3892
    %v4634 = vunpack.c.h.b16 %v3892
    %v4635 = vunpack.c.l.b16 %v3893
    %v4636 = vunpack.c.h.b16 %v3893
    %v4637 = vunpack.c.l.b16 %v3894
    %v4638 = vunpack.c.h.b16 %v3894
    %v4639 = vunpack.c.l.b16 %v3895
    %v4640 = vunpack.c.h.b16 %v3895
    %v4641 = vunpack.c.l.b16 %v3896
    %v4642 = vunpack.c.h.b16 %v3896
    %v4643 = vunpack.c.l.b16 %v3897
    %v4644 = vunpack.c.h.b16 %v3897
    %v4645 = vunpack.c.l.b16 %v3898
    %v4646 = vunpack.c.h.b16 %v3898
    %v4647 = vunpack.c.l.b16 %v3899
    %v4648 = vunpack.c.h.b16 %v3899
    %v4649 = vunpack.c.l.b16 %v3900
    %v4650 = vunpack.c.h.b16 %v3900
    %v4651 = vunpack.c.l.b16 %v3901
    %v4652 = vunpack.c.h.b16 %v3901
    %v4653 = vunpack.c.l.b16 %v3902
    %v4654 = vunpack.c.h.b16 %v3902
    %v4655 = vunpack.c.l.b16 %v3903
    %v4656 = vunpack.c.h.b16 %v3903
    %v4657 = vunpack.c.l.b16 %v3904
    %v4658 = vunpack.c.h.b16 %v3904
    %v4659 = vunpack.c.l.b16 %v3905
    %v4660 = vunpack.c.h.b16 %v3905
    %v4661 = vunpack.c.l.b16 %v3906
    %v4662 = vunpack.c.h.b16 %v3906
    %v4663 = vunpack.c.l.b16 %v3907
    %v4664 = vunpack.c.h.b16 %v3907
    %v4665 = vunpack.c.l.b16 %v3908
    %v4666 = vunpack.c.h.b16 %v3908
    %v4667 = vunpack.c.l.b16 %v3909
    %v4668 = vunpack.c.h.b16 %v3909
    %v4669 = vunpack.c.l.b16 %v3910
    %v4670 = vunpack.c.h.b16 %v3910
    %v4671 = vunpack.c.l.b16 %v3911
    %v4672 = vunpack.c.h.b16 %v3911
    %v4673 = vunpack.c.l.b16 %v3912
    %v4674 = vunpack.c.h.b16 %v3912
    %v4675 = vunpack.c.l.b16 %v3913
    %v4676 = vunpack.c.h.b16 %v3913
    %v4677 = vunpack.c.l.b16 %v3914
    %v4678 = vunpack.c.h.b16 %v3914
    %v4679 = vunpack.c.l.b16 %v3915
    %v4680 = vunpack.c.h.b16 %v3915
    %v4681 = vunpack.c.l.b16 %v3916
    %v4682 = vunpack.c.h.b16 %v3916
    %v4683 = vunpack.c.l.b16 %v3917
    %v4684 = vunpack.c.h.b16 %v3917
    %v4685 = vunpack.c.l.b16 %v3918
    %v4686 = vunpack.c.h.b16 %v3918
    %v4687 = vunpack.c.l.b16 %v3919
    %v4688 = vunpack.c.h.b16 %v3919
    %v4689 = vunpack.c.l.b16 %v3920
    %v4690 = vunpack.c.h.b16 %v3920
    %v4691 = vunpack.c.l.b16 %v3921
    %v4692 = vunpack.c.h.b16 %v3921
    %v4693 = vunpack.c.l.b16 %v3922
    %v4694 = vunpack.c.h.b16 %v3922
    %v4695 = vunpack.c.l.b16 %v3923
    %v4696 = vunpack.c.h.b16 %v3923
    %v4697 = vunpack.c.l.b16 %v3924
    %v4698 = vunpack.c.h.b16 %v3924
    %v4699 = vunpack.c.l.b16 %v3925
    %v4700 = vunpack.c.h.b16 %v3925
    %v4701 = vunpack.c.l.b16 %v3926
    %v4702 = vunpack.c.h.b16 %v3926
    %v4703 = vunpack.c.l.b16 %v3927
    %v4704 = vunpack.c.h.b16 %v3927
    %v4705 = vunpack.c.l.b16 %v3928
    %v4706 = vunpack.c.h.b16 %v3928
    %v4707 = vpack.c.b16 %v4199, %v4195
    %v4708 = vpack.c.b16 %v4200, %v4196
    %v4709 = vpack.c.b16 %v4201, %v4197
    %v4710 = vpack.c.b16 %v4202, %v4198
    %v4711 = vpack.c.b16 %v4207, %v4203
    %v4712 = vpack.c.b16 %v4208, %v4204
    %v4713 = vpack.c.b16 %v4209, %v4205
    %v4714 = vpack.c.b16 %v4210, %v4206
    %v4715 = vpack.c.b16 %v4215, %v4211
    %v4716 = vpack.c.b16 %v4216, %v4212
    %v4717 = vpack.c.b16 %v4217, %v4213
    %v4718 = vpack.c.b16 %v4218, %v4214
    %v4719 = vpack.c.b16 %v4223, %v4219
    %v4720 = vpack.c.b16 %v4224, %v4220
    %v4721 = vpack.c.b16 %v4225, %v4221
    %v4722 = vpack.c.b16 %v4226, %v4222
    %v4723 = vpack.c.b16 %v4231, %v4227
    %v4724 = vpack.c.b16 %v4232, %v4228
    %v4725 = vpack.c.b16 %v4233, %v4229
    %v4726 = vpack.c.b16 %v4234, %v4230
    %v4727 = vpack.c.b16 %v4239, %v4235
    %v4728 = vpack.c.b16 %v4240, %v4236
    %v4729 = vpack.c.b16 %v4241, %v4237
    %v4730 = vpack.c.b16 %v4242, %v4238
    %v4731 = vpack.c.b16 %v4247, %v4243
    %v4732 = vpack.c.b16 %v4248, %v4244
    %v4733 = vpack.c.b16 %v4249, %v4245
    %v4734 = vpack.c.b16 %v4250, %v4246
    %v4735 = vpack.c.b16 %v4255, %v4251
    %v4736 = vpack.c.b16 %v4256, %v4252
    %v4737 = vpack.c.b16 %v4257, %v4253
    %v4738 = vpack.c.b16 %v4258, %v4254
    %v4739 = vpack.c.b16 %v4263, %v4259
    %v4740 = vpack.c.b16 %v4264, %v4260
    %v4741 = vpack.c.b16 %v4265, %v4261
    %v4742 = vpack.c.b16 %v4266, %v4262
    %v4743 = vpack.c.b16 %v4271, %v4267
    %v4744 = vpack.c.b16 %v4272, %v4268
    %v4745 = vpack.c.b16 %v4273, %v4269
    %v4746 = vpack.c.b16 %v4274, %v4270
    %v4747 = vpack.c.b16 %v4279, %v4275
    %v4748 = vpack.c.b16 %v4280, %v4276
    %v4749 = vpack.c.b16 %v4281, %v4277
    %v4750 = vpack.c.b16 %v4282, %v4278
    %v4751 = vpack.c.b16 %v4287, %v4283
    %v4752 = vpack.c.b16 %v4288, %v4284
    %v4753 = vpack.c.b16 %v4289, %v4285
    %v4754 = vpack.c.b16 %v4290, %v4286
    %v4755 = vpack.c.b16 %v4295, %v4291
    %v4756 = vpack.c.b16 %v4296, %v4292
    %v4757 = vpack.c.b16 %v4297, %v4293
    %v4758 = vpack.c.b16 %v4298, %v4294
    %v4759 = vpack.c.b16 %v4303, %v4299
    %v4760 = vpack.c.b16 %v4304, %v4300
    %v4761 = vpack.c.b16 %v4305, %v4301
    %v4762 = vpack.c.b16 %v4306, %v4302
    %v4763 = vpack.c.b16 %v4311, %v4307
    %v4764 = vpack.c.b16 %v4312, %v4308
    %v4765 = vpack.c.b16 %v4313, %v4309
    %v4766 = vpack.c.b16 %v4314, %v4310
    %v4767 = vpack.c.b16 %v4319, %v4315
    %v4768 = vpack.c.b16 %v4320, %v4316
    %v4769 = vpack.c.b16 %v4321, %v4317
    %v4770 = vpack.c.b16 %v4322, %v4318
    %v4771 = vpack.c.b16 %v4327, %v4323
    %v4772 = vpack.c.b16 %v4328, %v4324
    %v4773 = vpack.c.b16 %v4329, %v4325
    %v4774 = vpack.c.b16 %v4330, %v4326
    %v4775 = vpack.c.b16 %v4335, %v4331
    %v4776 = vpack.c.b16 %v4336, %v4332
    %v4777 = vpack.c.b16 %v4337, %v4333
    %v4778 = vpack.c.b16 %v4338, %v4334
    %v4779 = vpack.c.b16 %v4343, %v4339
    %v4780 = vpack.c.b16 %v4344, %v4340
    %v4781 = vpack.c.b16 %v4345, %v4341
    %v4782 = vpack.c.b16 %v4346, %v4342
    %v4783 = vpack.c.b16 %v4351, %v4347
    %v4784 = vpack.c.b16 %v4352, %v4348
    %v4785 = vpack.c.b16 %v4353, %v4349
    %v4786 = vpack.c.b16 %v4354, %v4350
    %v4787 = vpack.c.b16 %v4359, %v4355
    %v4788 = vpack.c.b16 %v4360, %v4356
    %v4789 = vpack.c.b16 %v4361, %v4357
    %v4790 = vpack.c.b16 %v4362, %v4358
    %v4791 = vpack.c.b16 %v4367, %v4363
    %v4792 = vpack.c.b16 %v4368, %v4364
    %v4793 = vpack.c.b16 %v4369, %v4365
    %v4794 = vpack.c.b16 %v4370, %v4366
    %v4795 = vpack.c.b16 %v4375, %v4371
    %v4796 = vpack.c.b16 %v4376, %v4372
    %v4797 = vpack.c.b16 %v4377, %v4373
    %v4798 = vpack.c.b16 %v4378, %v4374
    %v4799 = vpack.c.b16 %v4383, %v4379
    %v4800 = vpack.c.b16 %v4384, %v4380
    %v4801 = vpack.c.b16 %v4385, %v4381
    %v4802 = vpack.c.b16 %v4386, %v4382
    %v4803 = vpack.c.b16 %v4391, %v4387
    %v4804 = vpack.c.b16 %v4392, %v4388
    %v4805 = vpack.c.b16 %v4393, %v4389
    %v4806 = vpack.c.b16 %v4394, %v4390
    %v4807 = vpack.c.b16 %v4399, %v4395
    %v4808 = vpack.c.b16 %v4400, %v4396
    %v4809 = vpack.c.b16 %v4401, %v4397
    %v4810 = vpack.c.b16 %v4402, %v4398
    %v4811 = vpack.c.b16 %v4407, %v4403
    %v4812 = vpack.c.b16 %v4408, %v4404
    %v4813 = vpack.c.b16 %v4409, %v4405
    %v4814 = vpack.c.b16 %v4410, %v4406
    %v4815 = vpack.c.b16 %v4415, %v4411
    %v4816 = vpack.c.b16 %v4416, %v4412
    %v4817 = vpack.c.b16 %v4417, %v4413
    %v4818 = vpack.c.b16 %v4418, %v4414
    %v4819 = vpack.c.b16 %v4423, %v4419
    %v4820 = vpack.c.b16 %v4424, %v4420
    %v4821 = vpack.c.b16 %v4425, %v4421
    %v4822 = vpack.c.b16 %v4426, %v4422
    %v4823 = vpack.c.b16 %v4431, %v4427
    %v4824 = vpack.c.b16 %v4432, %v4428
    %v4825 = vpack.c.b16 %v4433, %v4429
    %v4826 = vpack.c.b16 %v4434, %v4430
    %v4827 = vpack.c.b16 %v4439, %v4435
    %v4828 = vpack.c.b16 %v4440, %v4436
    %v4829 = vpack.c.b16 %v4441, %v4437
    %v4830 = vpack.c.b16 %v4442, %v4438
    %v4831 = vpack.c.b16 %v4447, %v4443
    %v4832 = vpack.c.b16 %v4448, %v4444
    %v4833 = vpack.c.b16 %v4449, %v4445
    %v4834 = vpack.c.b16 %v4450, %v4446
    %v4835 = vpack.c.b16 %v4455, %v4451
    %v4836 = vpack.c.b16 %v4456, %v4452
    %v4837 = vpack.c.b16 %v4457, %v4453
    %v4838 = vpack.c.b16 %v4458, %v4454
    %v4839 = vpack.c.b16 %v4463, %v4459
    %v4840 = vpack.c.b16 %v4464, %v4460
    %v4841 = vpack.c.b16 %v4465, %v4461
    %v4842 = vpack.c.b16 %v4466, %v4462
    %v4843 = vpack.c.b16 %v4471, %v4467
    %v4844 = vpack.c.b16 %v4472, %v4468
    %v4845 = vpack.c.b16 %v4473, %v4469
    %v4846 = vpack.c.b16 %v4474, %v4470
    %v4847 = vpack.c.b16 %v4479, %v4475
    %v4848 = vpack.c.b16 %v4480, %v4476
    %v4849 = vpack.c.b16 %v4481, %v4477
    %v4850 = vpack.c.b16 %v4482, %v4478
    %v4851 = vpack.c.b16 %v4487, %v4483
    %v4852 = vpack.c.b16 %v4488, %v4484
    %v4853 = vpack.c.b16 %v4489, %v4485
    %v4854 = vpack.c.b16 %v4490, %v4486
    %v4855 = vpack.c.b16 %v4495, %v4491
    %v4856 = vpack.c.b16 %v4496, %v4492
    %v4857 = vpack.c.b16 %v4497, %v4493
    %v4858 = vpack.c.b16 %v4498, %v4494
    %v4859 = vpack.c.b16 %v4503, %v4499
    %v4860 = vpack.c.b16 %v4504, %v4500
    %v4861 = vpack.c.b16 %v4505, %v4501
    %v4862 = vpack.c.b16 %v4506, %v4502
    %v4863 = vpack.c.b16 %v4511, %v4507
    %v4864 = vpack.c.b16 %v4512, %v4508
    %v4865 = vpack.c.b16 %v4513, %v4509
    %v4866 = vpack.c.b16 %v4514, %v4510
    %v4867 = vpack.c.b16 %v4519, %v4515
    %v4868 = vpack.c.b16 %v4520, %v4516
    %v4869 = vpack.c.b16 %v4521, %v4517
    %v4870 = vpack.c.b16 %v4522, %v4518
    %v4871 = vpack.c.b16 %v4527, %v4523
    %v4872 = vpack.c.b16 %v4528, %v4524
    %v4873 = vpack.c.b16 %v4529, %v4525
    %v4874 = vpack.c.b16 %v4530, %v4526
    %v4875 = vpack.c.b16 %v4535, %v4531
    %v4876 = vpack.c.b16 %v4536, %v4532
    %v4877 = vpack.c.b16 %v4537, %v4533
    %v4878 = vpack.c.b16 %v4538, %v4534
    %v4879 = vpack.c.b16 %v4543, %v4539
    %v4880 = vpack.c.b16 %v4544, %v4540
    %v4881 = vpack.c.b16 %v4545, %v4541
    %v4882 = vpack.c.b16 %v4546, %v4542
    %v4883 = vpack.c.b16 %v4551, %v4547
    %v4884 = vpack.c.b16 %v4552, %v4548
    %v4885 = vpack.c.b16 %v4553, %v4549
    %v4886 = vpack.c.b16 %v4554, %v4550
    %v4887 = vpack.c.b16 %v4559, %v4555
    %v4888 = vpack.c.b16 %v4560, %v4556
    %v4889 = vpack.c.b16 %v4561, %v4557
    %v4890 = vpack.c.b16 %v4562, %v4558
    %v4891 = vpack.c.b16 %v4567, %v4563
    %v4892 = vpack.c.b16 %v4568, %v4564
    %v4893 = vpack.c.b16 %v4569, %v4565
    %v4894 = vpack.c.b16 %v4570, %v4566
    %v4895 = vpack.c.b16 %v4575, %v4571
    %v4896 = vpack.c.b16 %v4576, %v4572
    %v4897 = vpack.c.b16 %v4577, %v4573
    %v4898 = vpack.c.b16 %v4578, %v4574
    %v4899 = vpack.c.b16 %v4583, %v4579
    %v4900 = vpack.c.b16 %v4584, %v4580
    %v4901 = vpack.c.b16 %v4585, %v4581
    %v4902 = vpack.c.b16 %v4586, %v4582
    %v4903 = vpack.c.b16 %v4591, %v4587
    %v4904 = vpack.c.b16 %v4592, %v4588
    %v4905 = vpack.c.b16 %v4593, %v4589
    %v4906 = vpack.c.b16 %v4594, %v4590
    %v4907 = vpack.c.b16 %v4599, %v4595
    %v4908 = vpack.c.b16 %v4600, %v4596
    %v4909 = vpack.c.b16 %v4601, %v4597
    %v4910 = vpack.c.b16 %v4602, %v4598
    %v4911 = vpack.c.b16 %v4607, %v4603
    %v4912 = vpack.c.b16 %v4608, %v4604
    %v4913 = vpack.c.b16 %v4609, %v4605
    %v4914 = vpack.c.b16 %v4610, %v4606
    %v4915 = vpack.c.b16 %v4615, %v4611
    %v4916 = vpack.c.b16 %v4616, %v4612
    %v4917 = vpack.c.b16 %v4617, %v4613
    %v4918 = vpack.c.b16 %v4618, %v4614
    %v4919 = vpack.c.b16 %v4623, %v4619
    %v4920 = vpack.c.b16 %v4624, %v4620
    %v4921 = vpack.c.b16 %v4625, %v4621
    %v4922 = vpack.c.b16 %v4626, %v4622
    %v4923 = vpack.c.b16 %v4631, %v4627
    %v4924 = vpack.c.b16 %v4632, %v4628
    %v4925 = vpack.c.b16 %v4633, %v4629
    %v4926 = vpack.c.b16 %v4634, %v4630
    %v4927 = vpack.c.b16 %v4639, %v4635
    %v4928 = vpack.c.b16 %v4640, %v4636
    %v4929 = vpack.c.b16 %v4641, %v4637
    %v4930 = vpack.c.b16 %v4642, %v4638
    %v4931 = vpack.c.b16 %v4647, %v4643
    %v4932 = vpack.c.b16 %v4648, %v4644
    %v4933 = vpack.c.b16 %v4649, %v4645
    %v4934 = vpack.c.b16 %v4650, %v4646
    %v4935 = vpack.c.b16 %v4655, %v4651
    %v4936 = vpack.c.b16 %v4656, %v4652
    %v4937 = vpack.c.b16 %v4657, %v4653
    %v4938 = vpack.c.b16 %v4658, %v4654
    %v4939 = vpack.c.b16 %v4663, %v4659
    %v4940 = vpack.c.b16 %v4664, %v4660
    %v4941 = vpack.c.b16 %v4665, %v4661
    %v4942 = vpack.c.b16 %v4666, %v4662
    %v4943 = vpack.c.b16 %v4671, %v4667
    %v4944 = vpack.c.b16 %v4672, %v4668
    %v4945 = vpack.c.b16 %v4673, %v4669
    %v4946 = vpack.c.b16 %v4674, %v4670
    %v4947 = vpack.c.b16 %v4679, %v4675
    %v4948 = vpack.c.b16 %v4680, %v4676
    %v4949 = vpack.c.b16 %v4681, %v4677
    %v4950 = vpack.c.b16 %v4682, %v4678
    %v4951 = vpack.c.b16 %v4687, %v4683
    %v4952 = vpack.c.b16 %v4688, %v4684
    %v4953 = vpack.c.b16 %v4689, %v4685
    %v4954 = vpack.c.b16 %v4690, %v4686
    %v4955 = vpack.c.b16 %v4695, %v4691
    %v4956 = vpack.c.b16 %v4696, %v4692
    %v4957 = vpack.c.b16 %v4697, %v4693
    %v4958 = vpack.c.b16 %v4698, %v4694
    %v4959 = vpack.c.b16 %v4703, %v4699
    %v4960 = vpack.c.b16 %v4704, %v4700
    %v4961 = vpack.c.b16 %v4705, %v4701
    %v4962 = vpack.c.b16 %v4706, %v4702
    %5219 = vmatpush.bf16.msra.mxu0 %v4735
    %5220 = vmatpush.bf16.msra.mxu0 %v4731
    %5221 = vmatpush.bf16.msra.mxu0 %v4727
    %5222 = vmatpush.bf16.msra.mxu0 %v4723
    %5223 = vmatpush.bf16.msra.mxu0 %v4719
    %5224 = vmatpush.bf16.msra.mxu0 %v4715
    %5225 = vmatpush.bf16.msra.mxu0 %v4711
    %5226 = vmatpush.bf16.msra.mxu0 %v4707
    %5227 = vmatmul.bf16.gmra.mxu0 %v3665
    %v5228 = vpop.f32.mrf.mxu0
    %v5229 = vadd.f32 %v3931, %v5228
    %v5230 = vpop.f32.mrf.mxu0
    %v5231 = vadd.f32 %v3931, %v5230
    %5232 = vdwg.mxu0
    %5233 = vmatpush.bf16.msra.mxu0 %v4767
    %5234 = vmatpush.bf16.msra.mxu0 %v4763
    %5235 = vmatpush.bf16.msra.mxu0 %v4759
    %5236 = vmatpush.bf16.msra.mxu0 %v4755
    %5237 = vmatpush.bf16.msra.mxu0 %v4751
    %5238 = vmatpush.bf16.msra.mxu0 %v4747
    %5239 = vmatpush.bf16.msra.mxu0 %v4743
    %5240 = vmatpush.bf16.msra.mxu0 %v4739
    %5241 = vmatmul.bf16.gmra.mxu0 %v3666
    %v5242 = vpop.f32.mrf.mxu0
    %v5243 = vadd.f32 %v5229, %v5242
    %v5244 = vpop.f32.mrf.mxu0
    %v5245 = vadd.f32 %v5231, %v5244
    %5246 = vdwg.mxu0
    %5247 = vmatpush.bf16.msra.mxu0 %v4799
    %5248 = vmatpush.bf16.msra.mxu0 %v4795
    %5249 = vmatpush.bf16.msra.mxu0 %v4791
    %5250 = vmatpush.bf16.msra.mxu0 %v4787
    %5251 = vmatpush.bf16.msra.mxu0 %v4783
    %5252 = vmatpush.bf16.msra.mxu0 %v4779
    %5253 = vmatpush.bf16.msra.mxu0 %v4775
    %5254 = vmatpush.bf16.msra.mxu0 %v4771
    %5255 = vmatmul.bf16.gmra.mxu0 %v3667
    %v5256 = vpop.f32.mrf.mxu0
    %v5257 = vadd.f32 %v5243, %v5256
    %v5258 = vpop.f32.mrf.mxu0
    %v5259 = vadd.f32 %v5245, %v5258
    %5260 = vdwg.mxu0
    %5261 = vmatpush.bf16.msra.mxu0 %v4831
    %5262 = vmatpush.bf16.msra.mxu0 %v4827
    %5263 = vmatpush.bf16.msra.mxu0 %v4823
    %5264 = vmatpush.bf16.msra.mxu0 %v4819
    %5265 = vmatpush.bf16.msra.mxu0 %v4815
    %5266 = vmatpush.bf16.msra.mxu0 %v4811
    %5267 = vmatpush.bf16.msra.mxu0 %v4807
    %5268 = vmatpush.bf16.msra.mxu0 %v4803
    %5269 = vmatmul.bf16.gmra.mxu0 %v3668
    %v5270 = vpop.f32.mrf.mxu0
    %v5271 = vadd.f32 %v5257, %v5270
    %v5272 = vpop.f32.mrf.mxu0
    %v5273 = vadd.f32 %v5259, %v5272
    %5274 = vdwg.mxu0
    %5275 = vmatpush.bf16.msra.mxu0 %v4863
    %5276 = vmatpush.bf16.msra.mxu0 %v4859
    %5277 = vmatpush.bf16.msra.mxu0 %v4855
    %5278 = vmatpush.bf16.msra.mxu0 %v4851
    %5279 = vmatpush.bf16.msra.mxu0 %v4847
    %5280 = vmatpush.bf16.msra.mxu0 %v4843
    %5281 = vmatpush.bf16.msra.mxu0 %v4839
    %5282 = vmatpush.bf16.msra.mxu0 %v4835
    %5283 = vmatmul.bf16.gmra.mxu0 %v3669
    %v5284 = vpop.f32.mrf.mxu0
    %v5285 = vadd.f32 %v5271, %v5284
    %v5286 = vpop.f32.mrf.mxu0
    %v5287 = vadd.f32 %v5273, %v5286
    %5288 = vdwg.mxu0
    %5289 = vmatpush.bf16.msra.mxu0 %v4895
    %5290 = vmatpush.bf16.msra.mxu0 %v4891
    %5291 = vmatpush.bf16.msra.mxu0 %v4887
    %5292 = vmatpush.bf16.msra.mxu0 %v4883
    %5293 = vmatpush.bf16.msra.mxu0 %v4879
    %5294 = vmatpush.bf16.msra.mxu0 %v4875
    %5295 = vmatpush.bf16.msra.mxu0 %v4871
    %5296 = vmatpush.bf16.msra.mxu0 %v4867
    %5297 = vmatmul.bf16.gmra.mxu0 %v3670
    %v5298 = vpop.f32.mrf.mxu0
    %v5299 = vadd.f32 %v5285, %v5298
    %v5300 = vpop.f32.mrf.mxu0
    %v5301 = vadd.f32 %v5287, %v5300
    %5302 = vdwg.mxu0
    %5303 = vmatpush.bf16.msra.mxu0 %v4927
    %5304 = vmatpush.bf16.msra.mxu0 %v4923
    %5305 = vmatpush.bf16.msra.mxu0 %v4919
    %5306 = vmatpush.bf16.msra.mxu0 %v4915
    %5307 = vmatpush.bf16.msra.mxu0 %v4911
    %5308 = vmatpush.bf16.msra.mxu0 %v4907
    %5309 = vmatpush.bf16.msra.mxu0 %v4903
    %5310 = vmatpush.bf16.msra.mxu0 %v4899
    %5311 = vmatmul.bf16.gmra.mxu0 %v3671
    %v5312 = vpop.f32.mrf.mxu0
    %v5313 = vadd.f32 %v5299, %v5312
    %v5314 = vpop.f32.mrf.mxu0
    %v5315 = vadd.f32 %v5301, %v5314
    %5316 = vdwg.mxu0
    %5317 = vmatpush.bf16.msra.mxu0 %v4959
    %5318 = vmatpush.bf16.msra.mxu0 %v4955
    %5319 = vmatpush.bf16.msra.mxu0 %v4951
    %5320 = vmatpush.bf16.msra.mxu0 %v4947
    %5321 = vmatpush.bf16.msra.mxu0 %v4943
    %5322 = vmatpush.bf16.msra.mxu0 %v4939
    %5323 = vmatpush.bf16.msra.mxu0 %v4935
    %5324 = vmatpush.bf16.msra.mxu0 %v4931
    %5325 = vmatmul.bf16.gmra.mxu0 %v3672
    %v5326 = vpop.f32.mrf.mxu0
    %v5327 = vadd.f32 %v5313, %v5326
    %v5328 = vpop.f32.mrf.mxu0
    %v5329 = vadd.f32 %v5315, %v5328
    %5330 = vdwg.mxu0
    %5331 = vmatpush.bf16.msra.mxu0 %v4736
    %5332 = vmatpush.bf16.msra.mxu0 %v4732
    %5333 = vmatpush.bf16.msra.mxu0 %v4728
    %5334 = vmatpush.bf16.msra.mxu0 %v4724
    %5335 = vmatpush.bf16.msra.mxu0 %v4720
    %5336 = vmatpush.bf16.msra.mxu0 %v4716
    %5337 = vmatpush.bf16.msra.mxu0 %v4712
    %5338 = vmatpush.bf16.msra.mxu0 %v4708
    %5339 = vmatmul.bf16.gmra.mxu0 %v3665
    %v5340 = vpop.f32.mrf.mxu0
    %v5341 = vadd.f32 %v3932, %v5340
    %v5342 = vpop.f32.mrf.mxu0
    %v5343 = vadd.f32 %v3932, %v5342
    %5344 = vdwg.mxu0
    %5345 = vmatpush.bf16.msra.mxu0 %v4768
    %5346 = vmatpush.bf16.msra.mxu0 %v4764
    %5347 = vmatpush.bf16.msra.mxu0 %v4760
    %5348 = vmatpush.bf16.msra.mxu0 %v4756
    %5349 = vmatpush.bf16.msra.mxu0 %v4752
    %5350 = vmatpush.bf16.msra.mxu0 %v4748
    %5351 = vmatpush.bf16.msra.mxu0 %v4744
    %5352 = vmatpush.bf16.msra.mxu0 %v4740
    %5353 = vmatmul.bf16.gmra.mxu0 %v3666
    %v5354 = vpop.f32.mrf.mxu0
    %v5355 = vadd.f32 %v5341, %v5354
    %v5356 = vpop.f32.mrf.mxu0
    %v5357 = vadd.f32 %v5343, %v5356
    %5358 = vdwg.mxu0
    %5359 = vmatpush.bf16.msra.mxu0 %v4800
    %5360 = vmatpush.bf16.msra.mxu0 %v4796
    %5361 = vmatpush.bf16.msra.mxu0 %v4792
    %5362 = vmatpush.bf16.msra.mxu0 %v4788
    %5363 = vmatpush.bf16.msra.mxu0 %v4784
    %5364 = vmatpush.bf16.msra.mxu0 %v4780
    %5365 = vmatpush.bf16.msra.mxu0 %v4776
    %5366 = vmatpush.bf16.msra.mxu0 %v4772
    %5367 = vmatmul.bf16.gmra.mxu0 %v3667
    %v5368 = vpop.f32.mrf.mxu0
    %v5369 = vadd.f32 %v5355, %v5368
    %v5370 = vpop.f32.mrf.mxu0
    %v5371 = vadd.f32 %v5357, %v5370
    %5372 = vdwg.mxu0
    %5373 = vmatpush.bf16.msra.mxu0 %v4832
    %5374 = vmatpush.bf16.msra.mxu0 %v4828
    %5375 = vmatpush.bf16.msra.mxu0 %v4824
    %5376 = vmatpush.bf16.msra.mxu0 %v4820
    %5377 = vmatpush.bf16.msra.mxu0 %v4816
    %5378 = vmatpush.bf16.msra.mxu0 %v4812
    %5379 = vmatpush.bf16.msra.mxu0 %v4808
    %5380 = vmatpush.bf16.msra.mxu0 %v4804
    %5381 = vmatmul.bf16.gmra.mxu0 %v3668
    %v5382 = vpop.f32.mrf.mxu0
    %v5383 = vadd.f32 %v5369, %v5382
    %v5384 = vpop.f32.mrf.mxu0
    %v5385 = vadd.f32 %v5371, %v5384
    %5386 = vdwg.mxu0
    %5387 = vmatpush.bf16.msra.mxu0 %v4864
    %5388 = vmatpush.bf16.msra.mxu0 %v4860
    %5389 = vmatpush.bf16.msra.mxu0 %v4856
    %5390 = vmatpush.bf16.msra.mxu0 %v4852
    %5391 = vmatpush.bf16.msra.mxu0 %v4848
    %5392 = vmatpush.bf16.msra.mxu0 %v4844
    %5393 = vmatpush.bf16.msra.mxu0 %v4840
    %5394 = vmatpush.bf16.msra.mxu0 %v4836
    %5395 = vmatmul.bf16.gmra.mxu0 %v3669
    %v5396 = vpop.f32.mrf.mxu0
    %v5397 = vadd.f32 %v5383, %v5396
    %v5398 = vpop.f32.mrf.mxu0
    %v5399 = vadd.f32 %v5385, %v5398
    %5400 = vdwg.mxu0
    %5401 = vmatpush.bf16.msra.mxu0 %v4896
    %5402 = vmatpush.bf16.msra.mxu0 %v4892
    %5403 = vmatpush.bf16.msra.mxu0 %v4888
    %5404 = vmatpush.bf16.msra.mxu0 %v4884
    %5405 = vmatpush.bf16.msra.mxu0 %v4880
    %5406 = vmatpush.bf16.msra.mxu0 %v4876
    %5407 = vmatpush.bf16.msra.mxu0 %v4872
    %5408 = vmatpush.bf16.msra.mxu0 %v4868
    %5409 = vmatmul.bf16.gmra.mxu0 %v3670
    %v5410 = vpop.f32.mrf.mxu0
    %v5411 = vadd.f32 %v5397, %v5410
    %v5412 = vpop.f32.mrf.mxu0
    %v5413 = vadd.f32 %v5399, %v5412
    %5414 = vdwg.mxu0
    %5415 = vmatpush.bf16.msra.mxu0 %v4928
    %5416 = vmatpush.bf16.msra.mxu0 %v4924
    %5417 = vmatpush.bf16.msra.mxu0 %v4920
    %5418 = vmatpush.bf16.msra.mxu0 %v4916
    %5419 = vmatpush.bf16.msra.mxu0 %v4912
    %5420 = vmatpush.bf16.msra.mxu0 %v4908
    %5421 = vmatpush.bf16.msra.mxu0 %v4904
    %5422 = vmatpush.bf16.msra.mxu0 %v4900
    %5423 = vmatmul.bf16.gmra.mxu0 %v3671
    %v5424 = vpop.f32.mrf.mxu0
    %v5425 = vadd.f32 %v5411, %v5424
    %v5426 = vpop.f32.mrf.mxu0
    %v5427 = vadd.f32 %v5413, %v5426
    %5428 = vdwg.mxu0
    %5429 = vmatpush.bf16.msra.mxu0 %v4960
    %5430 = vmatpush.bf16.msra.mxu0 %v4956
    %5431 = vmatpush.bf16.msra.mxu0 %v4952
    %5432 = vmatpush.bf16.msra.mxu0 %v4948
    %5433 = vmatpush.bf16.msra.mxu0 %v4944
    %5434 = vmatpush.bf16.msra.mxu0 %v4940
    %5435 = vmatpush.bf16.msra.mxu0 %v4936
    %5436 = vmatpush.bf16.msra.mxu0 %v4932
    %5437 = vmatmul.bf16.gmra.mxu0 %v3672
    %v5438 = vpop.f32.mrf.mxu0
    %v5439 = vadd.f32 %v5425, %v5438
    %v5440 = vpop.f32.mrf.mxu0
    %v5441 = vadd.f32 %v5427, %v5440
    %5442 = vdwg.mxu0
    %5443 = vmatpush.bf16.msra.mxu0 %v4737
    %5444 = vmatpush.bf16.msra.mxu0 %v4733
    %5445 = vmatpush.bf16.msra.mxu0 %v4729
    %5446 = vmatpush.bf16.msra.mxu0 %v4725
    %5447 = vmatpush.bf16.msra.mxu0 %v4721
    %5448 = vmatpush.bf16.msra.mxu0 %v4717
    %5449 = vmatpush.bf16.msra.mxu0 %v4713
    %5450 = vmatpush.bf16.msra.mxu0 %v4709
    %5451 = vmatmul.bf16.gmra.mxu0 %v3665
    %v5452 = vpop.f32.mrf.mxu0
    %v5453 = vadd.f32 %v3933, %v5452
    %v5454 = vpop.f32.mrf.mxu0
    %v5455 = vadd.f32 %v3933, %v5454
    %5456 = vdwg.mxu0
    %5457 = vmatpush.bf16.msra.mxu0 %v4769
    %5458 = vmatpush.bf16.msra.mxu0 %v4765
    %5459 = vmatpush.bf16.msra.mxu0 %v4761
    %5460 = vmatpush.bf16.msra.mxu0 %v4757
    %5461 = vmatpush.bf16.msra.mxu0 %v4753
    %5462 = vmatpush.bf16.msra.mxu0 %v4749
    %5463 = vmatpush.bf16.msra.mxu0 %v4745
    %5464 = vmatpush.bf16.msra.mxu0 %v4741
    %5465 = vmatmul.bf16.gmra.mxu0 %v3666
    %v5466 = vpop.f32.mrf.mxu0
    %v5467 = vadd.f32 %v5453, %v5466
    %v5468 = vpop.f32.mrf.mxu0
    %v5469 = vadd.f32 %v5455, %v5468
    %5470 = vdwg.mxu0
    %5471 = vmatpush.bf16.msra.mxu0 %v4801
    %5472 = vmatpush.bf16.msra.mxu0 %v4797
    %5473 = vmatpush.bf16.msra.mxu0 %v4793
    %5474 = vmatpush.bf16.msra.mxu0 %v4789
    %5475 = vmatpush.bf16.msra.mxu0 %v4785
    %5476 = vmatpush.bf16.msra.mxu0 %v4781
    %5477 = vmatpush.bf16.msra.mxu0 %v4777
    %5478 = vmatpush.bf16.msra.mxu0 %v4773
    %5479 = vmatmul.bf16.gmra.mxu0 %v3667
    %v5480 = vpop.f32.mrf.mxu0
    %v5481 = vadd.f32 %v5467, %v5480
    %v5482 = vpop.f32.mrf.mxu0
    %v5483 = vadd.f32 %v5469, %v5482
    %5484 = vdwg.mxu0
    %5485 = vmatpush.bf16.msra.mxu0 %v4833
    %5486 = vmatpush.bf16.msra.mxu0 %v4829
    %5487 = vmatpush.bf16.msra.mxu0 %v4825
    %5488 = vmatpush.bf16.msra.mxu0 %v4821
    %5489 = vmatpush.bf16.msra.mxu0 %v4817
    %5490 = vmatpush.bf16.msra.mxu0 %v4813
    %5491 = vmatpush.bf16.msra.mxu0 %v4809
    %5492 = vmatpush.bf16.msra.mxu0 %v4805
    %5493 = vmatmul.bf16.gmra.mxu0 %v3668
    %v5494 = vpop.f32.mrf.mxu0
    %v5495 = vadd.f32 %v5481, %v5494
    %v5496 = vpop.f32.mrf.mxu0
    %v5497 = vadd.f32 %v5483, %v5496
    %5498 = vdwg.mxu0
    %5499 = vmatpush.bf16.msra.mxu0 %v4865
    %5500 = vmatpush.bf16.msra.mxu0 %v4861
    %5501 = vmatpush.bf16.msra.mxu0 %v4857
    %5502 = vmatpush.bf16.msra.mxu0 %v4853
    %5503 = vmatpush.bf16.msra.mxu0 %v4849
    %5504 = vmatpush.bf16.msra.mxu0 %v4845
    %5505 = vmatpush.bf16.msra.mxu0 %v4841
    %5506 = vmatpush.bf16.msra.mxu0 %v4837
    %5507 = vmatmul.bf16.gmra.mxu0 %v3669
    %v5508 = vpop.f32.mrf.mxu0
    %v5509 = vadd.f32 %v5495, %v5508
    %v5510 = vpop.f32.mrf.mxu0
    %v5511 = vadd.f32 %v5497, %v5510
    %5512 = vdwg.mxu0
    %5513 = vmatpush.bf16.msra.mxu0 %v4897
    %5514 = vmatpush.bf16.msra.mxu0 %v4893
    %5515 = vmatpush.bf16.msra.mxu0 %v4889
    %5516 = vmatpush.bf16.msra.mxu0 %v4885
    %5517 = vmatpush.bf16.msra.mxu0 %v4881
    %5518 = vmatpush.bf16.msra.mxu0 %v4877
    %5519 = vmatpush.bf16.msra.mxu0 %v4873
    %5520 = vmatpush.bf16.msra.mxu0 %v4869
    %5521 = vmatmul.bf16.gmra.mxu0 %v3670
    %v5522 = vpop.f32.mrf.mxu0
    %v5523 = vadd.f32 %v5509, %v5522
    %v5524 = vpop.f32.mrf.mxu0
    %v5525 = vadd.f32 %v5511, %v5524
    %5526 = vdwg.mxu0
    %5527 = vmatpush.bf16.msra.mxu0 %v4929
    %5528 = vmatpush.bf16.msra.mxu0 %v4925
    %5529 = vmatpush.bf16.msra.mxu0 %v4921
    %5530 = vmatpush.bf16.msra.mxu0 %v4917
    %5531 = vmatpush.bf16.msra.mxu0 %v4913
    %5532 = vmatpush.bf16.msra.mxu0 %v4909
    %5533 = vmatpush.bf16.msra.mxu0 %v4905
    %5534 = vmatpush.bf16.msra.mxu0 %v4901
    %5535 = vmatmul.bf16.gmra.mxu0 %v3671
    %v5536 = vpop.f32.mrf.mxu0
    %v5537 = vadd.f32 %v5523, %v5536
    %v5538 = vpop.f32.mrf.mxu0
    %v5539 = vadd.f32 %v5525, %v5538
    %5540 = vdwg.mxu0
    %5541 = vmatpush.bf16.msra.mxu0 %v4961
    %5542 = vmatpush.bf16.msra.mxu0 %v4957
    %5543 = vmatpush.bf16.msra.mxu0 %v4953
    %5544 = vmatpush.bf16.msra.mxu0 %v4949
    %5545 = vmatpush.bf16.msra.mxu0 %v4945
    %5546 = vmatpush.bf16.msra.mxu0 %v4941
    %5547 = vmatpush.bf16.msra.mxu0 %v4937
    %5548 = vmatpush.bf16.msra.mxu0 %v4933
    %5549 = vmatmul.bf16.gmra.mxu0 %v3672
    %v5550 = vpop.f32.mrf.mxu0
    %v5551 = vadd.f32 %v5537, %v5550
    %v5552 = vpop.f32.mrf.mxu0
    %v5553 = vadd.f32 %v5539, %v5552
    %5554 = vdwg.mxu0
    %5555 = vmatpush.bf16.msra.mxu0 %v4738
    %5556 = vmatpush.bf16.msra.mxu0 %v4734
    %5557 = vmatpush.bf16.msra.mxu0 %v4730
    %5558 = vmatpush.bf16.msra.mxu0 %v4726
    %5559 = vmatpush.bf16.msra.mxu0 %v4722
    %5560 = vmatpush.bf16.msra.mxu0 %v4718
    %5561 = vmatpush.bf16.msra.mxu0 %v4714
    %5562 = vmatpush.bf16.msra.mxu0 %v4710
    %5563 = vmatmul.bf16.gmra.mxu0 %v3665
    %v5564 = vpop.f32.mrf.mxu0
    %v5565 = vadd.f32 %v3934, %v5564
    %v5566 = vpop.f32.mrf.mxu0
    %v5567 = vadd.f32 %v3934, %v5566
    %5568 = vdwg.mxu0
    %5569 = vmatpush.bf16.msra.mxu0 %v4770
    %5570 = vmatpush.bf16.msra.mxu0 %v4766
    %5571 = vmatpush.bf16.msra.mxu0 %v4762
    %5572 = vmatpush.bf16.msra.mxu0 %v4758
    %5573 = vmatpush.bf16.msra.mxu0 %v4754
    %5574 = vmatpush.bf16.msra.mxu0 %v4750
    %5575 = vmatpush.bf16.msra.mxu0 %v4746
    %5576 = vmatpush.bf16.msra.mxu0 %v4742
    %5577 = vmatmul.bf16.gmra.mxu0 %v3666
    %v5578 = vpop.f32.mrf.mxu0
    %v5579 = vadd.f32 %v5565, %v5578
    %v5580 = vpop.f32.mrf.mxu0
    %v5581 = vadd.f32 %v5567, %v5580
    %5582 = vdwg.mxu0
    %5583 = vmatpush.bf16.msra.mxu0 %v4802
    %5584 = vmatpush.bf16.msra.mxu0 %v4798
    %5585 = vmatpush.bf16.msra.mxu0 %v4794
    %5586 = vmatpush.bf16.msra.mxu0 %v4790
    %5587 = vmatpush.bf16.msra.mxu0 %v4786
    %5588 = vmatpush.bf16.msra.mxu0 %v4782
    %5589 = vmatpush.bf16.msra.mxu0 %v4778
    %5590 = vmatpush.bf16.msra.mxu0 %v4774
    %5591 = vmatmul.bf16.gmra.mxu0 %v3667
    %v5592 = vpop.f32.mrf.mxu0
    %v5593 = vadd.f32 %v5579, %v5592
    %v5594 = vpop.f32.mrf.mxu0
    %v5595 = vadd.f32 %v5581, %v5594
    %5596 = vdwg.mxu0
    %5597 = vmatpush.bf16.msra.mxu0 %v4834
    %5598 = vmatpush.bf16.msra.mxu0 %v4830
    %5599 = vmatpush.bf16.msra.mxu0 %v4826
    %5600 = vmatpush.bf16.msra.mxu0 %v4822
    %5601 = vmatpush.bf16.msra.mxu0 %v4818
    %5602 = vmatpush.bf16.msra.mxu0 %v4814
    %5603 = vmatpush.bf16.msra.mxu0 %v4810
    %5604 = vmatpush.bf16.msra.mxu0 %v4806
    %5605 = vmatmul.bf16.gmra.mxu0 %v3668
    %v5606 = vpop.f32.mrf.mxu0
    %v5607 = vadd.f32 %v5593, %v5606
    %v5608 = vpop.f32.mrf.mxu0
    %v5609 = vadd.f32 %v5595, %v5608
    %5610 = vdwg.mxu0
    %5611 = vmatpush.bf16.msra.mxu0 %v4866
    %5612 = vmatpush.bf16.msra.mxu0 %v4862
    %5613 = vmatpush.bf16.msra.mxu0 %v4858
    %5614 = vmatpush.bf16.msra.mxu0 %v4854
    %5615 = vmatpush.bf16.msra.mxu0 %v4850
    %5616 = vmatpush.bf16.msra.mxu0 %v4846
    %5617 = vmatpush.bf16.msra.mxu0 %v4842
    %5618 = vmatpush.bf16.msra.mxu0 %v4838
    %5619 = vmatmul.bf16.gmra.mxu0 %v3669
    %v5620 = vpop.f32.mrf.mxu0
    %v5621 = vadd.f32 %v5607, %v5620
    %v5622 = vpop.f32.mrf.mxu0
    %v5623 = vadd.f32 %v5609, %v5622
    %5624 = vdwg.mxu0
    %5625 = vmatpush.bf16.msra.mxu0 %v4898
    %5626 = vmatpush.bf16.msra.mxu0 %v4894
    %5627 = vmatpush.bf16.msra.mxu0 %v4890
    %5628 = vmatpush.bf16.msra.mxu0 %v4886
    %5629 = vmatpush.bf16.msra.mxu0 %v4882
    %5630 = vmatpush.bf16.msra.mxu0 %v4878
    %5631 = vmatpush.bf16.msra.mxu0 %v4874
    %5632 = vmatpush.bf16.msra.mxu0 %v4870
    %5633 = vmatmul.bf16.gmra.mxu0 %v3670
    %v5634 = vpop.f32.mrf.mxu0
    %v5635 = vadd.f32 %v5621, %v5634
    %v5636 = vpop.f32.mrf.mxu0
    %v5637 = vadd.f32 %v5623, %v5636
    %5638 = vdwg.mxu0
    %5639 = vmatpush.bf16.msra.mxu0 %v4930
    %5640 = vmatpush.bf16.msra.mxu0 %v4926
    %5641 = vmatpush.bf16.msra.mxu0 %v4922
    %5642 = vmatpush.bf16.msra.mxu0 %v4918
    %5643 = vmatpush.bf16.msra.mxu0 %v4914
    %5644 = vmatpush.bf16.msra.mxu0 %v4910
    %5645 = vmatpush.bf16.msra.mxu0 %v4906
    %5646 = vmatpush.bf16.msra.mxu0 %v4902
    %5647 = vmatmul.bf16.gmra.mxu0 %v3671
    %v5648 = vpop.f32.mrf.mxu0
    %v5649 = vadd.f32 %v5635, %v5648
    %v5650 = vpop.f32.mrf.mxu0
    %v5651 = vadd.f32 %v5637, %v5650
    %5652 = vdwg.mxu0
    %5653 = vmatpush.bf16.msra.mxu0 %v4962
    %5654 = vmatpush.bf16.msra.mxu0 %v4958
    %5655 = vmatpush.bf16.msra.mxu0 %v4954
    %5656 = vmatpush.bf16.msra.mxu0 %v4950
    %5657 = vmatpush.bf16.msra.mxu0 %v4946
    %5658 = vmatpush.bf16.msra.mxu0 %v4942
    %5659 = vmatpush.bf16.msra.mxu0 %v4938
    %5660 = vmatpush.bf16.msra.mxu0 %v4934
    %5661 = vmatmul.bf16.gmra.mxu0 %v3672
    %v5662 = vpop.f32.mrf.mxu0
    %v5663 = vadd.f32 %v5649, %v5662
    %v5664 = vpop.f32.mrf.mxu0
    %v5665 = vadd.f32 %v5651, %v5664
    %5666 = vdwg.mxu0
    %v5667 = vmax.f32 %v5327, 0.0
    %v5668 = vmax.f32 %v5439, 0.0
    %v5669 = vmax.f32 %v5551, 0.0
    %v5670 = vmax.f32 %v5663, 0.0
    %v5671 = vmax.f32 %v5329, 0.0
    %v5672 = vmax.f32 %v5441, 0.0
    %v5673 = vmax.f32 %v5553, 0.0
    %v5674 = vmax.f32 %v5665, 0.0
    %v5675 = vpack.c.bf16 %v5671, %v5667
    %v5676 = vpack.c.bf16 %v5672, %v5668
    %v5677 = vpack.c.bf16 %v5673, %v5669
    %v5678 = vpack.c.bf16 %v5674, %v5670
    %v5679 = vld [vmem:[#allocation10] sm:$0xff]
    %v5680 = vld [vmem:[#allocation10 + $0x8] sm:$0xff]
    %v5681 = vld [vmem:[#allocation10 + $0x10] sm:$0xff]
    %v5682 = vld [vmem:[#allocation10 + $0x18] sm:$0xff]
    %v5683 = vld [vmem:[#allocation10 + $0x20] sm:$0xff]
    %v5684 = vld [vmem:[#allocation10 + $0x28] sm:$0xff]
    %v5685 = vld [vmem:[#allocation10 + $0x30] sm:$0xff]
    %v5686 = vld [vmem:[#allocation10 + $0x38] sm:$0xff]
    %v5687 = vld [vmem:[#allocation10 + $0x40] sm:$0xff]
    %v5688 = vld [vmem:[#allocation10 + $0x48] sm:$0xff]
    %v5689 = vld [vmem:[#allocation10 + $0x50] sm:$0xff]
    %v5690 = vld [vmem:[#allocation10 + $0x58] sm:$0xff]
    %v5691 = vld [vmem:[#allocation10 + $0x60] sm:$0xff]
    %v5692 = vld [vmem:[#allocation10 + $0x68] sm:$0xff]
    %v5693 = vld [vmem:[#allocation10 + $0x70] sm:$0xff]
    %v5694 = vld [vmem:[#allocation10 + $0x78] sm:$0xff]
    %v5695 = vld [vmem:[#allocation10 + $0x80] sm:$0xff]
    %v5696 = vld [vmem:[#allocation10 + $0x88] sm:$0xff]
    %v5697 = vld [vmem:[#allocation10 + $0x90] sm:$0xff]
    %v5698 = vld [vmem:[#allocation10 + $0x98] sm:$0xff]
    %v5699 = vld [vmem:[#allocation10 + $0xa0] sm:$0xff]
    %v5700 = vld [vmem:[#allocation10 + $0xa8] sm:$0xff]
    %v5701 = vld [vmem:[#allocation10 + $0xb0] sm:$0xff]
    %v5702 = vld [vmem:[#allocation10 + $0xb8] sm:$0xff]
    %v5703 = vld [vmem:[#allocation10 + $0xc0] sm:$0xff]
    %v5704 = vld [vmem:[#allocation10 + $0xc8] sm:$0xff]
    %v5705 = vld [vmem:[#allocation10 + $0xd0] sm:$0xff]
    %v5706 = vld [vmem:[#allocation10 + $0xd8] sm:$0xff]
    %v5707 = vld [vmem:[#allocation10 + $0xe0] sm:$0xff]
    %v5708 = vld [vmem:[#allocation10 + $0xe8] sm:$0xff]
    %v5709 = vld [vmem:[#allocation10 + $0xf0] sm:$0xff]
    %v5710 = vld [vmem:[#allocation10 + $0xf8] sm:$0xff]
    %v5711 = vld [vmem:[#allocation10 + $0x100] sm:$0xff]
    %v5712 = vld [vmem:[#allocation10 + $0x108] sm:$0xff]
    %v5713 = vld [vmem:[#allocation10 + $0x110] sm:$0xff]
    %v5714 = vld [vmem:[#allocation10 + $0x118] sm:$0xff]
    %v5715 = vld [vmem:[#allocation10 + $0x120] sm:$0xff]
    %v5716 = vld [vmem:[#allocation10 + $0x128] sm:$0xff]
    %v5717 = vld [vmem:[#allocation10 + $0x130] sm:$0xff]
    %v5718 = vld [vmem:[#allocation10 + $0x138] sm:$0xff]
    %v5719 = vld [vmem:[#allocation10 + $0x140] sm:$0xff]
    %v5720 = vld [vmem:[#allocation10 + $0x148] sm:$0xff]
    %v5721 = vld [vmem:[#allocation10 + $0x150] sm:$0xff]
    %v5722 = vld [vmem:[#allocation10 + $0x158] sm:$0xff]
    %v5723 = vld [vmem:[#allocation10 + $0x160] sm:$0xff]
    %v5724 = vld [vmem:[#allocation10 + $0x168] sm:$0xff]
    %v5725 = vld [vmem:[#allocation10 + $0x170] sm:$0xff]
    %v5726 = vld [vmem:[#allocation10 + $0x178] sm:$0xff]
    %v5727 = vld [vmem:[#allocation10 + $0x180] sm:$0xff]
    %v5728 = vld [vmem:[#allocation10 + $0x188] sm:$0xff]
    %v5729 = vld [vmem:[#allocation10 + $0x190] sm:$0xff]
    %v5730 = vld [vmem:[#allocation10 + $0x198] sm:$0xff]
    %v5731 = vld [vmem:[#allocation10 + $0x1a0] sm:$0xff]
    %v5732 = vld [vmem:[#allocation10 + $0x1a8] sm:$0xff]
    %v5733 = vld [vmem:[#allocation10 + $0x1b0] sm:$0xff]
    %v5734 = vld [vmem:[#allocation10 + $0x1b8] sm:$0xff]
    %v5735 = vld [vmem:[#allocation10 + $0x1c0] sm:$0xff]
    %v5736 = vld [vmem:[#allocation10 + $0x1c8] sm:$0xff]
    %v5737 = vld [vmem:[#allocation10 + $0x1d0] sm:$0xff]
    %v5738 = vld [vmem:[#allocation10 + $0x1d8] sm:$0xff]
    %v5739 = vld [vmem:[#allocation10 + $0x1e0] sm:$0xff]
    %v5740 = vld [vmem:[#allocation10 + $0x1e8] sm:$0xff]
    %v5741 = vld [vmem:[#allocation10 + $0x1f0] sm:$0xff]
    %v5742 = vld [vmem:[#allocation10 + $0x1f8] sm:$0xff]
    %v5743 = vld [vmem:[#allocation11] sm:$0x3]
    %v5745 = vperm.slane %v5743, 0
    %v5746 = vperm.slane %v5743, 1
    %v5813 = vunpack.c.l.b16 %v5679
    %v5814 = vunpack.c.h.b16 %v5679
    %v5815 = vunpack.c.l.b16 %v5680
    %v5816 = vunpack.c.h.b16 %v5680
    %v5817 = vunpack.c.l.b16 %v5681
    %v5818 = vunpack.c.h.b16 %v5681
    %v5819 = vunpack.c.l.b16 %v5682
    %v5820 = vunpack.c.h.b16 %v5682
    %v5821 = vunpack.c.l.b16 %v5683
    %v5822 = vunpack.c.h.b16 %v5683
    %v5823 = vunpack.c.l.b16 %v5684
    %v5824 = vunpack.c.h.b16 %v5684
    %v5825 = vunpack.c.l.b16 %v5685
    %v5826 = vunpack.c.h.b16 %v5685
    %v5827 = vunpack.c.l.b16 %v5686
    %v5828 = vunpack.c.h.b16 %v5686
    %v5829 = vunpack.c.l.b16 %v5687
    %v5830 = vunpack.c.h.b16 %v5687
    %v5831 = vunpack.c.l.b16 %v5688
    %v5832 = vunpack.c.h.b16 %v5688
    %v5833 = vunpack.c.l.b16 %v5689
    %v5834 = vunpack.c.h.b16 %v5689
    %v5835 = vunpack.c.l.b16 %v5690
    %v5836 = vunpack.c.h.b16 %v5690
    %v5837 = vunpack.c.l.b16 %v5691
    %v5838 = vunpack.c.h.b16 %v5691
    %v5839 = vunpack.c.l.b16 %v5692
    %v5840 = vunpack.c.h.b16 %v5692
    %v5841 = vunpack.c.l.b16 %v5693
    %v5842 = vunpack.c.h.b16 %v5693
    %v5843 = vunpack.c.l.b16 %v5694
    %v5844 = vunpack.c.h.b16 %v5694
    %v5845 = vunpack.c.l.b16 %v5695
    %v5846 = vunpack.c.h.b16 %v5695
    %v5847 = vunpack.c.l.b16 %v5696
    %v5848 = vunpack.c.h.b16 %v5696
    %v5849 = vunpack.c.l.b16 %v5697
    %v5850 = vunpack.c.h.b16 %v5697
    %v5851 = vunpack.c.l.b16 %v5698
    %v5852 = vunpack.c.h.b16 %v5698
    %v5853 = vunpack.c.l.b16 %v5699
    %v5854 = vunpack.c.h.b16 %v5699
    %v5855 = vunpack.c.l.b16 %v5700
    %v5856 = vunpack.c.h.b16 %v5700
    %v5857 = vunpack.c.l.b16 %v5701
    %v5858 = vunpack.c.h.b16 %v5701
    %v5859 = vunpack.c.l.b16 %v5702
    %v5860 = vunpack.c.h.b16 %v5702
    %v5861 = vunpack.c.l.b16 %v5703
    %v5862 = vunpack.c.h.b16 %v5703
    %v5863 = vunpack.c.l.b16 %v5704
    %v5864 = vunpack.c.h.b16 %v5704
    %v5865 = vunpack.c.l.b16 %v5705
    %v5866 = vunpack.c.h.b16 %v5705
    %v5867 = vunpack.c.l.b16 %v5706
    %v5868 = vunpack.c.h.b16 %v5706
    %v5869 = vunpack.c.l.b16 %v5707
    %v5870 = vunpack.c.h.b16 %v5707
    %v5871 = vunpack.c.l.b16 %v5708
    %v5872 = vunpack.c.h.b16 %v5708
    %v5873 = vunpack.c.l.b16 %v5709
    %v5874 = vunpack.c.h.b16 %v5709
    %v5875 = vunpack.c.l.b16 %v5710
    %v5876 = vunpack.c.h.b16 %v5710
    %v5877 = vunpack.c.l.b16 %v5711
    %v5878 = vunpack.c.h.b16 %v5711
    %v5879 = vunpack.c.l.b16 %v5712
    %v5880 = vunpack.c.h.b16 %v5712
    %v5881 = vunpack.c.l.b16 %v5713
    %v5882 = vunpack.c.h.b16 %v5713
    %v5883 = vunpack.c.l.b16 %v5714
    %v5884 = vunpack.c.h.b16 %v5714
    %v5885 = vunpack.c.l.b16 %v5715
    %v5886 = vunpack.c.h.b16 %v5715
    %v5887 = vunpack.c.l.b16 %v5716
    %v5888 = vunpack.c.h.b16 %v5716
    %v5889 = vunpack.c.l.b16 %v5717
    %v5890 = vunpack.c.h.b16 %v5717
    %v5891 = vunpack.c.l.b16 %v5718
    %v5892 = vunpack.c.h.b16 %v5718
    %v5893 = vunpack.c.l.b16 %v5719
    %v5894 = vunpack.c.h.b16 %v5719
    %v5895 = vunpack.c.l.b16 %v5720
    %v5896 = vunpack.c.h.b16 %v5720
    %v5897 = vunpack.c.l.b16 %v5721
    %v5898 = vunpack.c.h.b16 %v5721
    %v5899 = vunpack.c.l.b16 %v5722
    %v5900 = vunpack.c.h.b16 %v5722
    %v5901 = vunpack.c.l.b16 %v5723
    %v5902 = vunpack.c.h.b16 %v5723
    %v5903 = vunpack.c.l.b16 %v5724
    %v5904 = vunpack.c.h.b16 %v5724
    %v5905 = vunpack.c.l.b16 %v5725
    %v5906 = vunpack.c.h.b16 %v5725
    %v5907 = vunpack.c.l.b16 %v5726
    %v5908 = vunpack.c.h.b16 %v5726
    %v5909 = vunpack.c.l.b16 %v5727
    %v5910 = vunpack.c.h.b16 %v5727
    %v5911 = vunpack.c.l.b16 %v5728
    %v5912 = vunpack.c.h.b16 %v5728
    %v5913 = vunpack.c.l.b16 %v5729
    %v5914 = vunpack.c.h.b16 %v5729
    %v5915 = vunpack.c.l.b16 %v5730
    %v5916 = vunpack.c.h.b16 %v5730
    %v5917 = vunpack.c.l.b16 %v5731
    %v5918 = vunpack.c.h.b16 %v5731
    %v5919 = vunpack.c.l.b16 %v5732
    %v5920 = vunpack.c.h.b16 %v5732
    %v5921 = vunpack.c.l.b16 %v5733
    %v5922 = vunpack.c.h.b16 %v5733
    %v5923 = vunpack.c.l.b16 %v5734
    %v5924 = vunpack.c.h.b16 %v5734
    %v5925 = vunpack.c.l.b16 %v5735
    %v5926 = vunpack.c.h.b16 %v5735
    %v5927 = vunpack.c.l.b16 %v5736
    %v5928 = vunpack.c.h.b16 %v5736
    %v5929 = vunpack.c.l.b16 %v5737
    %v5930 = vunpack.c.h.b16 %v5737
    %v5931 = vunpack.c.l.b16 %v5738
    %v5932 = vunpack.c.h.b16 %v5738
    %v5933 = vunpack.c.l.b16 %v5739
    %v5934 = vunpack.c.h.b16 %v5739
    %v5935 = vunpack.c.l.b16 %v5740
    %v5936 = vunpack.c.h.b16 %v5740
    %v5937 = vunpack.c.l.b16 %v5741
    %v5938 = vunpack.c.h.b16 %v5741
    %v5939 = vunpack.c.l.b16 %v5742
    %v5940 = vunpack.c.h.b16 %v5742
    %v5941 = vpack.c.b16 %v5815, %v5813
    %v5942 = vpack.c.b16 %v5816, %v5814
    %v5943 = vpack.c.b16 %v5819, %v5817
    %v5944 = vpack.c.b16 %v5820, %v5818
    %v5945 = vpack.c.b16 %v5823, %v5821
    %v5946 = vpack.c.b16 %v5824, %v5822
    %v5947 = vpack.c.b16 %v5827, %v5825
    %v5948 = vpack.c.b16 %v5828, %v5826
    %v5949 = vpack.c.b16 %v5831, %v5829
    %v5950 = vpack.c.b16 %v5832, %v5830
    %v5951 = vpack.c.b16 %v5835, %v5833
    %v5952 = vpack.c.b16 %v5836, %v5834
    %v5953 = vpack.c.b16 %v5839, %v5837
    %v5954 = vpack.c.b16 %v5840, %v5838
    %v5955 = vpack.c.b16 %v5843, %v5841
    %v5956 = vpack.c.b16 %v5844, %v5842
    %v5957 = vpack.c.b16 %v5847, %v5845
    %v5958 = vpack.c.b16 %v5848, %v5846
    %v5959 = vpack.c.b16 %v5851, %v5849
    %v5960 = vpack.c.b16 %v5852, %v5850
    %v5961 = vpack.c.b16 %v5855, %v5853
    %v5962 = vpack.c.b16 %v5856, %v5854
    %v5963 = vpack.c.b16 %v5859, %v5857
    %v5964 = vpack.c.b16 %v5860, %v5858
    %v5965 = vpack.c.b16 %v5863, %v5861
    %v5966 = vpack.c.b16 %v5864, %v5862
    %v5967 = vpack.c.b16 %v5867, %v5865
    %v5968 = vpack.c.b16 %v5868, %v5866
    %v5969 = vpack.c.b16 %v5871, %v5869
    %v5970 = vpack.c.b16 %v5872, %v5870
    %v5971 = vpack.c.b16 %v5875, %v5873
    %v5972 = vpack.c.b16 %v5876, %v5874
    %v5973 = vpack.c.b16 %v5879, %v5877
    %v5974 = vpack.c.b16 %v5880, %v5878
    %v5975 = vpack.c.b16 %v5883, %v5881
    %v5976 = vpack.c.b16 %v5884, %v5882
    %v5977 = vpack.c.b16 %v5887, %v5885
    %v5978 = vpack.c.b16 %v5888, %v5886
    %v5979 = vpack.c.b16 %v5891, %v5889
    %v5980 = vpack.c.b16 %v5892, %v5890
    %v5981 = vpack.c.b16 %v5895, %v5893
    %v5982 = vpack.c.b16 %v5896, %v5894
    %v5983 = vpack.c.b16 %v5899, %v5897
    %v5984 = vpack.c.b16 %v5900, %v5898
    %v5985 = vpack.c.b16 %v5903, %v5901
    %v5986 = vpack.c.b16 %v5904, %v5902
    %v5987 = vpack.c.b16 %v5907, %v5905
    %v5988 = vpack.c.b16 %v5908, %v5906
    %v5989 = vpack.c.b16 %v5911, %v5909
    %v5990 = vpack.c.b16 %v5912, %v5910
    %v5991 = vpack.c.b16 %v5915, %v5913
    %v5992 = vpack.c.b16 %v5916, %v5914
    %v5993 = vpack.c.b16 %v5919, %v5917
    %v5994 = vpack.c.b16 %v5920, %v5918
    %v5995 = vpack.c.b16 %v5923, %v5921
    %v5996 = vpack.c.b16 %v5924, %v5922
    %v5997 = vpack.c.b16 %v5927, %v5925
    %v5998 = vpack.c.b16 %v5928, %v5926
    %v5999 = vpack.c.b16 %v5931, %v5929
    %v6000 = vpack.c.b16 %v5932, %v5930
    %v6001 = vpack.c.b16 %v5935, %v5933
    %v6002 = vpack.c.b16 %v5936, %v5934
    %v6003 = vpack.c.b16 %v5939, %v5937
    %v6004 = vpack.c.b16 %v5940, %v5938
    %6069 = vmatpush.bf16.msra.mxu0 %v5955
    %6070 = vmatpush.bf16.msra.mxu0 %v5953
    %6071 = vmatpush.bf16.msra.mxu0 %v5951
    %6072 = vmatpush.bf16.msra.mxu0 %v5949
    %6073 = vmatpush.bf16.msra.mxu0 %v5947
    %6074 = vmatpush.bf16.msra.mxu0 %v5945
    %6075 = vmatpush.bf16.msra.mxu0 %v5943
    %6076 = vmatpush.bf16.msra.mxu0 %v5941
    %6077 = vmatmul.bf16.gmra.mxu0 %v5675
    %v6078 = vpop.f32.mrf.mxu0
    %v6079 = vadd.f32 %v5745, %v6078
    %v6080 = vpop.f32.mrf.mxu0
    %v6081 = vadd.f32 %v5745, %v6080
    %6082 = vdwg.mxu0
    %6083 = vmatpush.bf16.msra.mxu0 %v5971
    %6084 = vmatpush.bf16.msra.mxu0 %v5969
    %6085 = vmatpush.bf16.msra.mxu0 %v5967
    %6086 = vmatpush.bf16.msra.mxu0 %v5965
    %6087 = vmatpush.bf16.msra.mxu0 %v5963
    %6088 = vmatpush.bf16.msra.mxu0 %v5961
    %6089 = vmatpush.bf16.msra.mxu0 %v5959
    %6090 = vmatpush.bf16.msra.mxu0 %v5957
    %6091 = vmatmul.bf16.gmra.mxu0 %v5676
    %v6092 = vpop.f32.mrf.mxu0
    %v6093 = vadd.f32 %v6079, %v6092
    %v6094 = vpop.f32.mrf.mxu0
    %v6095 = vadd.f32 %v6081, %v6094
    %6096 = vdwg.mxu0
    %6097 = vmatpush.bf16.msra.mxu0 %v5987
    %6098 = vmatpush.bf16.msra.mxu0 %v5985
    %6099 = vmatpush.bf16.msra.mxu0 %v5983
    %6100 = vmatpush.bf16.msra.mxu0 %v5981
    %6101 = vmatpush.bf16.msra.mxu0 %v5979
    %6102 = vmatpush.bf16.msra.mxu0 %v5977
    %6103 = vmatpush.bf16.msra.mxu0 %v5975
    %6104 = vmatpush.bf16.msra.mxu0 %v5973
    %6105 = vmatmul.bf16.gmra.mxu0 %v5677
    %v6106 = vpop.f32.mrf.mxu0
    %v6107 = vadd.f32 %v6093, %v6106
    %v6108 = vpop.f32.mrf.mxu0
    %v6109 = vadd.f32 %v6095, %v6108
    %6110 = vdwg.mxu0
    %6111 = vmatpush.bf16.msra.mxu0 %v6003
    %6112 = vmatpush.bf16.msra.mxu0 %v6001
    %6113 = vmatpush.bf16.msra.mxu0 %v5999
    %6114 = vmatpush.bf16.msra.mxu0 %v5997
    %6115 = vmatpush.bf16.msra.mxu0 %v5995
    %6116 = vmatpush.bf16.msra.mxu0 %v5993
    %6117 = vmatpush.bf16.msra.mxu0 %v5991
    %6118 = vmatpush.bf16.msra.mxu0 %v5989
    %6119 = vmatmul.bf16.gmra.mxu0 %v5678
    %v6120 = vpop.f32.mrf.mxu0
    %v6121 = vadd.f32 %v6107, %v6120
    %v6122 = vpop.f32.mrf.mxu0
    %v6123 = vadd.f32 %v6109, %v6122
    %6124 = vdwg.mxu0
    %6125 = vmatpush.bf16.msra.mxu0 %v5956
    %6126 = vmatpush.bf16.msra.mxu0 %v5954
    %6127 = vmatpush.bf16.msra.mxu0 %v5952
    %6128 = vmatpush.bf16.msra.mxu0 %v5950
    %6129 = vmatpush.bf16.msra.mxu0 %v5948
    %6130 = vmatpush.bf16.msra.mxu0 %v5946
    %6131 = vmatpush.bf16.msra.mxu0 %v5944
    %6132 = vmatpush.bf16.msra.mxu0 %v5942
    %6133 = vmatmul.bf16.gmra.mxu0 %v5675
    %v6134 = vpop.f32.mrf.mxu0
    %v6135 = vadd.f32 %v5746, %v6134
    %v6136 = vpop.f32.mrf.mxu0
    %v6137 = vadd.f32 %v5746, %v6136
    %6138 = vdwg.mxu0
    %6139 = vmatpush.bf16.msra.mxu0 %v5972
    %6140 = vmatpush.bf16.msra.mxu0 %v5970
    %6141 = vmatpush.bf16.msra.mxu0 %v5968
    %6142 = vmatpush.bf16.msra.mxu0 %v5966
    %6143 = vmatpush.bf16.msra.mxu0 %v5964
    %6144 = vmatpush.bf16.msra.mxu0 %v5962
    %6145 = vmatpush.bf16.msra.mxu0 %v5960
    %6146 = vmatpush.bf16.msra.mxu0 %v5958
    %6147 = vmatmul.bf16.gmra.mxu0 %v5676
    %v6148 = vpop.f32.mrf.mxu0
    %v6149 = vadd.f32 %v6135, %v6148
    %v6150 = vpop.f32.mrf.mxu0
    %v6151 = vadd.f32 %v6137, %v6150
    %6152 = vdwg.mxu0
    %6153 = vmatpush.bf16.msra.mxu0 %v5988
    %6154 = vmatpush.bf16.msra.mxu0 %v5986
    %6155 = vmatpush.bf16.msra.mxu0 %v5984
    %6156 = vmatpush.bf16.msra.mxu0 %v5982
    %6157 = vmatpush.bf16.msra.mxu0 %v5980
    %6158 = vmatpush.bf16.msra.mxu0 %v5978
    %6159 = vmatpush.bf16.msra.mxu0 %v5976
    %6160 = vmatpush.bf16.msra.mxu0 %v5974
    %6161 = vmatmul.bf16.gmra.mxu0 %v5677
    %v6162 = vpop.f32.mrf.mxu0
    %v6163 = vadd.f32 %v6149, %v6162
    %v6164 = vpop.f32.mrf.mxu0
    %v6165 = vadd.f32 %v6151, %v6164
    %6166 = vdwg.mxu0
    %6167 = vmatpush.bf16.msra.mxu0 %v6004
    %6168 = vmatpush.bf16.msra.mxu0 %v6002
    %6169 = vmatpush.bf16.msra.mxu0 %v6000
    %6170 = vmatpush.bf16.msra.mxu0 %v5998
    %6171 = vmatpush.bf16.msra.mxu0 %v5996
    %6172 = vmatpush.bf16.msra.mxu0 %v5994
    %6173 = vmatpush.bf16.msra.mxu0 %v5992
    %6174 = vmatpush.bf16.msra.mxu0 %v5990
    %6175 = vmatmul.bf16.gmra.mxu0 %v5678
    %v6176 = vpop.f32.mrf.mxu0
    %v6177 = vadd.f32 %v6163, %v6176
    %v6178 = vpop.f32.mrf.mxu0
    %v6179 = vadd.f32 %v6165, %v6178
    %6180 = vdwg.mxu0
    %6181 = vst [vmem:[#allocation13] sm:$0xff] %v6121
    %6182 = vst [vmem:[#allocation13 + $0x8] sm:$0xff] %v6177
    %6183 = vst [vmem:[#allocation13 + $0x10] sm:$0xff] %v6123
    %6184 = vst [vmem:[#allocation13 + $0x18] sm:$0xff] %v6179
    // Predicated region
    $region54: #{_lambda_.1} parent=1 // pred_check
      _
    $region55: #{_lambda_.1} parent=1 // pred_check_branch
      %6186 = sbr.rel (0) target = $region57
    $region56: #{_lambda_.1} parent=1 // pred_region
      %6188 = vsyncadd [#allocation4], 0
      %s6189 = sshll.u32 [#allocation13], 4
      %s6190 = int_to_ptr.vmem [resolvable:$true] %s6189
      %s6191 = sshll.u32 %s7, 4
      %s6192 = int_to_ptr.hbm [resolvable:$true] %s6191
      %6197 = dma.vmem_to_hbm [thread:$0]  %s6190, 512, %s6192, [#allocation4], 256, 256, 16
    $region57: #{_lambda_.1} parent=1 // pred_fallthru
      _
    // Predicated region
    $region58: #{_lambda_.1} parent=1 // pred_check
      _
    $region59: #{_lambda_.1} parent=1 // pred_check_branch
      %6199 = sbr.rel (0) target = $region61
    $region60: #{_lambda_.1} parent=1 // pred_region
      %6201 = dma.done [#allocation4], 512
    $region61: #{_lambda_.1} parent=1 // pred_fallthru
      _
    %6202 = vsyncpa [#allocation3], 1
    %6203 = vsyncpa [#allocation6], 1
    %6204 = vsyncpa [#allocation9], 1
    %6205 = vsyncpa [#allocation12], 1
    %6206 = vsyncpa [#allocation4], 1

</llo_original>
